<compile_context>
chip_gen: v7x
topology: tpu7x:2x2x1
jax: 0.10.0
libtpu: 0.0.40
codegen_flags: <defaults>
</compile_context>

<pallas_src>
import math

import jax
import jax.numpy as jnp
import numpy as np
from jax.experimental import pallas as pl
from jax.experimental.pallas import tpu as pltpu

NUM_HEADS = 4
EPS = 1e-6
NEG_INF = -1e9


# --------------------------- Pallas kernel ---------------------------
def decoder_kernel(
    x_ref, enc_ref, src_bias_ref, tgt_bias_ref,
    w_qkv_sa_ref, b_qkv_sa_ref, wo_sa_ref, bo_sa_ref,     # self-attention  (stacked over layers)
    w_q_ca_ref, b_q_ca_ref, w_kv_ca_ref, b_kv_ca_ref,     # cross-attention (stacked over layers)
    wo_ca_ref, bo_ca_ref,
    w_ff1_ref, b_ff1_ref, w_ff2_ref, b_ff2_ref,           # feed-forward    (stacked over layers)
    ln_a_ref, ln_b_ref,                                    # 3 sublayer LayerNorms per layer
    lnf_a_ref, lnf_b_ref,                                  # final LayerNorm
    o_ref,
):
    S_t, D = x_ref.shape
    n_layers, S_s, _ = enc_ref.shape
    H = NUM_HEADS
    d_k = D // H
    scale = 1.0 / math.sqrt(d_k)

    def layer_norm(t, gamma, beta):
        # torch semantics: unbiased std, divide by (std + eps); exact reciprocal, math in f32.
        mean = jnp.mean(t, axis=-1, keepdims=True)
        var = jnp.sum((t - mean) ** 2, axis=-1, keepdims=True) * (1.0 / (D - 1))
        return gamma * (t - mean) / (jnp.sqrt(var) + EPS) + beta

    def split_heads(t):
        # (S, D) f32 -> (H, S, d_k) bf16 via lane slices + leading-axis stack
        # (avoids lane-dim reshapes; H is the einsum batch dim downstream).
        return jnp.stack([t[:, h * d_k:(h + 1) * d_k] for h in range(H)],
                         axis=0).astype(jnp.bfloat16)

    def attend(q, k, v, bias):
        """q: (S_q, D) f32 already scaled by 1/sqrt(d_k); k,v: (S_kv, D) f32;
        bias: (S_q|1, S_kv) f32 additive mask. Returns merged-head context (S_q, D) bf16."""
        qh, kh, vh = split_heads(q), split_heads(k), split_heads(v)
        s = jnp.einsum("hqc,hkc->hqk", qh, kh, preferred_element_type=jnp.float32)
        s = s + bias[None]                                  # broadcast over heads
        m = jnp.max(s, axis=-1, keepdims=True)
        e = jnp.exp(s - m)                                  # softmax in f32
        p = (e * pl.reciprocal(jnp.sum(e, axis=-1, keepdims=True), approx=True)
             ).astype(jnp.bfloat16)
        ctx = jnp.einsum("hqk,hkc->hqc", p, vh, preferred_element_type=jnp.float32)
        # merge heads along lanes -> (S_q, D), single full-width output projection follows
        return jnp.concatenate([ctx[h] for h in range(H)], axis=-1).astype(jnp.bfloat16)

    src_bias = src_bias_ref[...]        # (1, S_s)   additive mask (0 / -1e9)
    tgt_bias = tgt_bias_ref[...]        # (S_t, S_t) additive mask (0 / -1e9)
    ln_a = ln_a_ref[...]                # (N, 3, 1, D)
    ln_b = ln_b_ref[...]

    x = x_ref[...]                      # (S_t, D) f32 residual stream

    for i in range(n_layers):           # N is small; static unroll is fine at this depth
        # ---- sublayer 0: masked self-attention (pre-norm residual) ----
        xn = layer_norm(x, ln_a[i, 0], ln_b[i, 0]).astype(jnp.bfloat16)
        qkv = jnp.dot(xn, w_qkv_sa_ref[i],
                      preferred_element_type=jnp.float32) + b_qkv_sa_ref[i]   # (S_t, 3D)
        ctx = attend(qkv[:, :D] * scale, qkv[:, D:2 * D], qkv[:, 2 * D:], tgt_bias)
        x = x + jnp.dot(ctx, wo_sa_ref[i],
                        preferred_element_type=jnp.float32) + bo_sa_ref[i]

        # ---- sublayer 1: cross-attention over enc_outputs[i] ----
        yn = layer_norm(x, ln_a[i, 1], ln_b[i, 1]).astype(jnp.bfloat16)
        q = jnp.dot(yn, w_q_ca_ref[i],
                    preferred_element_type=jnp.float32) + b_q_ca_ref[i]       # (S_t, D)
        kv = jnp.dot(enc_ref[i], w_kv_ca_ref[i],
                     preferred_element_type=jnp.float32) + b_kv_ca_ref[i]     # (S_s, 2D)
        ctx = attend(q * scale, kv[:, :D], kv[:, D:], src_bias)
        x = x + jnp.dot(ctx, wo_ca_ref[i],
                        preferred_element_type=jnp.float32) + bo_ca_ref[i]

        # ---- sublayer 2: position-wise feed-forward ----
        zn = layer_norm(x, ln_a[i, 2], ln_b[i, 2]).astype(jnp.bfloat16)
        h1 = jnp.maximum(
            jnp.dot(zn, w_ff1_ref[i], preferred_element_type=jnp.float32) + b_ff1_ref[i],
            0.0)
        x = x + jnp.dot(h1.astype(jnp.bfloat16), w_ff2_ref[i],
                        preferred_element_type=jnp.float32) + b_ff2_ref[i]

    o_ref[...] = layer_norm(x, lnf_a_ref[...], lnf_b_ref[...]).astype(o_ref.dtype)


# --------------------------- one-time wrapper-side packing ---------------------------
def prepare_params(params):
    """Fuse QKV / KV projections, stack per-layer params over layers, and cast every MXU
    weight operand to bf16. Called ONCE at init, outside jax.jit."""
    w_qkv_sa, b_qkv_sa, wo_sa, bo_sa = [], [], [], []
    w_q_ca, b_q_ca, w_kv_ca, b_kv_ca, wo_ca, bo_ca = [], [], [], [], [], []
    w_ff1, b_ff1, w_ff2, b_ff2, ln_a, ln_b = [], [], [], [], [], []

    def fuse(att, names):
        w = jnp.concatenate([att["w" + n] for n in names], axis=1).astype(jnp.bfloat16)
        b = jnp.concatenate([att["b" + n] for n in names], axis=0).reshape(1, -1)
        return w, b

    for layer in params["layers"]:
        w, b = fuse(layer["self_attn"], ("q", "k", "v"))         # (D, 3D), (1, 3D)
        w_qkv_sa.append(w); b_qkv_sa.append(b)
        wo_sa.append(layer["self_attn"]["wo"].astype(jnp.bfloat16))
        bo_sa.append(layer["self_attn"]["bo"].reshape(1, -1))

        w, b = fuse(layer["src_attn"], ("q",))                   # (D, D), (1, D)
        w_q_ca.append(w); b_q_ca.append(b)
        w, b = fuse(layer["src_attn"], ("k", "v"))               # (D, 2D), (1, 2D)
        w_kv_ca.append(w); b_kv_ca.append(b)
        wo_ca.append(layer["src_attn"]["wo"].astype(jnp.bfloat16))
        bo_ca.append(layer["src_attn"]["bo"].reshape(1, -1))

        ff = layer["ff"]
        w_ff1.append(ff["w1"].astype(jnp.bfloat16)); b_ff1.append(ff["b1"].reshape(1, -1))
        w_ff2.append(ff["w2"].astype(jnp.bfloat16)); b_ff2.append(ff["b2"].reshape(1, -1))

        ln_a.append(jnp.stack([a.reshape(1, -1) for a, _ in layer["ln"]]))
        ln_b.append(jnp.stack([bb.reshape(1, -1) for _, bb in layer["ln"]]))

    af, bf = params["final_ln"]
    stacked = tuple(jnp.stack(c, axis=0) for c in
                    (w_qkv_sa, b_qkv_sa, wo_sa, bo_sa,
                     w_q_ca, b_q_ca, w_kv_ca, b_kv_ca, wo_ca, bo_ca,
                     w_ff1, b_ff1, w_ff2, b_ff2, ln_a, ln_b))
    return stacked + (af.reshape(1, -1), bf.reshape(1, -1))


# --------------------------- forward ---------------------------
@jax.jit
def decoder_forward(x, enc_outputs, src_mask, tgt_mask, packed):
    B, S_t, D = x.shape
    n_layers, _, S_s, _ = enc_outputs.shape

    # per-call data prep (cheap XLA ops, not redone for weights)
    enc_bf16 = enc_outputs.astype(jnp.bfloat16)                          # halves enc DMA bytes
    src_bias = jnp.where(src_mask == 0.0, NEG_INF, 0.0).astype(jnp.float32)   # (B, 1, S_s)
    tgt_bias = jnp.where(tgt_mask == 0.0, NEG_INF, 0.0).astype(jnp.float32)   # (B, S_t, S_t)

    batched_specs = [
        pl.BlockSpec((None, S_t, D), lambda b: (b, 0, 0)),               # x
        pl.BlockSpec((n_layers, None, S_s, D), lambda b: (0, b, 0, 0)),  # enc (per-layer memories)
        pl.BlockSpec((None, 1, S_s), lambda b: (b, 0, 0)),               # src additive bias
        pl.BlockSpec((None, S_t, S_t), lambda b: (b, 0, 0)),             # tgt additive bias
    ]
    # weights: full-array blocks, same block index every grid step -> fetched once, kept resident
    weight_specs = [pl.BlockSpec(a.shape, lambda b, nd=a.ndim: (0,) * nd) for a in packed]

    return pl.pallas_call(
        decoder_kernel,
        out_shape=jax.ShapeDtypeStruct((B, S_t, D), jnp.float32),
        grid=(B,),
        in_specs=batched_specs + weight_specs,
        out_specs=pl.BlockSpec((None, S_t, D), lambda b: (b, 0, 0)),
        compiler_params=pltpu.CompilerParams(dimension_semantics=("parallel",)),
    )(x, enc_bf16, src_bias, tgt_bias, *packed)


# --------------------------- pure-JAX reference ---------------------------
def decoder_ref(x, enc_outputs, src_mask, tgt_mask, params, num_heads=NUM_HEADS):
    B, S_t, D = x.shape
    dk = D // num_heads
    hi = jax.lax.Precision.HIGHEST

    def ln(t, a, b):
        mean = t.mean(-1, keepdims=True)
        var = jnp.sum((t - mean) ** 2, axis=-1, keepdims=True) / (D - 1)
        return a * (t - mean) / (jnp.sqrt(var) + EPS) + b

    def attn(q_in, kv_in, att, mask):
        q = jnp.matmul(q_in, att["wq"], precision=hi) + att["bq"]
        k = jnp.matmul(kv_in, att["wk"], precision=hi) + att["bk"]
        v = jnp.matmul(kv_in, att["wv"], precision=hi) + att["bv"]

        def split(t):
            return t.reshape(t.shape[0], t.shape[1], num_heads, dk).transpose(0, 2, 1, 3)

        qh, kh, vh = split(q), split(k), split(v)
        s = jnp.einsum("bhqc,bhkc->bhqk", qh, kh, precision=hi) / math.sqrt(dk)
        s = jnp.where(mask[:, None] == 0.0, NEG_INF, s)
        p = jax.nn.softmax(s, axis=-1)
        ctx = jnp.einsum("bhqk,bhkc->bhqc", p, vh, precision=hi)
        ctx = ctx.transpose(0, 2, 1, 3).reshape(q_in.shape[0], q_in.shape[1], D)
        return jnp.matmul(ctx, att["wo"], precision=hi) + att["bo"]

    for i, layer in enumerate(params["layers"]):
        (a1, b1), (a2, b2), (a3, b3) = layer["ln"]
        xn = ln(x, a1, b1)
        x = x + attn(xn, xn, layer["self_attn"], tgt_mask)
        yn = ln(x, a2, b2)
        x = x + attn(yn, enc_outputs[i], layer["src_attn"], src_mask)
        zn = ln(x, a3, b3)
        ff = layer["ff"]
        h1 = jnp.maximum(jnp.matmul(zn, ff["w1"], precision=hi) + ff["b1"], 0.0)
        x = x + jnp.matmul(h1, ff["w2"], precision=hi) + ff["b2"]
    af, bf = params["final_ln"]
    return ln(x, af, bf)


# --------------------------- parameter init ---------------------------
def init_params(key, n_layers, d_model, d_ff):
    s = 0.05

    def linear(k, din, dout):
        kw, kb = jax.random.split(k)
        return (jax.random.normal(kw, (din, dout), jnp.float32) * s,
                jax.random.normal(kb, (dout,), jnp.float32) * s)

    def ln_pair(k, d):
        ka, kb = jax.random.split(k)
        return (1.0 + 0.1 * jax.random.normal(ka, (d,), jnp.float32),
                0.1 * jax.random.normal(kb, (d,), jnp.float32))

    layers = []
    keys = jax.random.split(key, n_layers + 1)
    for i in range(n_layers):
        k = jax.random.split(keys[i], 13)
        wq, bq = linear(k[0], d_model, d_model)
        wk, bk = linear(k[1], d_model, d_model)
        wv, bv = linear(k[2], d_model, d_model)
        wo, bo = linear(k[3], d_model, d_model)
        self_attn = dict(wq=wq, bq=bq, wk=wk, bk=bk, wv=wv, bv=bv, wo=wo, bo=bo)
        wq2, bq2 = linear(k[4], d_model, d_model)
        wk2, bk2 = linear(k[5], d_model, d_model)
        wv2, bv2 = linear(k[6], d_model, d_model)
        wo2, bo2 = linear(k[7], d_model, d_model)
        src_attn = dict(wq=wq2, bq=bq2, wk=wk2, bk=bk2, wv=wv2, bv=bv2, wo=wo2, bo=bo2)
        w1, b1 = linear(k[8], d_model, d_ff)
        w2, b2 = linear(k[9], d_ff, d_model)
        ff = dict(w1=w1, b1=b1, w2=w2, b2=b2)
        lns = [ln_pair(k[10 + j], d_model) for j in range(3)]
        layers.append(dict(self_attn=self_attn, src_attn=src_attn, ff=ff, ln=lns))
    final_ln = ln_pair(keys[-1], d_model)
    return dict(layers=layers, final_ln=final_ln)


if __name__ == "__main__":
    B, S_T, S_S, D_MODEL, D_FF, N_LAYERS = 2, 8, 16, 128, 256, 2
    key = jax.random.PRNGKey(0)
    kx, ke, kp = jax.random.split(key, 3)

    x = jax.random.normal(kx, (B, S_T, D_MODEL), jnp.float32)
    # per-layer encoder outputs, since Decoder.forward indexes enc_outputs[i]
    enc_outputs = jax.random.normal(ke, (N_LAYERS, B, S_S, D_MODEL), jnp.float32)

    # source padding mask: batch 1 has its last 4 source positions padded
    src_mask = jnp.ones((B, 1, S_S), jnp.float32).at[1, 0, 12:].set(0.0)
    # target mask: causal AND padding (batch 1: last 2 target positions padded)
    causal = jnp.tril(jnp.ones((S_T, S_T), jnp.float32))
    tgt_pad = jnp.ones((B, 1, S_T), jnp.float32).at[1, 0, 6:].set(0.0)
    tgt_mask = tgt_pad * causal[None]

    params = init_params(kp, N_LAYERS, D_MODEL, D_FF)
    packed = prepare_params(params)   # one-time packing, outside jit

    out = jax.block_until_ready(decoder_forward(x, enc_outputs, src_mask, tgt_mask, packed))
    ref = decoder_ref(x, enc_outputs, src_mask, tgt_mask, params)

    assert out.shape == (B, S_T, D_MODEL)
    # tolerance accounts for bf16 MXU operands + approx (EUP) softmax reciprocal in the kernel
    assert np.allclose(np.asarray(out), np.asarray(ref), rtol=2e-2, atol=2e-2), \
        "mismatch vs pure-JAX reference"
    print("KERNEL_OK")
</pallas_src>

<mosaic_0001>
module attributes {stable_mosaic.version = 11 : i64} {
  func.func @decoder_kernel(%arg0: i32, %arg1: memref<1x8x128xf32, #tpu.memory_space<vmem>>, %arg2: memref<2x1x16x128xbf16, #tpu.memory_space<vmem>>, %arg3: memref<1x1x16xf32, #tpu.memory_space<vmem>>, %arg4: memref<1x8x8xf32, #tpu.memory_space<vmem>>, %arg5: memref<2x128x384xbf16, #tpu.memory_space<vmem>>, %arg6: memref<2x1x384xf32, #tpu.memory_space<vmem>>, %arg7: memref<2x128x128xbf16, #tpu.memory_space<vmem>>, %arg8: memref<2x1x128xf32, #tpu.memory_space<vmem>>, %arg9: memref<2x128x128xbf16, #tpu.memory_space<vmem>>, %arg10: memref<2x1x128xf32, #tpu.memory_space<vmem>>, %arg11: memref<2x128x256xbf16, #tpu.memory_space<vmem>>, %arg12: memref<2x1x256xf32, #tpu.memory_space<vmem>>, %arg13: memref<2x128x128xbf16, #tpu.memory_space<vmem>>, %arg14: memref<2x1x128xf32, #tpu.memory_space<vmem>>, %arg15: memref<2x128x256xbf16, #tpu.memory_space<vmem>>, %arg16: memref<2x1x256xf32, #tpu.memory_space<vmem>>, %arg17: memref<2x256x128xbf16, #tpu.memory_space<vmem>>, %arg18: memref<2x1x128xf32, #tpu.memory_space<vmem>>, %arg19: memref<2x3x1x128xf32, #tpu.memory_space<vmem>>, %arg20: memref<2x3x1x128xf32, #tpu.memory_space<vmem>>, %arg21: memref<1x128xf32, #tpu.memory_space<vmem>>, %arg22: memref<1x128xf32, #tpu.memory_space<vmem>>, %arg23: memref<1x8x128xf32, #tpu.memory_space<vmem>>) attributes {dimension_semantics = [#tpu.dimension_semantics<parallel>], iteration_bounds = array<i64: 2>, scalar_prefetch = 0 : i64, scratch_operands = 0 : i64, tpu.core_type = #tpu.core_type<tc>, window_params = [{transform_indices = @transform_0, window_bounds = array<i64: 1, 8, 128>}, {transform_indices = @transform_1, window_bounds = array<i64: 2, 1, 16, 128>}, {transform_indices = @transform_2, window_bounds = array<i64: 1, 1, 16>}, {transform_indices = @transform_3, window_bounds = array<i64: 1, 8, 8>}, {pipeline_mode = #tpu.pipeline_mode<synchronous>, transform_indices = @transform_4, window_bounds = array<i64: 2, 128, 384>}, {pipeline_mode = #tpu.pipeline_mode<synchronous>, transform_indices = @transform_5, window_bounds = array<i64: 2, 1, 384>}, {pipeline_mode = #tpu.pipeline_mode<synchronous>, transform_indices = @transform_6, window_bounds = array<i64: 2, 128, 128>}, {pipeline_mode = #tpu.pipeline_mode<synchronous>, transform_indices = @transform_7, window_bounds = array<i64: 2, 1, 128>}, {pipeline_mode = #tpu.pipeline_mode<synchronous>, transform_indices = @transform_8, window_bounds = array<i64: 2, 128, 128>}, {pipeline_mode = #tpu.pipeline_mode<synchronous>, transform_indices = @transform_9, window_bounds = array<i64: 2, 1, 128>}, {pipeline_mode = #tpu.pipeline_mode<synchronous>, transform_indices = @transform_10, window_bounds = array<i64: 2, 128, 256>}, {pipeline_mode = #tpu.pipeline_mode<synchronous>, transform_indices = @transform_11, window_bounds = array<i64: 2, 1, 256>}, {pipeline_mode = #tpu.pipeline_mode<synchronous>, transform_indices = @transform_12, window_bounds = array<i64: 2, 128, 128>}, {pipeline_mode = #tpu.pipeline_mode<synchronous>, transform_indices = @transform_13, window_bounds = array<i64: 2, 1, 128>}, {pipeline_mode = #tpu.pipeline_mode<synchronous>, transform_indices = @transform_14, window_bounds = array<i64: 2, 128, 256>}, {pipeline_mode = #tpu.pipeline_mode<synchronous>, transform_indices = @transform_15, window_bounds = array<i64: 2, 1, 256>}, {pipeline_mode = #tpu.pipeline_mode<synchronous>, transform_indices = @transform_16, window_bounds = array<i64: 2, 256, 128>}, {pipeline_mode = #tpu.pipeline_mode<synchronous>, transform_indices = @transform_17, window_bounds = array<i64: 2, 1, 128>}, {pipeline_mode = #tpu.pipeline_mode<synchronous>, transform_indices = @transform_18, window_bounds = array<i64: 2, 3, 1, 128>}, {pipeline_mode = #tpu.pipeline_mode<synchronous>, transform_indices = @transform_19, window_bounds = array<i64: 2, 3, 1, 128>}, {pipeline_mode = #tpu.pipeline_mode<synchronous>, transform_indices = @transform_20, window_bounds = array<i64: 1, 128>}, {pipeline_mode = #tpu.pipeline_mode<synchronous>, transform_indices = @transform_21, window_bounds = array<i64: 1, 128>}, {transform_indices = @transform_22, window_bounds = array<i64: 1, 8, 128>}]} {
    %c0 = arith.constant 0 : index
    %c0_0 = arith.constant 0 : index
    %c0_1 = arith.constant 0 : index
    %0 = vector.load %arg3[%c0, %c0_0, %c0_1] : memref<1x1x16xf32, #tpu.memory_space<vmem>>, vector<1x1x16xf32>
    %1 = vector.shape_cast %0 : vector<1x1x16xf32> to vector<1x16xf32>
    %c0_2 = arith.constant 0 : index
    %c0_3 = arith.constant 0 : index
    %c0_4 = arith.constant 0 : index
    %2 = vector.load %arg4[%c0_2, %c0_3, %c0_4] : memref<1x8x8xf32, #tpu.memory_space<vmem>>, vector<1x8x8xf32>
    %3 = vector.shape_cast %2 : vector<1x8x8xf32> to vector<8x8xf32>
    %c0_5 = arith.constant 0 : index
    %c0_6 = arith.constant 0 : index
    %c0_7 = arith.constant 0 : index
    %c0_8 = arith.constant 0 : index
    %4 = vector.load %arg19[%c0_5, %c0_6, %c0_7, %c0_8] : memref<2x3x1x128xf32, #tpu.memory_space<vmem>>, vector<2x3x1x128xf32>
    %c0_9 = arith.constant 0 : index
    %c0_10 = arith.constant 0 : index
    %c0_11 = arith.constant 0 : index
    %c0_12 = arith.constant 0 : index
    %5 = vector.load %arg20[%c0_9, %c0_10, %c0_11, %c0_12] : memref<2x3x1x128xf32, #tpu.memory_space<vmem>>, vector<2x3x1x128xf32>
    %c0_13 = arith.constant 0 : index
    %c0_14 = arith.constant 0 : index
    %c0_15 = arith.constant 0 : index
    %6 = vector.load %arg1[%c0_13, %c0_14, %c0_15] : memref<1x8x128xf32, #tpu.memory_space<vmem>>, vector<1x8x128xf32>
    %7 = vector.shape_cast %6 : vector<1x8x128xf32> to vector<8x128xf32>
    %8 = vector.extract_strided_slice %4 {offsets = [0, 0, 0, 0], sizes = [1, 1, 1, 128], strides = [1, 1, 1, 1]} : vector<2x3x1x128xf32> to vector<1x1x1x128xf32>
    %9 = vector.shape_cast %8 : vector<1x1x1x128xf32> to vector<1x128xf32>
    %10 = vector.extract_strided_slice %5 {offsets = [0, 0, 0, 0], sizes = [1, 1, 1, 128], strides = [1, 1, 1, 1]} : vector<2x3x1x128xf32> to vector<1x1x1x128xf32>
    %11 = vector.shape_cast %10 : vector<1x1x1x128xf32> to vector<1x128xf32>
    %cst = arith.constant dense<0.000000e+00> : vector<8xf32>
    %12 = vector.multi_reduction <add>, %7, %cst [1] : vector<8x128xf32> to vector<8xf32>
    %13 = vector.shape_cast %12 : vector<8xf32> to vector<8x1xf32>
    %cst_16 = arith.constant 1.280000e+02 : f32
    %14 = vector.broadcast %cst_16 : f32 to vector<8x1xf32>
    %15 = arith.divf %13, %14 : vector<8x1xf32>
    %16 = vector.broadcast %15 : vector<8x1xf32> to vector<8x128xf32>
    %17 = arith.subf %7, %16 : vector<8x128xf32>
    %18 = arith.mulf %17, %17 : vector<8x128xf32>
    %cst_17 = arith.constant dense<0.000000e+00> : vector<8xf32>
    %19 = vector.multi_reduction <add>, %18, %cst_17 [1] : vector<8x128xf32> to vector<8xf32>
    %20 = vector.shape_cast %19 : vector<8xf32> to vector<8x1xf32>
    %cst_18 = arith.constant 0.00787401571 : f32
    %21 = vector.broadcast %cst_18 : f32 to vector<8x1xf32>
    %22 = arith.mulf %20, %21 : vector<8x1xf32>
    %23 = vector.broadcast %15 : vector<8x1xf32> to vector<8x128xf32>
    %24 = arith.subf %7, %23 : vector<8x128xf32>
    %25 = vector.broadcast %9 : vector<1x128xf32> to vector<8x128xf32>
    %26 = arith.mulf %25, %24 : vector<8x128xf32>
    %27 = math.sqrt %22 : vector<8x1xf32>
    %cst_19 = arith.constant 9.99999997E-7 : f32
    %28 = vector.broadcast %cst_19 : f32 to vector<8x1xf32>
    %29 = arith.addf %27, %28 : vector<8x1xf32>
    %30 = vector.broadcast %29 : vector<8x1xf32> to vector<8x128xf32>
    %31 = arith.divf %26, %30 : vector<8x128xf32>
    %32 = vector.broadcast %11 : vector<1x128xf32> to vector<8x128xf32>
    %33 = arith.addf %31, %32 : vector<8x128xf32>
    %34 = arith.truncf %33 : vector<8x128xf32> to vector<8x128xbf16>
    %c0_20 = arith.constant 0 : index
    %c0_21 = arith.constant 0 : index
    %c0_22 = arith.constant 0 : index
    %35 = vector.load %arg5[%c0_20, %c0_21, %c0_22] : memref<2x128x384xbf16, #tpu.memory_space<vmem>>, vector<1x128x384xbf16>
    %36 = vector.shape_cast %35 : vector<1x128x384xbf16> to vector<128x384xbf16>
    %cst_23 = arith.constant dense<0.000000e+00> : vector<8x384xf32>
    %37 = tpu.matmul %34, %36, %cst_23 {dimension_numbers = #tpu.dot_dimension_numbers<[1], [0], [0], [1], [0, 0, 1, 1], [], []>} : vector<8x128xbf16>, vector<128x384xbf16>, vector<8x384xf32> -> vector<8x384xf32>
    %c0_24 = arith.constant 0 : index
    %c0_25 = arith.constant 0 : index
    %c0_26 = arith.constant 0 : index
    %38 = vector.load %arg6[%c0_24, %c0_25, %c0_26] : memref<2x1x384xf32, #tpu.memory_space<vmem>>, vector<1x1x384xf32>
    %39 = vector.shape_cast %38 : vector<1x1x384xf32> to vector<1x384xf32>
    %40 = vector.broadcast %39 : vector<1x384xf32> to vector<8x384xf32>
    %41 = arith.addf %37, %40 : vector<8x384xf32>
    %42 = vector.extract_strided_slice %41 {offsets = [0, 0], sizes = [8, 128], strides = [1, 1]} : vector<8x384xf32> to vector<8x128xf32>
    %cst_27 = arith.constant 0.176776692 : f32
    %43 = vector.broadcast %cst_27 : f32 to vector<8x128xf32>
    %44 = arith.mulf %42, %43 : vector<8x128xf32>
    %45 = vector.extract_strided_slice %41 {offsets = [0, 128], sizes = [8, 128], strides = [1, 1]} : vector<8x384xf32> to vector<8x128xf32>
    %46 = vector.extract_strided_slice %41 {offsets = [0, 256], sizes = [8, 128], strides = [1, 1]} : vector<8x384xf32> to vector<8x128xf32>
    %47 = vector.extract_strided_slice %44 {offsets = [0, 0], sizes = [8, 32], strides = [1, 1]} : vector<8x128xf32> to vector<8x32xf32>
    %48 = vector.extract_strided_slice %44 {offsets = [0, 32], sizes = [8, 32], strides = [1, 1]} : vector<8x128xf32> to vector<8x32xf32>
    %49 = vector.extract_strided_slice %44 {offsets = [0, 64], sizes = [8, 32], strides = [1, 1]} : vector<8x128xf32> to vector<8x32xf32>
    %50 = vector.extract_strided_slice %44 {offsets = [0, 96], sizes = [8, 32], strides = [1, 1]} : vector<8x128xf32> to vector<8x32xf32>
    %51 = vector.shape_cast %47 : vector<8x32xf32> to vector<1x8x32xf32>
    %52 = vector.shape_cast %48 : vector<8x32xf32> to vector<1x8x32xf32>
    %53 = vector.shape_cast %49 : vector<8x32xf32> to vector<1x8x32xf32>
    %54 = vector.shape_cast %50 : vector<8x32xf32> to vector<1x8x32xf32>
    %55 = tpu.concatenate %51, %52, %53, %54 in 0 : vector<1x8x32xf32>, vector<1x8x32xf32>, vector<1x8x32xf32>, vector<1x8x32xf32> -> vector<4x8x32xf32>
    %56 = arith.truncf %55 : vector<4x8x32xf32> to vector<4x8x32xbf16>
    %57 = vector.extract_strided_slice %45 {offsets = [0, 0], sizes = [8, 32], strides = [1, 1]} : vector<8x128xf32> to vector<8x32xf32>
    %58 = vector.extract_strided_slice %45 {offsets = [0, 32], sizes = [8, 32], strides = [1, 1]} : vector<8x128xf32> to vector<8x32xf32>
    %59 = vector.extract_strided_slice %45 {offsets = [0, 64], sizes = [8, 32], strides = [1, 1]} : vector<8x128xf32> to vector<8x32xf32>
    %60 = vector.extract_strided_slice %45 {offsets = [0, 96], sizes = [8, 32], strides = [1, 1]} : vector<8x128xf32> to vector<8x32xf32>
    %61 = vector.shape_cast %57 : vector<8x32xf32> to vector<1x8x32xf32>
    %62 = vector.shape_cast %58 : vector<8x32xf32> to vector<1x8x32xf32>
    %63 = vector.shape_cast %59 : vector<8x32xf32> to vector<1x8x32xf32>
    %64 = vector.shape_cast %60 : vector<8x32xf32> to vector<1x8x32xf32>
    %65 = tpu.concatenate %61, %62, %63, %64 in 0 : vector<1x8x32xf32>, vector<1x8x32xf32>, vector<1x8x32xf32>, vector<1x8x32xf32> -> vector<4x8x32xf32>
    %66 = arith.truncf %65 : vector<4x8x32xf32> to vector<4x8x32xbf16>
    %67 = vector.extract_strided_slice %46 {offsets = [0, 0], sizes = [8, 32], strides = [1, 1]} : vector<8x128xf32> to vector<8x32xf32>
    %68 = vector.extract_strided_slice %46 {offsets = [0, 32], sizes = [8, 32], strides = [1, 1]} : vector<8x128xf32> to vector<8x32xf32>
    %69 = vector.extract_strided_slice %46 {offsets = [0, 64], sizes = [8, 32], strides = [1, 1]} : vector<8x128xf32> to vector<8x32xf32>
    %70 = vector.extract_strided_slice %46 {offsets = [0, 96], sizes = [8, 32], strides = [1, 1]} : vector<8x128xf32> to vector<8x32xf32>
    %71 = vector.shape_cast %67 : vector<8x32xf32> to vector<1x8x32xf32>
    %72 = vector.shape_cast %68 : vector<8x32xf32> to vector<1x8x32xf32>
    %73 = vector.shape_cast %69 : vector<8x32xf32> to vector<1x8x32xf32>
    %74 = vector.shape_cast %70 : vector<8x32xf32> to vector<1x8x32xf32>
    %75 = tpu.concatenate %71, %72, %73, %74 in 0 : vector<1x8x32xf32>, vector<1x8x32xf32>, vector<1x8x32xf32>, vector<1x8x32xf32> -> vector<4x8x32xf32>
    %76 = arith.truncf %75 : vector<4x8x32xf32> to vector<4x8x32xbf16>
    "tpu.trace_start"() <{level = 10 : i32, message = "hqc,hkc->hqk"}> : () -> ()
    %cst_28 = arith.constant dense<0.000000e+00> : vector<4x8x8xf32>
    %77 = tpu.matmul %56, %66, %cst_28 {dimension_numbers = #tpu.dot_dimension_numbers<[2], [2], [1], [1], [0, 0, 0, 1, 1, 1], [0], [0]>} : vector<4x8x32xbf16>, vector<4x8x32xbf16>, vector<4x8x8xf32> -> vector<4x8x8xf32>
    "tpu.trace_stop"() : () -> ()
    %78 = vector.shape_cast %3 : vector<8x8xf32> to vector<1x8x8xf32>
    %79 = vector.broadcast %78 : vector<1x8x8xf32> to vector<4x8x8xf32>
    %80 = arith.addf %77, %79 : vector<4x8x8xf32>
    %cst_29 = arith.constant dense<0xFF800000> : vector<4x8xf32>
    %81 = vector.multi_reduction <maximumf>, %80, %cst_29 [2] : vector<4x8x8xf32> to vector<4x8xf32>
    %82 = vector.shape_cast %81 : vector<4x8xf32> to vector<4x8x1xf32>
    %83 = vector.broadcast %82 : vector<4x8x1xf32> to vector<4x8x8xf32>
    %84 = arith.subf %80, %83 : vector<4x8x8xf32>
    %85 = math.exp %84 : vector<4x8x8xf32>
    %cst_30 = arith.constant dense<0.000000e+00> : vector<4x8xf32>
    %86 = vector.multi_reduction <add>, %85, %cst_30 [2] : vector<4x8x8xf32> to vector<4x8xf32>
    %87 = vector.shape_cast %86 : vector<4x8xf32> to vector<4x8x1xf32>
    %88 = tpu.reciprocal %87 {approx = true} : vector<4x8x1xf32> -> vector<4x8x1xf32>
    %89 = vector.broadcast %88 : vector<4x8x1xf32> to vector<4x8x8xf32>
    %90 = arith.mulf %85, %89 : vector<4x8x8xf32>
    %91 = arith.truncf %90 : vector<4x8x8xf32> to vector<4x8x8xbf16>
    "tpu.trace_start"() <{level = 10 : i32, message = "hqk,hkc->hqc"}> : () -> ()
    %cst_31 = arith.constant dense<0.000000e+00> : vector<4x8x32xf32>
    %92 = tpu.matmul %91, %76, %cst_31 {dimension_numbers = #tpu.dot_dimension_numbers<[2], [1], [1], [2], [0, 0, 0, 1, 1, 2], [0], [0]>} : vector<4x8x8xbf16>, vector<4x8x32xbf16>, vector<4x8x32xf32> -> vector<4x8x32xf32>
    "tpu.trace_stop"() : () -> ()
    %93 = vector.extract_strided_slice %92 {offsets = [0, 0, 0], sizes = [1, 8, 32], strides = [1, 1, 1]} : vector<4x8x32xf32> to vector<1x8x32xf32>
    %94 = vector.shape_cast %93 : vector<1x8x32xf32> to vector<8x32xf32>
    %95 = vector.extract_strided_slice %92 {offsets = [1, 0, 0], sizes = [1, 8, 32], strides = [1, 1, 1]} : vector<4x8x32xf32> to vector<1x8x32xf32>
    %96 = vector.shape_cast %95 : vector<1x8x32xf32> to vector<8x32xf32>
    %97 = vector.extract_strided_slice %92 {offsets = [2, 0, 0], sizes = [1, 8, 32], strides = [1, 1, 1]} : vector<4x8x32xf32> to vector<1x8x32xf32>
    %98 = vector.shape_cast %97 : vector<1x8x32xf32> to vector<8x32xf32>
    %99 = vector.extract_strided_slice %92 {offsets = [3, 0, 0], sizes = [1, 8, 32], strides = [1, 1, 1]} : vector<4x8x32xf32> to vector<1x8x32xf32>
    %100 = vector.shape_cast %99 : vector<1x8x32xf32> to vector<8x32xf32>
    %101 = tpu.concatenate %94, %96, %98, %100 in 1 : vector<8x32xf32>, vector<8x32xf32>, vector<8x32xf32>, vector<8x32xf32> -> vector<8x128xf32>
    %102 = arith.truncf %101 : vector<8x128xf32> to vector<8x128xbf16>
    %c0_32 = arith.constant 0 : index
    %c0_33 = arith.constant 0 : index
    %c0_34 = arith.constant 0 : index
    %103 = vector.load %arg7[%c0_32, %c0_33, %c0_34] : memref<2x128x128xbf16, #tpu.memory_space<vmem>>, vector<1x128x128xbf16>
    %104 = vector.shape_cast %103 : vector<1x128x128xbf16> to vector<128x128xbf16>
    %cst_35 = arith.constant dense<0.000000e+00> : vector<8x128xf32>
    %105 = tpu.matmul %102, %104, %cst_35 {dimension_numbers = #tpu.dot_dimension_numbers<[1], [0], [0], [1], [0, 0, 1, 1], [], []>} : vector<8x128xbf16>, vector<128x128xbf16>, vector<8x128xf32> -> vector<8x128xf32>
    %106 = arith.addf %7, %105 : vector<8x128xf32>
    %c0_36 = arith.constant 0 : index
    %c0_37 = arith.constant 0 : index
    %c0_38 = arith.constant 0 : index
    %107 = vector.load %arg8[%c0_36, %c0_37, %c0_38] : memref<2x1x128xf32, #tpu.memory_space<vmem>>, vector<1x1x128xf32>
    %108 = vector.shape_cast %107 : vector<1x1x128xf32> to vector<1x128xf32>
    %109 = vector.broadcast %108 : vector<1x128xf32> to vector<8x128xf32>
    %110 = arith.addf %106, %109 : vector<8x128xf32>
    %111 = vector.extract_strided_slice %4 {offsets = [0, 1, 0, 0], sizes = [1, 1, 1, 128], strides = [1, 1, 1, 1]} : vector<2x3x1x128xf32> to vector<1x1x1x128xf32>
    %112 = vector.shape_cast %111 : vector<1x1x1x128xf32> to vector<1x128xf32>
    %113 = vector.extract_strided_slice %5 {offsets = [0, 1, 0, 0], sizes = [1, 1, 1, 128], strides = [1, 1, 1, 1]} : vector<2x3x1x128xf32> to vector<1x1x1x128xf32>
    %114 = vector.shape_cast %113 : vector<1x1x1x128xf32> to vector<1x128xf32>
    %cst_39 = arith.constant dense<0.000000e+00> : vector<8xf32>
    %115 = vector.multi_reduction <add>, %110, %cst_39 [1] : vector<8x128xf32> to vector<8xf32>
    %116 = vector.shape_cast %115 : vector<8xf32> to vector<8x1xf32>
    %cst_40 = arith.constant 1.280000e+02 : f32
    %117 = vector.broadcast %cst_40 : f32 to vector<8x1xf32>
    %118 = arith.divf %116, %117 : vector<8x1xf32>
    %119 = vector.broadcast %118 : vector<8x1xf32> to vector<8x128xf32>
    %120 = arith.subf %110, %119 : vector<8x128xf32>
    %121 = arith.mulf %120, %120 : vector<8x128xf32>
    %cst_41 = arith.constant dense<0.000000e+00> : vector<8xf32>
    %122 = vector.multi_reduction <add>, %121, %cst_41 [1] : vector<8x128xf32> to vector<8xf32>
    %123 = vector.shape_cast %122 : vector<8xf32> to vector<8x1xf32>
    %cst_42 = arith.constant 0.00787401571 : f32
    %124 = vector.broadcast %cst_42 : f32 to vector<8x1xf32>
    %125 = arith.mulf %123, %124 : vector<8x1xf32>
    %126 = vector.broadcast %118 : vector<8x1xf32> to vector<8x128xf32>
    %127 = arith.subf %110, %126 : vector<8x128xf32>
    %128 = vector.broadcast %112 : vector<1x128xf32> to vector<8x128xf32>
    %129 = arith.mulf %128, %127 : vector<8x128xf32>
    %130 = math.sqrt %125 : vector<8x1xf32>
    %cst_43 = arith.constant 9.99999997E-7 : f32
    %131 = vector.broadcast %cst_43 : f32 to vector<8x1xf32>
    %132 = arith.addf %130, %131 : vector<8x1xf32>
    %133 = vector.broadcast %132 : vector<8x1xf32> to vector<8x128xf32>
    %134 = arith.divf %129, %133 : vector<8x128xf32>
    %135 = vector.broadcast %114 : vector<1x128xf32> to vector<8x128xf32>
    %136 = arith.addf %134, %135 : vector<8x128xf32>
    %137 = arith.truncf %136 : vector<8x128xf32> to vector<8x128xbf16>
    %c0_44 = arith.constant 0 : index
    %c0_45 = arith.constant 0 : index
    %c0_46 = arith.constant 0 : index
    %138 = vector.load %arg9[%c0_44, %c0_45, %c0_46] : memref<2x128x128xbf16, #tpu.memory_space<vmem>>, vector<1x128x128xbf16>
    %139 = vector.shape_cast %138 : vector<1x128x128xbf16> to vector<128x128xbf16>
    %cst_47 = arith.constant dense<0.000000e+00> : vector<8x128xf32>
    %140 = tpu.matmul %137, %139, %cst_47 {dimension_numbers = #tpu.dot_dimension_numbers<[1], [0], [0], [1], [0, 0, 1, 1], [], []>} : vector<8x128xbf16>, vector<128x128xbf16>, vector<8x128xf32> -> vector<8x128xf32>
    %c0_48 = arith.constant 0 : index
    %c0_49 = arith.constant 0 : index
    %c0_50 = arith.constant 0 : index
    %141 = vector.load %arg10[%c0_48, %c0_49, %c0_50] : memref<2x1x128xf32, #tpu.memory_space<vmem>>, vector<1x1x128xf32>
    %142 = vector.shape_cast %141 : vector<1x1x128xf32> to vector<1x128xf32>
    %143 = vector.broadcast %142 : vector<1x128xf32> to vector<8x128xf32>
    %144 = arith.addf %140, %143 : vector<8x128xf32>
    %c0_51 = arith.constant 0 : index
    %c0_52 = arith.constant 0 : index
    %c0_53 = arith.constant 0 : index
    %c0_54 = arith.constant 0 : index
    %145 = vector.load %arg2[%c0_51, %c0_52, %c0_53, %c0_54] : memref<2x1x16x128xbf16, #tpu.memory_space<vmem>>, vector<1x1x16x128xbf16>
    %146 = vector.shape_cast %145 : vector<1x1x16x128xbf16> to vector<16x128xbf16>
    %c0_55 = arith.constant 0 : index
    %c0_56 = arith.constant 0 : index
    %c0_57 = arith.constant 0 : index
    %147 = vector.load %arg11[%c0_55, %c0_56, %c0_57] : memref<2x128x256xbf16, #tpu.memory_space<vmem>>, vector<1x128x256xbf16>
    %148 = vector.shape_cast %147 : vector<1x128x256xbf16> to vector<128x256xbf16>
    %cst_58 = arith.constant dense<0.000000e+00> : vector<16x256xf32>
    %149 = tpu.matmul %146, %148, %cst_58 {dimension_numbers = #tpu.dot_dimension_numbers<[1], [0], [0], [1], [0, 0, 1, 1], [], []>} : vector<16x128xbf16>, vector<128x256xbf16>, vector<16x256xf32> -> vector<16x256xf32>
    %c0_59 = arith.constant 0 : index
    %c0_60 = arith.constant 0 : index
    %c0_61 = arith.constant 0 : index
    %150 = vector.load %arg12[%c0_59, %c0_60, %c0_61] : memref<2x1x256xf32, #tpu.memory_space<vmem>>, vector<1x1x256xf32>
    %151 = vector.shape_cast %150 : vector<1x1x256xf32> to vector<1x256xf32>
    %152 = vector.broadcast %151 : vector<1x256xf32> to vector<16x256xf32>
    %153 = arith.addf %149, %152 : vector<16x256xf32>
    %cst_62 = arith.constant 0.176776692 : f32
    %154 = vector.broadcast %cst_62 : f32 to vector<8x128xf32>
    %155 = arith.mulf %144, %154 : vector<8x128xf32>
    %156 = vector.extract_strided_slice %153 {offsets = [0, 0], sizes = [16, 128], strides = [1, 1]} : vector<16x256xf32> to vector<16x128xf32>
    %157 = vector.extract_strided_slice %153 {offsets = [0, 128], sizes = [16, 128], strides = [1, 1]} : vector<16x256xf32> to vector<16x128xf32>
    %158 = vector.extract_strided_slice %155 {offsets = [0, 0], sizes = [8, 32], strides = [1, 1]} : vector<8x128xf32> to vector<8x32xf32>
    %159 = vector.extract_strided_slice %155 {offsets = [0, 32], sizes = [8, 32], strides = [1, 1]} : vector<8x128xf32> to vector<8x32xf32>
    %160 = vector.extract_strided_slice %155 {offsets = [0, 64], sizes = [8, 32], strides = [1, 1]} : vector<8x128xf32> to vector<8x32xf32>
    %161 = vector.extract_strided_slice %155 {offsets = [0, 96], sizes = [8, 32], strides = [1, 1]} : vector<8x128xf32> to vector<8x32xf32>
    %162 = vector.shape_cast %158 : vector<8x32xf32> to vector<1x8x32xf32>
    %163 = vector.shape_cast %159 : vector<8x32xf32> to vector<1x8x32xf32>
    %164 = vector.shape_cast %160 : vector<8x32xf32> to vector<1x8x32xf32>
    %165 = vector.shape_cast %161 : vector<8x32xf32> to vector<1x8x32xf32>
    %166 = tpu.concatenate %162, %163, %164, %165 in 0 : vector<1x8x32xf32>, vector<1x8x32xf32>, vector<1x8x32xf32>, vector<1x8x32xf32> -> vector<4x8x32xf32>
    %167 = arith.truncf %166 : vector<4x8x32xf32> to vector<4x8x32xbf16>
    %168 = vector.extract_strided_slice %156 {offsets = [0, 0], sizes = [16, 32], strides = [1, 1]} : vector<16x128xf32> to vector<16x32xf32>
    %169 = vector.extract_strided_slice %156 {offsets = [0, 32], sizes = [16, 32], strides = [1, 1]} : vector<16x128xf32> to vector<16x32xf32>
    %170 = vector.extract_strided_slice %156 {offsets = [0, 64], sizes = [16, 32], strides = [1, 1]} : vector<16x128xf32> to vector<16x32xf32>
    %171 = vector.extract_strided_slice %156 {offsets = [0, 96], sizes = [16, 32], strides = [1, 1]} : vector<16x128xf32> to vector<16x32xf32>
    %172 = vector.shape_cast %168 : vector<16x32xf32> to vector<1x16x32xf32>
    %173 = vector.shape_cast %169 : vector<16x32xf32> to vector<1x16x32xf32>
    %174 = vector.shape_cast %170 : vector<16x32xf32> to vector<1x16x32xf32>
    %175 = vector.shape_cast %171 : vector<16x32xf32> to vector<1x16x32xf32>
    %176 = tpu.concatenate %172, %173, %174, %175 in 0 : vector<1x16x32xf32>, vector<1x16x32xf32>, vector<1x16x32xf32>, vector<1x16x32xf32> -> vector<4x16x32xf32>
    %177 = arith.truncf %176 : vector<4x16x32xf32> to vector<4x16x32xbf16>
    %178 = vector.extract_strided_slice %157 {offsets = [0, 0], sizes = [16, 32], strides = [1, 1]} : vector<16x128xf32> to vector<16x32xf32>
    %179 = vector.extract_strided_slice %157 {offsets = [0, 32], sizes = [16, 32], strides = [1, 1]} : vector<16x128xf32> to vector<16x32xf32>
    %180 = vector.extract_strided_slice %157 {offsets = [0, 64], sizes = [16, 32], strides = [1, 1]} : vector<16x128xf32> to vector<16x32xf32>
    %181 = vector.extract_strided_slice %157 {offsets = [0, 96], sizes = [16, 32], strides = [1, 1]} : vector<16x128xf32> to vector<16x32xf32>
    %182 = vector.shape_cast %178 : vector<16x32xf32> to vector<1x16x32xf32>
    %183 = vector.shape_cast %179 : vector<16x32xf32> to vector<1x16x32xf32>
    %184 = vector.shape_cast %180 : vector<16x32xf32> to vector<1x16x32xf32>
    %185 = vector.shape_cast %181 : vector<16x32xf32> to vector<1x16x32xf32>
    %186 = tpu.concatenate %182, %183, %184, %185 in 0 : vector<1x16x32xf32>, vector<1x16x32xf32>, vector<1x16x32xf32>, vector<1x16x32xf32> -> vector<4x16x32xf32>
    %187 = arith.truncf %186 : vector<4x16x32xf32> to vector<4x16x32xbf16>
    "tpu.trace_start"() <{level = 10 : i32, message = "hqc,hkc->hqk"}> : () -> ()
    %cst_63 = arith.constant dense<0.000000e+00> : vector<4x8x16xf32>
    %188 = tpu.matmul %167, %177, %cst_63 {dimension_numbers = #tpu.dot_dimension_numbers<[2], [2], [1], [1], [0, 0, 0, 1, 1, 1], [0], [0]>} : vector<4x8x32xbf16>, vector<4x16x32xbf16>, vector<4x8x16xf32> -> vector<4x8x16xf32>
    "tpu.trace_stop"() : () -> ()
    %189 = vector.shape_cast %1 : vector<1x16xf32> to vector<1x1x16xf32>
    %190 = vector.broadcast %189 : vector<1x1x16xf32> to vector<4x8x16xf32>
    %191 = arith.addf %188, %190 : vector<4x8x16xf32>
    %cst_64 = arith.constant dense<0xFF800000> : vector<4x8xf32>
    %192 = vector.multi_reduction <maximumf>, %191, %cst_64 [2] : vector<4x8x16xf32> to vector<4x8xf32>
    %193 = vector.shape_cast %192 : vector<4x8xf32> to vector<4x8x1xf32>
    %194 = vector.broadcast %193 : vector<4x8x1xf32> to vector<4x8x16xf32>
    %195 = arith.subf %191, %194 : vector<4x8x16xf32>
    %196 = math.exp %195 : vector<4x8x16xf32>
    %cst_65 = arith.constant dense<0.000000e+00> : vector<4x8xf32>
    %197 = vector.multi_reduction <add>, %196, %cst_65 [2] : vector<4x8x16xf32> to vector<4x8xf32>
    %198 = vector.shape_cast %197 : vector<4x8xf32> to vector<4x8x1xf32>
    %199 = tpu.reciprocal %198 {approx = true} : vector<4x8x1xf32> -> vector<4x8x1xf32>
    %200 = vector.broadcast %199 : vector<4x8x1xf32> to vector<4x8x16xf32>
    %201 = arith.mulf %196, %200 : vector<4x8x16xf32>
    %202 = arith.truncf %201 : vector<4x8x16xf32> to vector<4x8x16xbf16>
    "tpu.trace_start"() <{level = 10 : i32, message = "hqk,hkc->hqc"}> : () -> ()
    %cst_66 = arith.constant dense<0.000000e+00> : vector<4x8x32xf32>
    %203 = tpu.matmul %202, %187, %cst_66 {dimension_numbers = #tpu.dot_dimension_numbers<[2], [1], [1], [2], [0, 0, 0, 1, 1, 2], [0], [0]>} : vector<4x8x16xbf16>, vector<4x16x32xbf16>, vector<4x8x32xf32> -> vector<4x8x32xf32>
    "tpu.trace_stop"() : () -> ()
    %204 = vector.extract_strided_slice %203 {offsets = [0, 0, 0], sizes = [1, 8, 32], strides = [1, 1, 1]} : vector<4x8x32xf32> to vector<1x8x32xf32>
    %205 = vector.shape_cast %204 : vector<1x8x32xf32> to vector<8x32xf32>
    %206 = vector.extract_strided_slice %203 {offsets = [1, 0, 0], sizes = [1, 8, 32], strides = [1, 1, 1]} : vector<4x8x32xf32> to vector<1x8x32xf32>
    %207 = vector.shape_cast %206 : vector<1x8x32xf32> to vector<8x32xf32>
    %208 = vector.extract_strided_slice %203 {offsets = [2, 0, 0], sizes = [1, 8, 32], strides = [1, 1, 1]} : vector<4x8x32xf32> to vector<1x8x32xf32>
    %209 = vector.shape_cast %208 : vector<1x8x32xf32> to vector<8x32xf32>
    %210 = vector.extract_strided_slice %203 {offsets = [3, 0, 0], sizes = [1, 8, 32], strides = [1, 1, 1]} : vector<4x8x32xf32> to vector<1x8x32xf32>
    %211 = vector.shape_cast %210 : vector<1x8x32xf32> to vector<8x32xf32>
    %212 = tpu.concatenate %205, %207, %209, %211 in 1 : vector<8x32xf32>, vector<8x32xf32>, vector<8x32xf32>, vector<8x32xf32> -> vector<8x128xf32>
    %213 = arith.truncf %212 : vector<8x128xf32> to vector<8x128xbf16>
    %c0_67 = arith.constant 0 : index
    %c0_68 = arith.constant 0 : index
    %c0_69 = arith.constant 0 : index
    %214 = vector.load %arg13[%c0_67, %c0_68, %c0_69] : memref<2x128x128xbf16, #tpu.memory_space<vmem>>, vector<1x128x128xbf16>
    %215 = vector.shape_cast %214 : vector<1x128x128xbf16> to vector<128x128xbf16>
    %cst_70 = arith.constant dense<0.000000e+00> : vector<8x128xf32>
    %216 = tpu.matmul %213, %215, %cst_70 {dimension_numbers = #tpu.dot_dimension_numbers<[1], [0], [0], [1], [0, 0, 1, 1], [], []>} : vector<8x128xbf16>, vector<128x128xbf16>, vector<8x128xf32> -> vector<8x128xf32>
    %217 = arith.addf %110, %216 : vector<8x128xf32>
    %c0_71 = arith.constant 0 : index
    %c0_72 = arith.constant 0 : index
    %c0_73 = arith.constant 0 : index
    %218 = vector.load %arg14[%c0_71, %c0_72, %c0_73] : memref<2x1x128xf32, #tpu.memory_space<vmem>>, vector<1x1x128xf32>
    %219 = vector.shape_cast %218 : vector<1x1x128xf32> to vector<1x128xf32>
    %220 = vector.broadcast %219 : vector<1x128xf32> to vector<8x128xf32>
    %221 = arith.addf %217, %220 : vector<8x128xf32>
    %222 = vector.extract_strided_slice %4 {offsets = [0, 2, 0, 0], sizes = [1, 1, 1, 128], strides = [1, 1, 1, 1]} : vector<2x3x1x128xf32> to vector<1x1x1x128xf32>
    %223 = vector.shape_cast %222 : vector<1x1x1x128xf32> to vector<1x128xf32>
    %224 = vector.extract_strided_slice %5 {offsets = [0, 2, 0, 0], sizes = [1, 1, 1, 128], strides = [1, 1, 1, 1]} : vector<2x3x1x128xf32> to vector<1x1x1x128xf32>
    %225 = vector.shape_cast %224 : vector<1x1x1x128xf32> to vector<1x128xf32>
    %cst_74 = arith.constant dense<0.000000e+00> : vector<8xf32>
    %226 = vector.multi_reduction <add>, %221, %cst_74 [1] : vector<8x128xf32> to vector<8xf32>
    %227 = vector.shape_cast %226 : vector<8xf32> to vector<8x1xf32>
    %cst_75 = arith.constant 1.280000e+02 : f32
    %228 = vector.broadcast %cst_75 : f32 to vector<8x1xf32>
    %229 = arith.divf %227, %228 : vector<8x1xf32>
    %230 = vector.broadcast %229 : vector<8x1xf32> to vector<8x128xf32>
    %231 = arith.subf %221, %230 : vector<8x128xf32>
    %232 = arith.mulf %231, %231 : vector<8x128xf32>
    %cst_76 = arith.constant dense<0.000000e+00> : vector<8xf32>
    %233 = vector.multi_reduction <add>, %232, %cst_76 [1] : vector<8x128xf32> to vector<8xf32>
    %234 = vector.shape_cast %233 : vector<8xf32> to vector<8x1xf32>
    %cst_77 = arith.constant 0.00787401571 : f32
    %235 = vector.broadcast %cst_77 : f32 to vector<8x1xf32>
    %236 = arith.mulf %234, %235 : vector<8x1xf32>
    %237 = vector.broadcast %229 : vector<8x1xf32> to vector<8x128xf32>
    %238 = arith.subf %221, %237 : vector<8x128xf32>
    %239 = vector.broadcast %223 : vector<1x128xf32> to vector<8x128xf32>
    %240 = arith.mulf %239, %238 : vector<8x128xf32>
    %241 = math.sqrt %236 : vector<8x1xf32>
    %cst_78 = arith.constant 9.99999997E-7 : f32
    %242 = vector.broadcast %cst_78 : f32 to vector<8x1xf32>
    %243 = arith.addf %241, %242 : vector<8x1xf32>
    %244 = vector.broadcast %243 : vector<8x1xf32> to vector<8x128xf32>
    %245 = arith.divf %240, %244 : vector<8x128xf32>
    %246 = vector.broadcast %225 : vector<1x128xf32> to vector<8x128xf32>
    %247 = arith.addf %245, %246 : vector<8x128xf32>
    %248 = arith.truncf %247 : vector<8x128xf32> to vector<8x128xbf16>
    %c0_79 = arith.constant 0 : index
    %c0_80 = arith.constant 0 : index
    %c0_81 = arith.constant 0 : index
    %249 = vector.load %arg15[%c0_79, %c0_80, %c0_81] : memref<2x128x256xbf16, #tpu.memory_space<vmem>>, vector<1x128x256xbf16>
    %250 = vector.shape_cast %249 : vector<1x128x256xbf16> to vector<128x256xbf16>
    %cst_82 = arith.constant dense<0.000000e+00> : vector<8x256xf32>
    %251 = tpu.matmul %248, %250, %cst_82 {dimension_numbers = #tpu.dot_dimension_numbers<[1], [0], [0], [1], [0, 0, 1, 1], [], []>} : vector<8x128xbf16>, vector<128x256xbf16>, vector<8x256xf32> -> vector<8x256xf32>
    %c0_83 = arith.constant 0 : index
    %c0_84 = arith.constant 0 : index
    %c0_85 = arith.constant 0 : index
    %252 = vector.load %arg16[%c0_83, %c0_84, %c0_85] : memref<2x1x256xf32, #tpu.memory_space<vmem>>, vector<1x1x256xf32>
    %253 = vector.shape_cast %252 : vector<1x1x256xf32> to vector<1x256xf32>
    %254 = vector.broadcast %253 : vector<1x256xf32> to vector<8x256xf32>
    %255 = arith.addf %251, %254 : vector<8x256xf32>
    %cst_86 = arith.constant 0.000000e+00 : f32
    %256 = vector.broadcast %cst_86 : f32 to vector<8x256xf32>
    %257 = arith.maximumf %255, %256 : vector<8x256xf32>
    %258 = arith.truncf %257 : vector<8x256xf32> to vector<8x256xbf16>
    %c0_87 = arith.constant 0 : index
    %c0_88 = arith.constant 0 : index
    %c0_89 = arith.constant 0 : index
    %259 = vector.load %arg17[%c0_87, %c0_88, %c0_89] : memref<2x256x128xbf16, #tpu.memory_space<vmem>>, vector<1x256x128xbf16>
    %260 = vector.shape_cast %259 : vector<1x256x128xbf16> to vector<256x128xbf16>
    %cst_90 = arith.constant dense<0.000000e+00> : vector<8x128xf32>
    %261 = tpu.matmul %258, %260, %cst_90 {dimension_numbers = #tpu.dot_dimension_numbers<[1], [0], [0], [1], [0, 0, 1, 1], [], []>} : vector<8x256xbf16>, vector<256x128xbf16>, vector<8x128xf32> -> vector<8x128xf32>
    %262 = arith.addf %221, %261 : vector<8x128xf32>
    %c0_91 = arith.constant 0 : index
    %c0_92 = arith.constant 0 : index
    %c0_93 = arith.constant 0 : index
    %263 = vector.load %arg18[%c0_91, %c0_92, %c0_93] : memref<2x1x128xf32, #tpu.memory_space<vmem>>, vector<1x1x128xf32>
    %264 = vector.shape_cast %263 : vector<1x1x128xf32> to vector<1x128xf32>
    %265 = vector.broadcast %264 : vector<1x128xf32> to vector<8x128xf32>
    %266 = arith.addf %262, %265 : vector<8x128xf32>
    %267 = vector.extract_strided_slice %4 {offsets = [1, 0, 0, 0], sizes = [1, 1, 1, 128], strides = [1, 1, 1, 1]} : vector<2x3x1x128xf32> to vector<1x1x1x128xf32>
    %268 = vector.shape_cast %267 : vector<1x1x1x128xf32> to vector<1x128xf32>
    %269 = vector.extract_strided_slice %5 {offsets = [1, 0, 0, 0], sizes = [1, 1, 1, 128], strides = [1, 1, 1, 1]} : vector<2x3x1x128xf32> to vector<1x1x1x128xf32>
    %270 = vector.shape_cast %269 : vector<1x1x1x128xf32> to vector<1x128xf32>
    %cst_94 = arith.constant dense<0.000000e+00> : vector<8xf32>
    %271 = vector.multi_reduction <add>, %266, %cst_94 [1] : vector<8x128xf32> to vector<8xf32>
    %272 = vector.shape_cast %271 : vector<8xf32> to vector<8x1xf32>
    %cst_95 = arith.constant 1.280000e+02 : f32
    %273 = vector.broadcast %cst_95 : f32 to vector<8x1xf32>
    %274 = arith.divf %272, %273 : vector<8x1xf32>
    %275 = vector.broadcast %274 : vector<8x1xf32> to vector<8x128xf32>
    %276 = arith.subf %266, %275 : vector<8x128xf32>
    %277 = arith.mulf %276, %276 : vector<8x128xf32>
    %cst_96 = arith.constant dense<0.000000e+00> : vector<8xf32>
    %278 = vector.multi_reduction <add>, %277, %cst_96 [1] : vector<8x128xf32> to vector<8xf32>
    %279 = vector.shape_cast %278 : vector<8xf32> to vector<8x1xf32>
    %cst_97 = arith.constant 0.00787401571 : f32
    %280 = vector.broadcast %cst_97 : f32 to vector<8x1xf32>
    %281 = arith.mulf %279, %280 : vector<8x1xf32>
    %282 = vector.broadcast %274 : vector<8x1xf32> to vector<8x128xf32>
    %283 = arith.subf %266, %282 : vector<8x128xf32>
    %284 = vector.broadcast %268 : vector<1x128xf32> to vector<8x128xf32>
    %285 = arith.mulf %284, %283 : vector<8x128xf32>
    %286 = math.sqrt %281 : vector<8x1xf32>
    %cst_98 = arith.constant 9.99999997E-7 : f32
    %287 = vector.broadcast %cst_98 : f32 to vector<8x1xf32>
    %288 = arith.addf %286, %287 : vector<8x1xf32>
    %289 = vector.broadcast %288 : vector<8x1xf32> to vector<8x128xf32>
    %290 = arith.divf %285, %289 : vector<8x128xf32>
    %291 = vector.broadcast %270 : vector<1x128xf32> to vector<8x128xf32>
    %292 = arith.addf %290, %291 : vector<8x128xf32>
    %293 = arith.truncf %292 : vector<8x128xf32> to vector<8x128xbf16>
    %c1 = arith.constant 1 : index
    %c0_99 = arith.constant 0 : index
    %c0_100 = arith.constant 0 : index
    %294 = vector.load %arg5[%c1, %c0_99, %c0_100] : memref<2x128x384xbf16, #tpu.memory_space<vmem>>, vector<1x128x384xbf16>
    %295 = vector.shape_cast %294 : vector<1x128x384xbf16> to vector<128x384xbf16>
    %cst_101 = arith.constant dense<0.000000e+00> : vector<8x384xf32>
    %296 = tpu.matmul %293, %295, %cst_101 {dimension_numbers = #tpu.dot_dimension_numbers<[1], [0], [0], [1], [0, 0, 1, 1], [], []>} : vector<8x128xbf16>, vector<128x384xbf16>, vector<8x384xf32> -> vector<8x384xf32>
    %c1_102 = arith.constant 1 : index
    %c0_103 = arith.constant 0 : index
    %c0_104 = arith.constant 0 : index
    %297 = vector.load %arg6[%c1_102, %c0_103, %c0_104] : memref<2x1x384xf32, #tpu.memory_space<vmem>>, vector<1x1x384xf32>
    %298 = vector.shape_cast %297 : vector<1x1x384xf32> to vector<1x384xf32>
    %299 = vector.broadcast %298 : vector<1x384xf32> to vector<8x384xf32>
    %300 = arith.addf %296, %299 : vector<8x384xf32>
    %301 = vector.extract_strided_slice %300 {offsets = [0, 0], sizes = [8, 128], strides = [1, 1]} : vector<8x384xf32> to vector<8x128xf32>
    %cst_105 = arith.constant 0.176776692 : f32
    %302 = vector.broadcast %cst_105 : f32 to vector<8x128xf32>
    %303 = arith.mulf %301, %302 : vector<8x128xf32>
    %304 = vector.extract_strided_slice %300 {offsets = [0, 128], sizes = [8, 128], strides = [1, 1]} : vector<8x384xf32> to vector<8x128xf32>
    %305 = vector.extract_strided_slice %300 {offsets = [0, 256], sizes = [8, 128], strides = [1, 1]} : vector<8x384xf32> to vector<8x128xf32>
    %306 = vector.extract_strided_slice %303 {offsets = [0, 0], sizes = [8, 32], strides = [1, 1]} : vector<8x128xf32> to vector<8x32xf32>
    %307 = vector.extract_strided_slice %303 {offsets = [0, 32], sizes = [8, 32], strides = [1, 1]} : vector<8x128xf32> to vector<8x32xf32>
    %308 = vector.extract_strided_slice %303 {offsets = [0, 64], sizes = [8, 32], strides = [1, 1]} : vector<8x128xf32> to vector<8x32xf32>
    %309 = vector.extract_strided_slice %303 {offsets = [0, 96], sizes = [8, 32], strides = [1, 1]} : vector<8x128xf32> to vector<8x32xf32>
    %310 = vector.shape_cast %306 : vector<8x32xf32> to vector<1x8x32xf32>
    %311 = vector.shape_cast %307 : vector<8x32xf32> to vector<1x8x32xf32>
    %312 = vector.shape_cast %308 : vector<8x32xf32> to vector<1x8x32xf32>
    %313 = vector.shape_cast %309 : vector<8x32xf32> to vector<1x8x32xf32>
    %314 = tpu.concatenate %310, %311, %312, %313 in 0 : vector<1x8x32xf32>, vector<1x8x32xf32>, vector<1x8x32xf32>, vector<1x8x32xf32> -> vector<4x8x32xf32>
    %315 = arith.truncf %314 : vector<4x8x32xf32> to vector<4x8x32xbf16>
    %316 = vector.extract_strided_slice %304 {offsets = [0, 0], sizes = [8, 32], strides = [1, 1]} : vector<8x128xf32> to vector<8x32xf32>
    %317 = vector.extract_strided_slice %304 {offsets = [0, 32], sizes = [8, 32], strides = [1, 1]} : vector<8x128xf32> to vector<8x32xf32>
    %318 = vector.extract_strided_slice %304 {offsets = [0, 64], sizes = [8, 32], strides = [1, 1]} : vector<8x128xf32> to vector<8x32xf32>
    %319 = vector.extract_strided_slice %304 {offsets = [0, 96], sizes = [8, 32], strides = [1, 1]} : vector<8x128xf32> to vector<8x32xf32>
    %320 = vector.shape_cast %316 : vector<8x32xf32> to vector<1x8x32xf32>
    %321 = vector.shape_cast %317 : vector<8x32xf32> to vector<1x8x32xf32>
    %322 = vector.shape_cast %318 : vector<8x32xf32> to vector<1x8x32xf32>
    %323 = vector.shape_cast %319 : vector<8x32xf32> to vector<1x8x32xf32>
    %324 = tpu.concatenate %320, %321, %322, %323 in 0 : vector<1x8x32xf32>, vector<1x8x32xf32>, vector<1x8x32xf32>, vector<1x8x32xf32> -> vector<4x8x32xf32>
    %325 = arith.truncf %324 : vector<4x8x32xf32> to vector<4x8x32xbf16>
    %326 = vector.extract_strided_slice %305 {offsets = [0, 0], sizes = [8, 32], strides = [1, 1]} : vector<8x128xf32> to vector<8x32xf32>
    %327 = vector.extract_strided_slice %305 {offsets = [0, 32], sizes = [8, 32], strides = [1, 1]} : vector<8x128xf32> to vector<8x32xf32>
    %328 = vector.extract_strided_slice %305 {offsets = [0, 64], sizes = [8, 32], strides = [1, 1]} : vector<8x128xf32> to vector<8x32xf32>
    %329 = vector.extract_strided_slice %305 {offsets = [0, 96], sizes = [8, 32], strides = [1, 1]} : vector<8x128xf32> to vector<8x32xf32>
    %330 = vector.shape_cast %326 : vector<8x32xf32> to vector<1x8x32xf32>
    %331 = vector.shape_cast %327 : vector<8x32xf32> to vector<1x8x32xf32>
    %332 = vector.shape_cast %328 : vector<8x32xf32> to vector<1x8x32xf32>
    %333 = vector.shape_cast %329 : vector<8x32xf32> to vector<1x8x32xf32>
    %334 = tpu.concatenate %330, %331, %332, %333 in 0 : vector<1x8x32xf32>, vector<1x8x32xf32>, vector<1x8x32xf32>, vector<1x8x32xf32> -> vector<4x8x32xf32>
    %335 = arith.truncf %334 : vector<4x8x32xf32> to vector<4x8x32xbf16>
    "tpu.trace_start"() <{level = 10 : i32, message = "hqc,hkc->hqk"}> : () -> ()
    %cst_106 = arith.constant dense<0.000000e+00> : vector<4x8x8xf32>
    %336 = tpu.matmul %315, %325, %cst_106 {dimension_numbers = #tpu.dot_dimension_numbers<[2], [2], [1], [1], [0, 0, 0, 1, 1, 1], [0], [0]>} : vector<4x8x32xbf16>, vector<4x8x32xbf16>, vector<4x8x8xf32> -> vector<4x8x8xf32>
    "tpu.trace_stop"() : () -> ()
    %337 = vector.shape_cast %3 : vector<8x8xf32> to vector<1x8x8xf32>
    %338 = vector.broadcast %337 : vector<1x8x8xf32> to vector<4x8x8xf32>
    %339 = arith.addf %336, %338 : vector<4x8x8xf32>
    %cst_107 = arith.constant dense<0xFF800000> : vector<4x8xf32>
    %340 = vector.multi_reduction <maximumf>, %339, %cst_107 [2] : vector<4x8x8xf32> to vector<4x8xf32>
    %341 = vector.shape_cast %340 : vector<4x8xf32> to vector<4x8x1xf32>
    %342 = vector.broadcast %341 : vector<4x8x1xf32> to vector<4x8x8xf32>
    %343 = arith.subf %339, %342 : vector<4x8x8xf32>
    %344 = math.exp %343 : vector<4x8x8xf32>
    %cst_108 = arith.constant dense<0.000000e+00> : vector<4x8xf32>
    %345 = vector.multi_reduction <add>, %344, %cst_108 [2] : vector<4x8x8xf32> to vector<4x8xf32>
    %346 = vector.shape_cast %345 : vector<4x8xf32> to vector<4x8x1xf32>
    %347 = tpu.reciprocal %346 {approx = true} : vector<4x8x1xf32> -> vector<4x8x1xf32>
    %348 = vector.broadcast %347 : vector<4x8x1xf32> to vector<4x8x8xf32>
    %349 = arith.mulf %344, %348 : vector<4x8x8xf32>
    %350 = arith.truncf %349 : vector<4x8x8xf32> to vector<4x8x8xbf16>
    "tpu.trace_start"() <{level = 10 : i32, message = "hqk,hkc->hqc"}> : () -> ()
    %cst_109 = arith.constant dense<0.000000e+00> : vector<4x8x32xf32>
    %351 = tpu.matmul %350, %335, %cst_109 {dimension_numbers = #tpu.dot_dimension_numbers<[2], [1], [1], [2], [0, 0, 0, 1, 1, 2], [0], [0]>} : vector<4x8x8xbf16>, vector<4x8x32xbf16>, vector<4x8x32xf32> -> vector<4x8x32xf32>
    "tpu.trace_stop"() : () -> ()
    %352 = vector.extract_strided_slice %351 {offsets = [0, 0, 0], sizes = [1, 8, 32], strides = [1, 1, 1]} : vector<4x8x32xf32> to vector<1x8x32xf32>
    %353 = vector.shape_cast %352 : vector<1x8x32xf32> to vector<8x32xf32>
    %354 = vector.extract_strided_slice %351 {offsets = [1, 0, 0], sizes = [1, 8, 32], strides = [1, 1, 1]} : vector<4x8x32xf32> to vector<1x8x32xf32>
    %355 = vector.shape_cast %354 : vector<1x8x32xf32> to vector<8x32xf32>
    %356 = vector.extract_strided_slice %351 {offsets = [2, 0, 0], sizes = [1, 8, 32], strides = [1, 1, 1]} : vector<4x8x32xf32> to vector<1x8x32xf32>
    %357 = vector.shape_cast %356 : vector<1x8x32xf32> to vector<8x32xf32>
    %358 = vector.extract_strided_slice %351 {offsets = [3, 0, 0], sizes = [1, 8, 32], strides = [1, 1, 1]} : vector<4x8x32xf32> to vector<1x8x32xf32>
    %359 = vector.shape_cast %358 : vector<1x8x32xf32> to vector<8x32xf32>
    %360 = tpu.concatenate %353, %355, %357, %359 in 1 : vector<8x32xf32>, vector<8x32xf32>, vector<8x32xf32>, vector<8x32xf32> -> vector<8x128xf32>
    %361 = arith.truncf %360 : vector<8x128xf32> to vector<8x128xbf16>
    %c1_110 = arith.constant 1 : index
    %c0_111 = arith.constant 0 : index
    %c0_112 = arith.constant 0 : index
    %362 = vector.load %arg7[%c1_110, %c0_111, %c0_112] : memref<2x128x128xbf16, #tpu.memory_space<vmem>>, vector<1x128x128xbf16>
    %363 = vector.shape_cast %362 : vector<1x128x128xbf16> to vector<128x128xbf16>
    %cst_113 = arith.constant dense<0.000000e+00> : vector<8x128xf32>
    %364 = tpu.matmul %361, %363, %cst_113 {dimension_numbers = #tpu.dot_dimension_numbers<[1], [0], [0], [1], [0, 0, 1, 1], [], []>} : vector<8x128xbf16>, vector<128x128xbf16>, vector<8x128xf32> -> vector<8x128xf32>
    %365 = arith.addf %266, %364 : vector<8x128xf32>
    %c1_114 = arith.constant 1 : index
    %c0_115 = arith.constant 0 : index
    %c0_116 = arith.constant 0 : index
    %366 = vector.load %arg8[%c1_114, %c0_115, %c0_116] : memref<2x1x128xf32, #tpu.memory_space<vmem>>, vector<1x1x128xf32>
    %367 = vector.shape_cast %366 : vector<1x1x128xf32> to vector<1x128xf32>
    %368 = vector.broadcast %367 : vector<1x128xf32> to vector<8x128xf32>
    %369 = arith.addf %365, %368 : vector<8x128xf32>
    %370 = vector.extract_strided_slice %4 {offsets = [1, 1, 0, 0], sizes = [1, 1, 1, 128], strides = [1, 1, 1, 1]} : vector<2x3x1x128xf32> to vector<1x1x1x128xf32>
    %371 = vector.shape_cast %370 : vector<1x1x1x128xf32> to vector<1x128xf32>
    %372 = vector.extract_strided_slice %5 {offsets = [1, 1, 0, 0], sizes = [1, 1, 1, 128], strides = [1, 1, 1, 1]} : vector<2x3x1x128xf32> to vector<1x1x1x128xf32>
    %373 = vector.shape_cast %372 : vector<1x1x1x128xf32> to vector<1x128xf32>
    %cst_117 = arith.constant dense<0.000000e+00> : vector<8xf32>
    %374 = vector.multi_reduction <add>, %369, %cst_117 [1] : vector<8x128xf32> to vector<8xf32>
    %375 = vector.shape_cast %374 : vector<8xf32> to vector<8x1xf32>
    %cst_118 = arith.constant 1.280000e+02 : f32
    %376 = vector.broadcast %cst_118 : f32 to vector<8x1xf32>
    %377 = arith.divf %375, %376 : vector<8x1xf32>
    %378 = vector.broadcast %377 : vector<8x1xf32> to vector<8x128xf32>
    %379 = arith.subf %369, %378 : vector<8x128xf32>
    %380 = arith.mulf %379, %379 : vector<8x128xf32>
    %cst_119 = arith.constant dense<0.000000e+00> : vector<8xf32>
    %381 = vector.multi_reduction <add>, %380, %cst_119 [1] : vector<8x128xf32> to vector<8xf32>
    %382 = vector.shape_cast %381 : vector<8xf32> to vector<8x1xf32>
    %cst_120 = arith.constant 0.00787401571 : f32
    %383 = vector.broadcast %cst_120 : f32 to vector<8x1xf32>
    %384 = arith.mulf %382, %383 : vector<8x1xf32>
    %385 = vector.broadcast %377 : vector<8x1xf32> to vector<8x128xf32>
    %386 = arith.subf %369, %385 : vector<8x128xf32>
    %387 = vector.broadcast %371 : vector<1x128xf32> to vector<8x128xf32>
    %388 = arith.mulf %387, %386 : vector<8x128xf32>
    %389 = math.sqrt %384 : vector<8x1xf32>
    %cst_121 = arith.constant 9.99999997E-7 : f32
    %390 = vector.broadcast %cst_121 : f32 to vector<8x1xf32>
    %391 = arith.addf %389, %390 : vector<8x1xf32>
    %392 = vector.broadcast %391 : vector<8x1xf32> to vector<8x128xf32>
    %393 = arith.divf %388, %392 : vector<8x128xf32>
    %394 = vector.broadcast %373 : vector<1x128xf32> to vector<8x128xf32>
    %395 = arith.addf %393, %394 : vector<8x128xf32>
    %396 = arith.truncf %395 : vector<8x128xf32> to vector<8x128xbf16>
    %c1_122 = arith.constant 1 : index
    %c0_123 = arith.constant 0 : index
    %c0_124 = arith.constant 0 : index
    %397 = vector.load %arg9[%c1_122, %c0_123, %c0_124] : memref<2x128x128xbf16, #tpu.memory_space<vmem>>, vector<1x128x128xbf16>
    %398 = vector.shape_cast %397 : vector<1x128x128xbf16> to vector<128x128xbf16>
    %cst_125 = arith.constant dense<0.000000e+00> : vector<8x128xf32>
    %399 = tpu.matmul %396, %398, %cst_125 {dimension_numbers = #tpu.dot_dimension_numbers<[1], [0], [0], [1], [0, 0, 1, 1], [], []>} : vector<8x128xbf16>, vector<128x128xbf16>, vector<8x128xf32> -> vector<8x128xf32>
    %c1_126 = arith.constant 1 : index
    %c0_127 = arith.constant 0 : index
    %c0_128 = arith.constant 0 : index
    %400 = vector.load %arg10[%c1_126, %c0_127, %c0_128] : memref<2x1x128xf32, #tpu.memory_space<vmem>>, vector<1x1x128xf32>
    %401 = vector.shape_cast %400 : vector<1x1x128xf32> to vector<1x128xf32>
    %402 = vector.broadcast %401 : vector<1x128xf32> to vector<8x128xf32>
    %403 = arith.addf %399, %402 : vector<8x128xf32>
    %c1_129 = arith.constant 1 : index
    %c0_130 = arith.constant 0 : index
    %c0_131 = arith.constant 0 : index
    %c0_132 = arith.constant 0 : index
    %404 = vector.load %arg2[%c1_129, %c0_130, %c0_131, %c0_132] : memref<2x1x16x128xbf16, #tpu.memory_space<vmem>>, vector<1x1x16x128xbf16>
    %405 = vector.shape_cast %404 : vector<1x1x16x128xbf16> to vector<16x128xbf16>
    %c1_133 = arith.constant 1 : index
    %c0_134 = arith.constant 0 : index
    %c0_135 = arith.constant 0 : index
    %406 = vector.load %arg11[%c1_133, %c0_134, %c0_135] : memref<2x128x256xbf16, #tpu.memory_space<vmem>>, vector<1x128x256xbf16>
    %407 = vector.shape_cast %406 : vector<1x128x256xbf16> to vector<128x256xbf16>
    %cst_136 = arith.constant dense<0.000000e+00> : vector<16x256xf32>
    %408 = tpu.matmul %405, %407, %cst_136 {dimension_numbers = #tpu.dot_dimension_numbers<[1], [0], [0], [1], [0, 0, 1, 1], [], []>} : vector<16x128xbf16>, vector<128x256xbf16>, vector<16x256xf32> -> vector<16x256xf32>
    %c1_137 = arith.constant 1 : index
    %c0_138 = arith.constant 0 : index
    %c0_139 = arith.constant 0 : index
    %409 = vector.load %arg12[%c1_137, %c0_138, %c0_139] : memref<2x1x256xf32, #tpu.memory_space<vmem>>, vector<1x1x256xf32>
    %410 = vector.shape_cast %409 : vector<1x1x256xf32> to vector<1x256xf32>
    %411 = vector.broadcast %410 : vector<1x256xf32> to vector<16x256xf32>
    %412 = arith.addf %408, %411 : vector<16x256xf32>
    %cst_140 = arith.constant 0.176776692 : f32
    %413 = vector.broadcast %cst_140 : f32 to vector<8x128xf32>
    %414 = arith.mulf %403, %413 : vector<8x128xf32>
    %415 = vector.extract_strided_slice %412 {offsets = [0, 0], sizes = [16, 128], strides = [1, 1]} : vector<16x256xf32> to vector<16x128xf32>
    %416 = vector.extract_strided_slice %412 {offsets = [0, 128], sizes = [16, 128], strides = [1, 1]} : vector<16x256xf32> to vector<16x128xf32>
    %417 = vector.extract_strided_slice %414 {offsets = [0, 0], sizes = [8, 32], strides = [1, 1]} : vector<8x128xf32> to vector<8x32xf32>
    %418 = vector.extract_strided_slice %414 {offsets = [0, 32], sizes = [8, 32], strides = [1, 1]} : vector<8x128xf32> to vector<8x32xf32>
    %419 = vector.extract_strided_slice %414 {offsets = [0, 64], sizes = [8, 32], strides = [1, 1]} : vector<8x128xf32> to vector<8x32xf32>
    %420 = vector.extract_strided_slice %414 {offsets = [0, 96], sizes = [8, 32], strides = [1, 1]} : vector<8x128xf32> to vector<8x32xf32>
    %421 = vector.shape_cast %417 : vector<8x32xf32> to vector<1x8x32xf32>
    %422 = vector.shape_cast %418 : vector<8x32xf32> to vector<1x8x32xf32>
    %423 = vector.shape_cast %419 : vector<8x32xf32> to vector<1x8x32xf32>
    %424 = vector.shape_cast %420 : vector<8x32xf32> to vector<1x8x32xf32>
    %425 = tpu.concatenate %421, %422, %423, %424 in 0 : vector<1x8x32xf32>, vector<1x8x32xf32>, vector<1x8x32xf32>, vector<1x8x32xf32> -> vector<4x8x32xf32>
    %426 = arith.truncf %425 : vector<4x8x32xf32> to vector<4x8x32xbf16>
    %427 = vector.extract_strided_slice %415 {offsets = [0, 0], sizes = [16, 32], strides = [1, 1]} : vector<16x128xf32> to vector<16x32xf32>
    %428 = vector.extract_strided_slice %415 {offsets = [0, 32], sizes = [16, 32], strides = [1, 1]} : vector<16x128xf32> to vector<16x32xf32>
    %429 = vector.extract_strided_slice %415 {offsets = [0, 64], sizes = [16, 32], strides = [1, 1]} : vector<16x128xf32> to vector<16x32xf32>
    %430 = vector.extract_strided_slice %415 {offsets = [0, 96], sizes = [16, 32], strides = [1, 1]} : vector<16x128xf32> to vector<16x32xf32>
    %431 = vector.shape_cast %427 : vector<16x32xf32> to vector<1x16x32xf32>
    %432 = vector.shape_cast %428 : vector<16x32xf32> to vector<1x16x32xf32>
    %433 = vector.shape_cast %429 : vector<16x32xf32> to vector<1x16x32xf32>
    %434 = vector.shape_cast %430 : vector<16x32xf32> to vector<1x16x32xf32>
    %435 = tpu.concatenate %431, %432, %433, %434 in 0 : vector<1x16x32xf32>, vector<1x16x32xf32>, vector<1x16x32xf32>, vector<1x16x32xf32> -> vector<4x16x32xf32>
    %436 = arith.truncf %435 : vector<4x16x32xf32> to vector<4x16x32xbf16>
    %437 = vector.extract_strided_slice %416 {offsets = [0, 0], sizes = [16, 32], strides = [1, 1]} : vector<16x128xf32> to vector<16x32xf32>
    %438 = vector.extract_strided_slice %416 {offsets = [0, 32], sizes = [16, 32], strides = [1, 1]} : vector<16x128xf32> to vector<16x32xf32>
    %439 = vector.extract_strided_slice %416 {offsets = [0, 64], sizes = [16, 32], strides = [1, 1]} : vector<16x128xf32> to vector<16x32xf32>
    %440 = vector.extract_strided_slice %416 {offsets = [0, 96], sizes = [16, 32], strides = [1, 1]} : vector<16x128xf32> to vector<16x32xf32>
    %441 = vector.shape_cast %437 : vector<16x32xf32> to vector<1x16x32xf32>
    %442 = vector.shape_cast %438 : vector<16x32xf32> to vector<1x16x32xf32>
    %443 = vector.shape_cast %439 : vector<16x32xf32> to vector<1x16x32xf32>
    %444 = vector.shape_cast %440 : vector<16x32xf32> to vector<1x16x32xf32>
    %445 = tpu.concatenate %441, %442, %443, %444 in 0 : vector<1x16x32xf32>, vector<1x16x32xf32>, vector<1x16x32xf32>, vector<1x16x32xf32> -> vector<4x16x32xf32>
    %446 = arith.truncf %445 : vector<4x16x32xf32> to vector<4x16x32xbf16>
    "tpu.trace_start"() <{level = 10 : i32, message = "hqc,hkc->hqk"}> : () -> ()
    %cst_141 = arith.constant dense<0.000000e+00> : vector<4x8x16xf32>
    %447 = tpu.matmul %426, %436, %cst_141 {dimension_numbers = #tpu.dot_dimension_numbers<[2], [2], [1], [1], [0, 0, 0, 1, 1, 1], [0], [0]>} : vector<4x8x32xbf16>, vector<4x16x32xbf16>, vector<4x8x16xf32> -> vector<4x8x16xf32>
    "tpu.trace_stop"() : () -> ()
    %448 = vector.shape_cast %1 : vector<1x16xf32> to vector<1x1x16xf32>
    %449 = vector.broadcast %448 : vector<1x1x16xf32> to vector<4x8x16xf32>
    %450 = arith.addf %447, %449 : vector<4x8x16xf32>
    %cst_142 = arith.constant dense<0xFF800000> : vector<4x8xf32>
    %451 = vector.multi_reduction <maximumf>, %450, %cst_142 [2] : vector<4x8x16xf32> to vector<4x8xf32>
    %452 = vector.shape_cast %451 : vector<4x8xf32> to vector<4x8x1xf32>
    %453 = vector.broadcast %452 : vector<4x8x1xf32> to vector<4x8x16xf32>
    %454 = arith.subf %450, %453 : vector<4x8x16xf32>
    %455 = math.exp %454 : vector<4x8x16xf32>
    %cst_143 = arith.constant dense<0.000000e+00> : vector<4x8xf32>
    %456 = vector.multi_reduction <add>, %455, %cst_143 [2] : vector<4x8x16xf32> to vector<4x8xf32>
    %457 = vector.shape_cast %456 : vector<4x8xf32> to vector<4x8x1xf32>
    %458 = tpu.reciprocal %457 {approx = true} : vector<4x8x1xf32> -> vector<4x8x1xf32>
    %459 = vector.broadcast %458 : vector<4x8x1xf32> to vector<4x8x16xf32>
    %460 = arith.mulf %455, %459 : vector<4x8x16xf32>
    %461 = arith.truncf %460 : vector<4x8x16xf32> to vector<4x8x16xbf16>
    "tpu.trace_start"() <{level = 10 : i32, message = "hqk,hkc->hqc"}> : () -> ()
    %cst_144 = arith.constant dense<0.000000e+00> : vector<4x8x32xf32>
    %462 = tpu.matmul %461, %446, %cst_144 {dimension_numbers = #tpu.dot_dimension_numbers<[2], [1], [1], [2], [0, 0, 0, 1, 1, 2], [0], [0]>} : vector<4x8x16xbf16>, vector<4x16x32xbf16>, vector<4x8x32xf32> -> vector<4x8x32xf32>
    "tpu.trace_stop"() : () -> ()
    %463 = vector.extract_strided_slice %462 {offsets = [0, 0, 0], sizes = [1, 8, 32], strides = [1, 1, 1]} : vector<4x8x32xf32> to vector<1x8x32xf32>
    %464 = vector.shape_cast %463 : vector<1x8x32xf32> to vector<8x32xf32>
    %465 = vector.extract_strided_slice %462 {offsets = [1, 0, 0], sizes = [1, 8, 32], strides = [1, 1, 1]} : vector<4x8x32xf32> to vector<1x8x32xf32>
    %466 = vector.shape_cast %465 : vector<1x8x32xf32> to vector<8x32xf32>
    %467 = vector.extract_strided_slice %462 {offsets = [2, 0, 0], sizes = [1, 8, 32], strides = [1, 1, 1]} : vector<4x8x32xf32> to vector<1x8x32xf32>
    %468 = vector.shape_cast %467 : vector<1x8x32xf32> to vector<8x32xf32>
    %469 = vector.extract_strided_slice %462 {offsets = [3, 0, 0], sizes = [1, 8, 32], strides = [1, 1, 1]} : vector<4x8x32xf32> to vector<1x8x32xf32>
    %470 = vector.shape_cast %469 : vector<1x8x32xf32> to vector<8x32xf32>
    %471 = tpu.concatenate %464, %466, %468, %470 in 1 : vector<8x32xf32>, vector<8x32xf32>, vector<8x32xf32>, vector<8x32xf32> -> vector<8x128xf32>
    %472 = arith.truncf %471 : vector<8x128xf32> to vector<8x128xbf16>
    %c1_145 = arith.constant 1 : index
    %c0_146 = arith.constant 0 : index
    %c0_147 = arith.constant 0 : index
    %473 = vector.load %arg13[%c1_145, %c0_146, %c0_147] : memref<2x128x128xbf16, #tpu.memory_space<vmem>>, vector<1x128x128xbf16>
    %474 = vector.shape_cast %473 : vector<1x128x128xbf16> to vector<128x128xbf16>
    %cst_148 = arith.constant dense<0.000000e+00> : vector<8x128xf32>
    %475 = tpu.matmul %472, %474, %cst_148 {dimension_numbers = #tpu.dot_dimension_numbers<[1], [0], [0], [1], [0, 0, 1, 1], [], []>} : vector<8x128xbf16>, vector<128x128xbf16>, vector<8x128xf32> -> vector<8x128xf32>
    %476 = arith.addf %369, %475 : vector<8x128xf32>
    %c1_149 = arith.constant 1 : index
    %c0_150 = arith.constant 0 : index
    %c0_151 = arith.constant 0 : index
    %477 = vector.load %arg14[%c1_149, %c0_150, %c0_151] : memref<2x1x128xf32, #tpu.memory_space<vmem>>, vector<1x1x128xf32>
    %478 = vector.shape_cast %477 : vector<1x1x128xf32> to vector<1x128xf32>
    %479 = vector.broadcast %478 : vector<1x128xf32> to vector<8x128xf32>
    %480 = arith.addf %476, %479 : vector<8x128xf32>
    %481 = vector.extract_strided_slice %4 {offsets = [1, 2, 0, 0], sizes = [1, 1, 1, 128], strides = [1, 1, 1, 1]} : vector<2x3x1x128xf32> to vector<1x1x1x128xf32>
    %482 = vector.shape_cast %481 : vector<1x1x1x128xf32> to vector<1x128xf32>
    %483 = vector.extract_strided_slice %5 {offsets = [1, 2, 0, 0], sizes = [1, 1, 1, 128], strides = [1, 1, 1, 1]} : vector<2x3x1x128xf32> to vector<1x1x1x128xf32>
    %484 = vector.shape_cast %483 : vector<1x1x1x128xf32> to vector<1x128xf32>
    %cst_152 = arith.constant dense<0.000000e+00> : vector<8xf32>
    %485 = vector.multi_reduction <add>, %480, %cst_152 [1] : vector<8x128xf32> to vector<8xf32>
    %486 = vector.shape_cast %485 : vector<8xf32> to vector<8x1xf32>
    %cst_153 = arith.constant 1.280000e+02 : f32
    %487 = vector.broadcast %cst_153 : f32 to vector<8x1xf32>
    %488 = arith.divf %486, %487 : vector<8x1xf32>
    %489 = vector.broadcast %488 : vector<8x1xf32> to vector<8x128xf32>
    %490 = arith.subf %480, %489 : vector<8x128xf32>
    %491 = arith.mulf %490, %490 : vector<8x128xf32>
    %cst_154 = arith.constant dense<0.000000e+00> : vector<8xf32>
    %492 = vector.multi_reduction <add>, %491, %cst_154 [1] : vector<8x128xf32> to vector<8xf32>
    %493 = vector.shape_cast %492 : vector<8xf32> to vector<8x1xf32>
    %cst_155 = arith.constant 0.00787401571 : f32
    %494 = vector.broadcast %cst_155 : f32 to vector<8x1xf32>
    %495 = arith.mulf %493, %494 : vector<8x1xf32>
    %496 = vector.broadcast %488 : vector<8x1xf32> to vector<8x128xf32>
    %497 = arith.subf %480, %496 : vector<8x128xf32>
    %498 = vector.broadcast %482 : vector<1x128xf32> to vector<8x128xf32>
    %499 = arith.mulf %498, %497 : vector<8x128xf32>
    %500 = math.sqrt %495 : vector<8x1xf32>
    %cst_156 = arith.constant 9.99999997E-7 : f32
    %501 = vector.broadcast %cst_156 : f32 to vector<8x1xf32>
    %502 = arith.addf %500, %501 : vector<8x1xf32>
    %503 = vector.broadcast %502 : vector<8x1xf32> to vector<8x128xf32>
    %504 = arith.divf %499, %503 : vector<8x128xf32>
    %505 = vector.broadcast %484 : vector<1x128xf32> to vector<8x128xf32>
    %506 = arith.addf %504, %505 : vector<8x128xf32>
    %507 = arith.truncf %506 : vector<8x128xf32> to vector<8x128xbf16>
    %c1_157 = arith.constant 1 : index
    %c0_158 = arith.constant 0 : index
    %c0_159 = arith.constant 0 : index
    %508 = vector.load %arg15[%c1_157, %c0_158, %c0_159] : memref<2x128x256xbf16, #tpu.memory_space<vmem>>, vector<1x128x256xbf16>
    %509 = vector.shape_cast %508 : vector<1x128x256xbf16> to vector<128x256xbf16>
    %cst_160 = arith.constant dense<0.000000e+00> : vector<8x256xf32>
    %510 = tpu.matmul %507, %509, %cst_160 {dimension_numbers = #tpu.dot_dimension_numbers<[1], [0], [0], [1], [0, 0, 1, 1], [], []>} : vector<8x128xbf16>, vector<128x256xbf16>, vector<8x256xf32> -> vector<8x256xf32>
    %c1_161 = arith.constant 1 : index
    %c0_162 = arith.constant 0 : index
    %c0_163 = arith.constant 0 : index
    %511 = vector.load %arg16[%c1_161, %c0_162, %c0_163] : memref<2x1x256xf32, #tpu.memory_space<vmem>>, vector<1x1x256xf32>
    %512 = vector.shape_cast %511 : vector<1x1x256xf32> to vector<1x256xf32>
    %513 = vector.broadcast %512 : vector<1x256xf32> to vector<8x256xf32>
    %514 = arith.addf %510, %513 : vector<8x256xf32>
    %cst_164 = arith.constant 0.000000e+00 : f32
    %515 = vector.broadcast %cst_164 : f32 to vector<8x256xf32>
    %516 = arith.maximumf %514, %515 : vector<8x256xf32>
    %517 = arith.truncf %516 : vector<8x256xf32> to vector<8x256xbf16>
    %c1_165 = arith.constant 1 : index
    %c0_166 = arith.constant 0 : index
    %c0_167 = arith.constant 0 : index
    %518 = vector.load %arg17[%c1_165, %c0_166, %c0_167] : memref<2x256x128xbf16, #tpu.memory_space<vmem>>, vector<1x256x128xbf16>
    %519 = vector.shape_cast %518 : vector<1x256x128xbf16> to vector<256x128xbf16>
    %cst_168 = arith.constant dense<0.000000e+00> : vector<8x128xf32>
    %520 = tpu.matmul %517, %519, %cst_168 {dimension_numbers = #tpu.dot_dimension_numbers<[1], [0], [0], [1], [0, 0, 1, 1], [], []>} : vector<8x256xbf16>, vector<256x128xbf16>, vector<8x128xf32> -> vector<8x128xf32>
    %521 = arith.addf %480, %520 : vector<8x128xf32>
    %c1_169 = arith.constant 1 : index
    %c0_170 = arith.constant 0 : index
    %c0_171 = arith.constant 0 : index
    %522 = vector.load %arg18[%c1_169, %c0_170, %c0_171] : memref<2x1x128xf32, #tpu.memory_space<vmem>>, vector<1x1x128xf32>
    %523 = vector.shape_cast %522 : vector<1x1x128xf32> to vector<1x128xf32>
    %524 = vector.broadcast %523 : vector<1x128xf32> to vector<8x128xf32>
    %525 = arith.addf %521, %524 : vector<8x128xf32>
    %c0_172 = arith.constant 0 : index
    %c0_173 = arith.constant 0 : index
    %526 = vector.load %arg21[%c0_172, %c0_173] : memref<1x128xf32, #tpu.memory_space<vmem>>, vector<1x128xf32>
    %c0_174 = arith.constant 0 : index
    %c0_175 = arith.constant 0 : index
    %527 = vector.load %arg22[%c0_174, %c0_175] : memref<1x128xf32, #tpu.memory_space<vmem>>, vector<1x128xf32>
    %cst_176 = arith.constant dense<0.000000e+00> : vector<8xf32>
    %528 = vector.multi_reduction <add>, %525, %cst_176 [1] : vector<8x128xf32> to vector<8xf32>
    %529 = vector.shape_cast %528 : vector<8xf32> to vector<8x1xf32>
    %cst_177 = arith.constant 1.280000e+02 : f32
    %530 = vector.broadcast %cst_177 : f32 to vector<8x1xf32>
    %531 = arith.divf %529, %530 : vector<8x1xf32>
    %532 = vector.broadcast %531 : vector<8x1xf32> to vector<8x128xf32>
    %533 = arith.subf %525, %532 : vector<8x128xf32>
    %534 = arith.mulf %533, %533 : vector<8x128xf32>
    %cst_178 = arith.constant dense<0.000000e+00> : vector<8xf32>
    %535 = vector.multi_reduction <add>, %534, %cst_178 [1] : vector<8x128xf32> to vector<8xf32>
    %536 = vector.shape_cast %535 : vector<8xf32> to vector<8x1xf32>
    %cst_179 = arith.constant 0.00787401571 : f32
    %537 = vector.broadcast %cst_179 : f32 to vector<8x1xf32>
    %538 = arith.mulf %536, %537 : vector<8x1xf32>
    %539 = vector.broadcast %531 : vector<8x1xf32> to vector<8x128xf32>
    %540 = arith.subf %525, %539 : vector<8x128xf32>
    %541 = vector.broadcast %526 : vector<1x128xf32> to vector<8x128xf32>
    %542 = arith.mulf %541, %540 : vector<8x128xf32>
    %543 = math.sqrt %538 : vector<8x1xf32>
    %cst_180 = arith.constant 9.99999997E-7 : f32
    %544 = vector.broadcast %cst_180 : f32 to vector<8x1xf32>
    %545 = arith.addf %543, %544 : vector<8x1xf32>
    %546 = vector.broadcast %545 : vector<8x1xf32> to vector<8x128xf32>
    %547 = arith.divf %542, %546 : vector<8x128xf32>
    %548 = vector.broadcast %527 : vector<1x128xf32> to vector<8x128xf32>
    %549 = arith.addf %547, %548 : vector<8x128xf32>
    %c0_181 = arith.constant 0 : index
    %c0_182 = arith.constant 0 : index
    %c0_183 = arith.constant 0 : index
    %550 = vector.load %arg23[%c0_181, %c0_182, %c0_183] : memref<1x8x128xf32, #tpu.memory_space<vmem>>, vector<1x8x128xf32>
    %551 = vector.shape_cast %550 : vector<1x8x128xf32> to vector<8x128xf32>
    %552 = vector.shape_cast %549 : vector<8x128xf32> to vector<1x8x128xf32>
    tpu.vector_store %arg23[%c0_181, %c0_182, %c0_183], %552 {strides = array<i32>} : memref<1x8x128xf32, #tpu.memory_space<vmem>>, vector<1x8x128xf32>,
    return
  }
  func.func @transform_0(%arg0: i32) -> (i32, i32, i32) {
    %c0_i32 = arith.constant 0 : i32
    %c0_i32_0 = arith.constant 0 : i32
    %c0_i32_1 = arith.constant 0 : i32
    return %arg0, %c0_i32, %c0_i32_0 : i32, i32, i32
  }
  func.func @transform_1(%arg0: i32) -> (i32, i32, i32, i32) {
    %c0_i32 = arith.constant 0 : i32
    %c0_i32_0 = arith.constant 0 : i32
    %c0_i32_1 = arith.constant 0 : i32
    %c0_i32_2 = arith.constant 0 : i32
    return %c0_i32, %arg0, %c0_i32_0, %c0_i32_1 : i32, i32, i32, i32
  }
  func.func @transform_2(%arg0: i32) -> (i32, i32, i32) {
    %c0_i32 = arith.constant 0 : i32
    %c0_i32_0 = arith.constant 0 : i32
    %c0_i32_1 = arith.constant 0 : i32
    return %arg0, %c0_i32, %c0_i32_0 : i32, i32, i32
  }
  func.func @transform_3(%arg0: i32) -> (i32, i32, i32) {
    %c0_i32 = arith.constant 0 : i32
    %c0_i32_0 = arith.constant 0 : i32
    %c0_i32_1 = arith.constant 0 : i32
    return %arg0, %c0_i32, %c0_i32_0 : i32, i32, i32
  }
  func.func @transform_4(%arg0: i32) -> (i32, i32, i32) {
    %c0_i32 = arith.constant 0 : i32
    %c0_i32_0 = arith.constant 0 : i32
    %c0_i32_1 = arith.constant 0 : i32
    %c0_i32_2 = arith.constant 0 : i32
    return %c0_i32, %c0_i32_0, %c0_i32_1 : i32, i32, i32
  }
  func.func @transform_5(%arg0: i32) -> (i32, i32, i32) {
    %c0_i32 = arith.constant 0 : i32
    %c0_i32_0 = arith.constant 0 : i32
    %c0_i32_1 = arith.constant 0 : i32
    %c0_i32_2 = arith.constant 0 : i32
    return %c0_i32, %c0_i32_0, %c0_i32_1 : i32, i32, i32
  }
  func.func @transform_6(%arg0: i32) -> (i32, i32, i32) {
    %c0_i32 = arith.constant 0 : i32
    %c0_i32_0 = arith.constant 0 : i32
    %c0_i32_1 = arith.constant 0 : i32
    %c0_i32_2 = arith.constant 0 : i32
    return %c0_i32, %c0_i32_0, %c0_i32_1 : i32, i32, i32
  }
  func.func @transform_7(%arg0: i32) -> (i32, i32, i32) {
    %c0_i32 = arith.constant 0 : i32
    %c0_i32_0 = arith.constant 0 : i32
    %c0_i32_1 = arith.constant 0 : i32
    %c0_i32_2 = arith.constant 0 : i32
    return %c0_i32, %c0_i32_0, %c0_i32_1 : i32, i32, i32
  }
  func.func @transform_8(%arg0: i32) -> (i32, i32, i32) {
    %c0_i32 = arith.constant 0 : i32
    %c0_i32_0 = arith.constant 0 : i32
    %c0_i32_1 = arith.constant 0 : i32
    %c0_i32_2 = arith.constant 0 : i32
    return %c0_i32, %c0_i32_0, %c0_i32_1 : i32, i32, i32
  }
  func.func @transform_9(%arg0: i32) -> (i32, i32, i32) {
    %c0_i32 = arith.constant 0 : i32
    %c0_i32_0 = arith.constant 0 : i32
    %c0_i32_1 = arith.constant 0 : i32
    %c0_i32_2 = arith.constant 0 : i32
    return %c0_i32, %c0_i32_0, %c0_i32_1 : i32, i32, i32
  }
  func.func @transform_10(%arg0: i32) -> (i32, i32, i32) {
    %c0_i32 = arith.constant 0 : i32
    %c0_i32_0 = arith.constant 0 : i32
    %c0_i32_1 = arith.constant 0 : i32
    %c0_i32_2 = arith.constant 0 : i32
    return %c0_i32, %c0_i32_0, %c0_i32_1 : i32, i32, i32
  }
  func.func @transform_11(%arg0: i32) -> (i32, i32, i32) {
    %c0_i32 = arith.constant 0 : i32
    %c0_i32_0 = arith.constant 0 : i32
    %c0_i32_1 = arith.constant 0 : i32
    %c0_i32_2 = arith.constant 0 : i32
    return %c0_i32, %c0_i32_0, %c0_i32_1 : i32, i32, i32
  }
  func.func @transform_12(%arg0: i32) -> (i32, i32, i32) {
    %c0_i32 = arith.constant 0 : i32
    %c0_i32_0 = arith.constant 0 : i32
    %c0_i32_1 = arith.constant 0 : i32
    %c0_i32_2 = arith.constant 0 : i32
    return %c0_i32, %c0_i32_0, %c0_i32_1 : i32, i32, i32
  }
  func.func @transform_13(%arg0: i32) -> (i32, i32, i32) {
    %c0_i32 = arith.constant 0 : i32
    %c0_i32_0 = arith.constant 0 : i32
    %c0_i32_1 = arith.constant 0 : i32
    %c0_i32_2 = arith.constant 0 : i32
    return %c0_i32, %c0_i32_0, %c0_i32_1 : i32, i32, i32
  }
  func.func @transform_14(%arg0: i32) -> (i32, i32, i32) {
    %c0_i32 = arith.constant 0 : i32
    %c0_i32_0 = arith.constant 0 : i32
    %c0_i32_1 = arith.constant 0 : i32
    %c0_i32_2 = arith.constant 0 : i32
    return %c0_i32, %c0_i32_0, %c0_i32_1 : i32, i32, i32
  }
  func.func @transform_15(%arg0: i32) -> (i32, i32, i32) {
    %c0_i32 = arith.constant 0 : i32
    %c0_i32_0 = arith.constant 0 : i32
    %c0_i32_1 = arith.constant 0 : i32
    %c0_i32_2 = arith.constant 0 : i32
    return %c0_i32, %c0_i32_0, %c0_i32_1 : i32, i32, i32
  }
  func.func @transform_16(%arg0: i32) -> (i32, i32, i32) {
    %c0_i32 = arith.constant 0 : i32
    %c0_i32_0 = arith.constant 0 : i32
    %c0_i32_1 = arith.constant 0 : i32
    %c0_i32_2 = arith.constant 0 : i32
    return %c0_i32, %c0_i32_0, %c0_i32_1 : i32, i32, i32
  }
  func.func @transform_17(%arg0: i32) -> (i32, i32, i32) {
    %c0_i32 = arith.constant 0 : i32
    %c0_i32_0 = arith.constant 0 : i32
    %c0_i32_1 = arith.constant 0 : i32
    %c0_i32_2 = arith.constant 0 : i32
    return %c0_i32, %c0_i32_0, %c0_i32_1 : i32, i32, i32
  }
  func.func @transform_18(%arg0: i32) -> (i32, i32, i32, i32) {
    %c0_i32 = arith.constant 0 : i32
    %c0_i32_0 = arith.constant 0 : i32
    %c0_i32_1 = arith.constant 0 : i32
    %c0_i32_2 = arith.constant 0 : i32
    %c0_i32_3 = arith.constant 0 : i32
    return %c0_i32, %c0_i32_0, %c0_i32_1, %c0_i32_2 : i32, i32, i32, i32
  }
  func.func @transform_19(%arg0: i32) -> (i32, i32, i32, i32) {
    %c0_i32 = arith.constant 0 : i32
    %c0_i32_0 = arith.constant 0 : i32
    %c0_i32_1 = arith.constant 0 : i32
    %c0_i32_2 = arith.constant 0 : i32
    %c0_i32_3 = arith.constant 0 : i32
    return %c0_i32, %c0_i32_0, %c0_i32_1, %c0_i32_2 : i32, i32, i32, i32
  }
  func.func @transform_20(%arg0: i32) -> (i32, i32) {
    %c0_i32 = arith.constant 0 : i32
    %c0_i32_0 = arith.constant 0 : i32
    %c0_i32_1 = arith.constant 0 : i32
    return %c0_i32, %c0_i32_0 : i32, i32
  }
  func.func @transform_21(%arg0: i32) -> (i32, i32) {
    %c0_i32 = arith.constant 0 : i32
    %c0_i32_0 = arith.constant 0 : i32
    %c0_i32_1 = arith.constant 0 : i32
    return %c0_i32, %c0_i32_0 : i32, i32
  }
  func.func @transform_22(%arg0: i32) -> (i32, i32, i32) {
    %c0_i32 = arith.constant 0 : i32
    %c0_i32_0 = arith.constant 0 : i32
    %c0_i32_1 = arith.constant 0 : i32
    return %arg0, %c0_i32, %c0_i32_0 : i32, i32, i32
  }
}

</mosaic_0001>

<llo_original>
// kernel: decoder_forward.1
$region0: #{decoder_forward.1}
  #allocation0 [shape = 'u32[]', space=smem, size = 0x4, offset = 0x4, fixed_abs, tag = 'smem constant byte address 0x4 - core index']
  #allocation1 [shape = 'u32[144,128]{1,0:T(1,128)}', space=vmem, size = 0x12000, scoped, tag = 'internal scratch']
  %s0 = inlined_call_operand.vmem [shape: f32[2,8,128], index: 0, kind: input, shape index: {}]
  %s1 = inlined_call_operand.vmem [shape: bf16[2,2,16,128], index: 1, kind: input, shape index: {}]
  %s2 = inlined_call_operand.vmem [shape: f32[2,1,16], index: 2, kind: input, shape index: {}]
  %s3 = inlined_call_operand.vmem [shape: f32[2,8,8], index: 3, kind: input, shape index: {}]
  %s4 = inlined_call_operand.hbm [shape: bf16[2,128,384], index: 4, kind: input, shape index: {}]
  %s5 = inlined_call_operand.vmem [shape: f32[2,1,384], index: 5, kind: input, shape index: {}]
  %s6 = inlined_call_operand.vmem [shape: bf16[2,128,128], index: 6, kind: input, shape index: {}]
  %s7 = inlined_call_operand.hbm [shape: f32[2,1,128], index: 7, kind: input, shape index: {}]
  %s8 = inlined_call_operand.hbm [shape: bf16[2,128,128], index: 8, kind: input, shape index: {}]
  %s9 = inlined_call_operand.hbm [shape: f32[2,1,128], index: 9, kind: input, shape index: {}]
  %s10 = inlined_call_operand.hbm [shape: bf16[2,128,256], index: 10, kind: input, shape index: {}]
  %s11 = inlined_call_operand.vmem [shape: f32[2,1,256], index: 11, kind: input, shape index: {}]
  %s12 = inlined_call_operand.hbm [shape: bf16[2,128,128], index: 12, kind: input, shape index: {}]
  %s13 = inlined_call_operand.vmem [shape: f32[2,1,128], index: 13, kind: input, shape index: {}]
  %s14 = inlined_call_operand.hbm [shape: bf16[2,128,256], index: 14, kind: input, shape index: {}]
  %s15 = inlined_call_operand.vmem [shape: f32[2,1,256], index: 15, kind: input, shape index: {}]
  %s16 = inlined_call_operand.hbm [shape: bf16[2,256,128], index: 16, kind: input, shape index: {}]
  %s17 = inlined_call_operand.vmem [shape: f32[2,1,128], index: 17, kind: input, shape index: {}]
  %s18 = inlined_call_operand.vmem [shape: f32[2,3,1,128], index: 18, kind: input, shape index: {}]
  %s19 = inlined_call_operand.vmem [shape: f32[2,3,1,128], index: 19, kind: input, shape index: {}]
  %s20 = inlined_call_operand.vmem [shape: f32[1,128], index: 20, kind: input, shape index: {}]
  %s21 = inlined_call_operand.vmem [shape: f32[1,128], index: 21, kind: input, shape index: {}]
  %s22 = inlined_call_operand.hbm [shape: f32[2,8,128], index: 22, kind: output, shape index: {}]
  %s23 = sld [smem:[#allocation0]]
  $region194: #{decoder_forward.1} parent=0
    _
  %s25 = ssub.s32 1, %s23
  %s26 = scalar_select 0, %s25, %s23
  $region1: #{decoder_forward.1} parent=0
    #allocation2 [shape = 'u8[16384]{0}', space=vmem, size = 0x4000, scoped, tag = 'input window, operand 1']
    #allocation3 [shape = 'u8[196608]{0}', space=vmem, size = 0x30000, scoped, tag = 'input window, operand 4, single buffered']
    #allocation4 [shape = 's32[2]{0}', space=sflag, size = 0x8, scoped, tag = 'scoped memory for decoder_forward.1']
    #allocation5 [shape = 's32[2]{0}', space=sflag, size = 0x8, scoped, tag = 'scoped memory for decoder_forward.1']
    #allocation6 [shape = 'u8[1024]{0}', space=vmem, size = 0x400, scoped, tag = 'input window, operand 7, single buffered']
    #allocation7 [shape = 's32[1]{0}', space=sflag, size = 0x4, scoped, tag = 'scoped memory for decoder_forward.1']
    #allocation8 [shape = 'u8[65536]{0}', space=vmem, size = 0x10000, scoped, tag = 'input window, operand 8, single buffered']
    #allocation9 [shape = 'u8[1024]{0}', space=vmem, size = 0x400, scoped, tag = 'input window, operand 9, single buffered']
    #allocation10 [shape = 's32[1]{0}', space=sflag, size = 0x4, scoped, tag = 'scoped memory for decoder_forward.1']
    #allocation11 [shape = 'u8[131072]{0}', space=vmem, size = 0x20000, scoped, tag = 'input window, operand 10, single buffered']
    #allocation12 [shape = 'u8[65536]{0}', space=vmem, size = 0x10000, scoped, tag = 'input window, operand 12, single buffered']
    #allocation13 [shape = 's32[1]{0}', space=sflag, size = 0x4, scoped, tag = 'scoped memory for decoder_forward.1']
    #allocation14 [shape = 'u8[131072]{0}', space=vmem, size = 0x20000, scoped, tag = 'input window, operand 14, single buffered']
    #allocation15 [shape = 'u8[131072]{0}', space=vmem, size = 0x20000, scoped, tag = 'input window, operand 16, single buffered']
    #allocation16 [shape = 's32[1]{0}', space=sflag, size = 0x4, scoped, tag = 'scoped memory for decoder_forward.1']
    #allocation17 [shape = 'u8[8192]{0}', space=vmem, size = 0x2000, scoped, tag = 'output window, operand 0']
    %27 = vsyncpa [#allocation4], 0
    %28 = vsyncpa [#allocation7], 0
    %29 = vsyncpa [#allocation10], 0
    %30 = vsyncpa [#allocation13], 0
    %31 = vsyncpa [#allocation16], 0
    %32 = vsyncpa [#allocation5], 0
    %s33 = scalar_lea.sflag [#allocation5], 1
    %34 = vsyncpa %s33, 0
    loop: start=0, step=1, limit=4
    $region2: #{decoder_forward.1} parent=1 // loop_pre_header
      _
    $region3: #{decoder_forward.1} parent=1 // loop_header
      %s36 = sphi 0, %s40
      %p37 = scmp.ge.s32.totalorder %s36, 4
      %s46 = sphi 0, %s48
      %s49 = sphi 0, %s46
      %s50 = sphi 0, %s49
      %s66 = sphi 0, %s50
      %s72 = sphi 0, %s74
      %s75 = sphi 0, %s72
      %s76 = sphi 0, %s75
      %s92 = sphi 0, %s76
      %s98 = sphi 0, %s100
      %s101 = sphi 0, %s98
      %s102 = sphi 0, %s101
      %s118 = sphi 0, %s102
      %s124 = sphi 0, %s126
      %s127 = sphi 0, %s124
      %s128 = sphi 0, %s127
      %s144 = sphi 0, %s128
      %s148 = sphi 0, %s148
      %s150 = sphi 0, %s148
      %s151 = sphi 0, %s150
      %s165 = sphi 0, %s151
      %s169 = sphi 0, %s169
      %s171 = sphi 0, %s169
      %s172 = sphi 0, %s171
      %s186 = sphi 0, %s172
      %s190 = sphi 0, %s190
      %s192 = sphi 0, %s190
      %s193 = sphi 0, %s192
      %s207 = sphi 0, %s193
      %s211 = sphi 0, %s211
      %s213 = sphi 0, %s211
      %s214 = sphi 0, %s213
      %s228 = sphi 0, %s214
      %s232 = sphi 0, %s232
      %s234 = sphi 0, %s232
      %s235 = sphi 0, %s234
      %s249 = sphi 0, %s235
      %s253 = sphi 0, %s253
      %s255 = sphi 0, %s253
      %s256 = sphi 0, %s255
      %s270 = sphi 0, %s256
      %s274 = sphi 0, %s274
      %s276 = sphi 0, %s274
      %s277 = sphi 0, %s276
      %s291 = sphi 0, %s277
      %s295 = sphi 0, %s295
      %s297 = sphi 0, %s295
      %s298 = sphi 0, %s297
      %s312 = sphi 0, %s298
      %s316 = sphi 0, %s316
      %s318 = sphi 0, %s316
      %s319 = sphi 0, %s318
      %s333 = sphi 0, %s319
      %s337 = sphi 0, %s337
      %s339 = sphi 0, %s337
      %s340 = sphi 0, %s339
      %s354 = sphi 0, %s340
      %s358 = sphi 0, %s358
      %s360 = sphi 0, %s358
      %s361 = sphi 0, %s360
      %s375 = sphi 0, %s361
      %s379 = sphi 0, %s379
      %s381 = sphi 0, %s379
      %s382 = sphi 0, %s381
      %s396 = sphi 0, %s382
      %s400 = sphi 0, %s400
      %s402 = sphi 0, %s400
      %s403 = sphi 0, %s402
      %s417 = sphi 0, %s403
      %s421 = sphi 0, %s421
      %s423 = sphi 0, %s421
      %s424 = sphi 0, %s423
      %s438 = sphi 0, %s424
      %s442 = sphi 0, %s442
      %s444 = sphi 0, %s442
      %s445 = sphi 0, %s444
      %s459 = sphi 0, %s445
      %s463 = sphi 0, %s463
      %s465 = sphi 0, %s463
      %s466 = sphi 0, %s465
      %s480 = sphi 0, %s466
      %s484 = sphi 0, %s484
      %s486 = sphi 0, %s484
      %s487 = sphi 0, %s486
      %s501 = sphi 0, %s487
      %s505 = sphi 0, %s505
      %s507 = sphi 0, %s505
      %s508 = sphi 0, %s507
      %s522 = sphi 0, %s508
      %s528 = sphi 0, %s530
      %s531 = sphi 0, %s528
      %s532 = sphi 0, %s531
      %s548 = sphi 0, %s532
    $region4: #{decoder_forward.1} parent=1 // loop_header_branch
      %39 = sbr.rel (%p37) target = $region8
    $region5: #{decoder_forward.1} parent=1 // loop_body
      %s41 = ssub.s32 %s36, 1
      %s42 = ssub.s32 %s36, 2
      %s43 = sadd.s32 %s36, 1
      %s44 = ssub.s32 %s36, %s43
      %p45 = scmp.eq.s32.totalorder %s44, 0
      %s47 = sadd.s32 %s46, 1
      %s48 = scalar_select %p45, %s46, %s47
      %p51 = pneg %p45
      %p52 = scmp.eq.s32.totalorder %s36, 1
      %p53 = por %p51, %p52
      %p54 = scmp.ne.s32.totalorder %s46, %s49
      %p55 = scmp.eq.s32.totalorder %s36, 0
      %p56 = por %p54, %p55
      %p57 = scmp.ne.s32.totalorder %s46, %s49
      %p58 = scmp.eq.s32.totalorder %s41, 1
      %p59 = por %p57, %p58
      %p60 = scmp.ne.s32.totalorder %s49, %s50
      %p61 = scmp.eq.s32.totalorder %s41, 0
      %p62 = por %p60, %p61
      %p63 = scmp.ne.s32.totalorder %s49, %s50
      %p64 = scmp.eq.s32.totalorder %s42, 1
      %p65 = por %p63, %p64
      %p67 = scmp.ne.s32.totalorder %s50, %s66
      %p68 = scmp.eq.s32.totalorder %s42, 0
      %p69 = por %p67, %p68
      %s70 = ssub.s32 %s36, %s43
      %p71 = scmp.eq.s32.totalorder %s70, 0
      %s73 = sadd.s32 %s72, 1
      %s74 = scalar_select %p71, %s72, %s73
      %p77 = pneg %p71
      %p78 = scmp.eq.s32.totalorder %s36, 1
      %p79 = por %p77, %p78
      %p80 = scmp.ne.s32.totalorder %s72, %s75
      %p81 = scmp.eq.s32.totalorder %s36, 0
      %p82 = por %p80, %p81
      %p83 = scmp.ne.s32.totalorder %s72, %s75
      %p84 = scmp.eq.s32.totalorder %s41, 1
      %p85 = por %p83, %p84
      %p86 = scmp.ne.s32.totalorder %s75, %s76
      %p87 = scmp.eq.s32.totalorder %s41, 0
      %p88 = por %p86, %p87
      %p89 = scmp.ne.s32.totalorder %s75, %s76
      %p90 = scmp.eq.s32.totalorder %s42, 1
      %p91 = por %p89, %p90
      %p93 = scmp.ne.s32.totalorder %s76, %s92
      %p94 = scmp.eq.s32.totalorder %s42, 0
      %p95 = por %p93, %p94
      %s96 = ssub.s32 %s36, %s43
      %p97 = scmp.eq.s32.totalorder %s96, 0
      %s99 = sadd.s32 %s98, 1
      %s100 = scalar_select %p97, %s98, %s99
      %p103 = pneg %p97
      %p104 = scmp.eq.s32.totalorder %s36, 1
      %p105 = por %p103, %p104
      %p106 = scmp.ne.s32.totalorder %s98, %s101
      %p107 = scmp.eq.s32.totalorder %s36, 0
      %p108 = por %p106, %p107
      %p109 = scmp.ne.s32.totalorder %s98, %s101
      %p110 = scmp.eq.s32.totalorder %s41, 1
      %p111 = por %p109, %p110
      %p112 = scmp.ne.s32.totalorder %s101, %s102
      %p113 = scmp.eq.s32.totalorder %s41, 0
      %p114 = por %p112, %p113
      %p115 = scmp.ne.s32.totalorder %s101, %s102
      %p116 = scmp.eq.s32.totalorder %s42, 1
      %p117 = por %p115, %p116
      %p119 = scmp.ne.s32.totalorder %s102, %s118
      %p120 = scmp.eq.s32.totalorder %s42, 0
      %p121 = por %p119, %p120
      %s122 = ssub.s32 %s36, %s43
      %p123 = scmp.eq.s32.totalorder %s122, 0
      %s125 = sadd.s32 %s124, 1
      %s126 = scalar_select %p123, %s124, %s125
      %p129 = pneg %p123
      %p130 = scmp.eq.s32.totalorder %s36, 1
      %p131 = por %p129, %p130
      %p132 = scmp.ne.s32.totalorder %s124, %s127
      %p133 = scmp.eq.s32.totalorder %s36, 0
      %p134 = por %p132, %p133
      %p135 = scmp.ne.s32.totalorder %s124, %s127
      %p136 = scmp.eq.s32.totalorder %s41, 1
      %p137 = por %p135, %p136
      %p138 = scmp.ne.s32.totalorder %s127, %s128
      %p139 = scmp.eq.s32.totalorder %s41, 0
      %p140 = por %p138, %p139
      %p141 = scmp.ne.s32.totalorder %s127, %s128
      %p142 = scmp.eq.s32.totalorder %s42, 1
      %p143 = por %p141, %p142
      %p145 = scmp.ne.s32.totalorder %s128, %s144
      %p146 = scmp.eq.s32.totalorder %s42, 0
      %p147 = por %p145, %p146
      %s149 = sadd.s32 %s148, 1
      %p152 = scmp.eq.s32.totalorder %s36, 1
      %p153 = scmp.ne.s32.totalorder %s148, %s150
      %p154 = scmp.eq.s32.totalorder %s36, 0
      %p155 = por %p153, %p154
      %p156 = scmp.ne.s32.totalorder %s148, %s150
      %p157 = scmp.eq.s32.totalorder %s41, 1
      %p158 = por %p156, %p157
      %p159 = scmp.ne.s32.totalorder %s150, %s151
      %p160 = scmp.eq.s32.totalorder %s41, 0
      %p161 = por %p159, %p160
      %p162 = scmp.ne.s32.totalorder %s150, %s151
      %p163 = scmp.eq.s32.totalorder %s42, 1
      %p164 = por %p162, %p163
      %p166 = scmp.ne.s32.totalorder %s151, %s165
      %p167 = scmp.eq.s32.totalorder %s42, 0
      %p168 = por %p166, %p167
      %s170 = sadd.s32 %s169, 1
      %p173 = scmp.eq.s32.totalorder %s36, 1
      %p174 = scmp.ne.s32.totalorder %s169, %s171
      %p175 = scmp.eq.s32.totalorder %s36, 0
      %p176 = por %p174, %p175
      %p177 = scmp.ne.s32.totalorder %s169, %s171
      %p178 = scmp.eq.s32.totalorder %s41, 1
      %p179 = por %p177, %p178
      %p180 = scmp.ne.s32.totalorder %s171, %s172
      %p181 = scmp.eq.s32.totalorder %s41, 0
      %p182 = por %p180, %p181
      %p183 = scmp.ne.s32.totalorder %s171, %s172
      %p184 = scmp.eq.s32.totalorder %s42, 1
      %p185 = por %p183, %p184
      %p187 = scmp.ne.s32.totalorder %s172, %s186
      %p188 = scmp.eq.s32.totalorder %s42, 0
      %p189 = por %p187, %p188
      %s191 = sadd.s32 %s190, 1
      %p194 = scmp.eq.s32.totalorder %s36, 1
      %p195 = scmp.ne.s32.totalorder %s190, %s192
      %p196 = scmp.eq.s32.totalorder %s36, 0
      %p197 = por %p195, %p196
      %p198 = scmp.ne.s32.totalorder %s190, %s192
      %p199 = scmp.eq.s32.totalorder %s41, 1
      %p200 = por %p198, %p199
      %p201 = scmp.ne.s32.totalorder %s192, %s193
      %p202 = scmp.eq.s32.totalorder %s41, 0
      %p203 = por %p201, %p202
      %p204 = scmp.ne.s32.totalorder %s192, %s193
      %p205 = scmp.eq.s32.totalorder %s42, 1
      %p206 = por %p204, %p205
      %p208 = scmp.ne.s32.totalorder %s193, %s207
      %p209 = scmp.eq.s32.totalorder %s42, 0
      %p210 = por %p208, %p209
      %s212 = sadd.s32 %s211, 1
      %p215 = scmp.eq.s32.totalorder %s36, 1
      %p216 = scmp.ne.s32.totalorder %s211, %s213
      %p217 = scmp.eq.s32.totalorder %s36, 0
      %p218 = por %p216, %p217
      %p219 = scmp.ne.s32.totalorder %s211, %s213
      %p220 = scmp.eq.s32.totalorder %s41, 1
      %p221 = por %p219, %p220
      %p222 = scmp.ne.s32.totalorder %s213, %s214
      %p223 = scmp.eq.s32.totalorder %s41, 0
      %p224 = por %p222, %p223
      %p225 = scmp.ne.s32.totalorder %s213, %s214
      %p226 = scmp.eq.s32.totalorder %s42, 1
      %p227 = por %p225, %p226
      %p229 = scmp.ne.s32.totalorder %s214, %s228
      %p230 = scmp.eq.s32.totalorder %s42, 0
      %p231 = por %p229, %p230
      %s233 = sadd.s32 %s232, 1
      %p236 = scmp.eq.s32.totalorder %s36, 1
      %p237 = scmp.ne.s32.totalorder %s232, %s234
      %p238 = scmp.eq.s32.totalorder %s36, 0
      %p239 = por %p237, %p238
      %p240 = scmp.ne.s32.totalorder %s232, %s234
      %p241 = scmp.eq.s32.totalorder %s41, 1
      %p242 = por %p240, %p241
      %p243 = scmp.ne.s32.totalorder %s234, %s235
      %p244 = scmp.eq.s32.totalorder %s41, 0
      %p245 = por %p243, %p244
      %p246 = scmp.ne.s32.totalorder %s234, %s235
      %p247 = scmp.eq.s32.totalorder %s42, 1
      %p248 = por %p246, %p247
      %p250 = scmp.ne.s32.totalorder %s235, %s249
      %p251 = scmp.eq.s32.totalorder %s42, 0
      %p252 = por %p250, %p251
      %s254 = sadd.s32 %s253, 1
      %p257 = scmp.eq.s32.totalorder %s36, 1
      %p258 = scmp.ne.s32.totalorder %s253, %s255
      %p259 = scmp.eq.s32.totalorder %s36, 0
      %p260 = por %p258, %p259
      %p261 = scmp.ne.s32.totalorder %s253, %s255
      %p262 = scmp.eq.s32.totalorder %s41, 1
      %p263 = por %p261, %p262
      %p264 = scmp.ne.s32.totalorder %s255, %s256
      %p265 = scmp.eq.s32.totalorder %s41, 0
      %p266 = por %p264, %p265
      %p267 = scmp.ne.s32.totalorder %s255, %s256
      %p268 = scmp.eq.s32.totalorder %s42, 1
      %p269 = por %p267, %p268
      %p271 = scmp.ne.s32.totalorder %s256, %s270
      %p272 = scmp.eq.s32.totalorder %s42, 0
      %p273 = por %p271, %p272
      %s275 = sadd.s32 %s274, 1
      %p278 = scmp.eq.s32.totalorder %s36, 1
      %p279 = scmp.ne.s32.totalorder %s274, %s276
      %p280 = scmp.eq.s32.totalorder %s36, 0
      %p281 = por %p279, %p280
      %p282 = scmp.ne.s32.totalorder %s274, %s276
      %p283 = scmp.eq.s32.totalorder %s41, 1
      %p284 = por %p282, %p283
      %p285 = scmp.ne.s32.totalorder %s276, %s277
      %p286 = scmp.eq.s32.totalorder %s41, 0
      %p287 = por %p285, %p286
      %p288 = scmp.ne.s32.totalorder %s276, %s277
      %p289 = scmp.eq.s32.totalorder %s42, 1
      %p290 = por %p288, %p289
      %p292 = scmp.ne.s32.totalorder %s277, %s291
      %p293 = scmp.eq.s32.totalorder %s42, 0
      %p294 = por %p292, %p293
      %s296 = sadd.s32 %s295, 1
      %p299 = scmp.eq.s32.totalorder %s36, 1
      %p300 = scmp.ne.s32.totalorder %s295, %s297
      %p301 = scmp.eq.s32.totalorder %s36, 0
      %p302 = por %p300, %p301
      %p303 = scmp.ne.s32.totalorder %s295, %s297
      %p304 = scmp.eq.s32.totalorder %s41, 1
      %p305 = por %p303, %p304
      %p306 = scmp.ne.s32.totalorder %s297, %s298
      %p307 = scmp.eq.s32.totalorder %s41, 0
      %p308 = por %p306, %p307
      %p309 = scmp.ne.s32.totalorder %s297, %s298
      %p310 = scmp.eq.s32.totalorder %s42, 1
      %p311 = por %p309, %p310
      %p313 = scmp.ne.s32.totalorder %s298, %s312
      %p314 = scmp.eq.s32.totalorder %s42, 0
      %p315 = por %p313, %p314
      %s317 = sadd.s32 %s316, 1
      %p320 = scmp.eq.s32.totalorder %s36, 1
      %p321 = scmp.ne.s32.totalorder %s316, %s318
      %p322 = scmp.eq.s32.totalorder %s36, 0
      %p323 = por %p321, %p322
      %p324 = scmp.ne.s32.totalorder %s316, %s318
      %p325 = scmp.eq.s32.totalorder %s41, 1
      %p326 = por %p324, %p325
      %p327 = scmp.ne.s32.totalorder %s318, %s319
      %p328 = scmp.eq.s32.totalorder %s41, 0
      %p329 = por %p327, %p328
      %p330 = scmp.ne.s32.totalorder %s318, %s319
      %p331 = scmp.eq.s32.totalorder %s42, 1
      %p332 = por %p330, %p331
      %p334 = scmp.ne.s32.totalorder %s319, %s333
      %p335 = scmp.eq.s32.totalorder %s42, 0
      %p336 = por %p334, %p335
      %s338 = sadd.s32 %s337, 1
      %p341 = scmp.eq.s32.totalorder %s36, 1
      %p342 = scmp.ne.s32.totalorder %s337, %s339
      %p343 = scmp.eq.s32.totalorder %s36, 0
      %p344 = por %p342, %p343
      %p345 = scmp.ne.s32.totalorder %s337, %s339
      %p346 = scmp.eq.s32.totalorder %s41, 1
      %p347 = por %p345, %p346
      %p348 = scmp.ne.s32.totalorder %s339, %s340
      %p349 = scmp.eq.s32.totalorder %s41, 0
      %p350 = por %p348, %p349
      %p351 = scmp.ne.s32.totalorder %s339, %s340
      %p352 = scmp.eq.s32.totalorder %s42, 1
      %p353 = por %p351, %p352
      %p355 = scmp.ne.s32.totalorder %s340, %s354
      %p356 = scmp.eq.s32.totalorder %s42, 0
      %p357 = por %p355, %p356
      %s359 = sadd.s32 %s358, 1
      %p362 = scmp.eq.s32.totalorder %s36, 1
      %p363 = scmp.ne.s32.totalorder %s358, %s360
      %p364 = scmp.eq.s32.totalorder %s36, 0
      %p365 = por %p363, %p364
      %p366 = scmp.ne.s32.totalorder %s358, %s360
      %p367 = scmp.eq.s32.totalorder %s41, 1
      %p368 = por %p366, %p367
      %p369 = scmp.ne.s32.totalorder %s360, %s361
      %p370 = scmp.eq.s32.totalorder %s41, 0
      %p371 = por %p369, %p370
      %p372 = scmp.ne.s32.totalorder %s360, %s361
      %p373 = scmp.eq.s32.totalorder %s42, 1
      %p374 = por %p372, %p373
      %p376 = scmp.ne.s32.totalorder %s361, %s375
      %p377 = scmp.eq.s32.totalorder %s42, 0
      %p378 = por %p376, %p377
      %s380 = sadd.s32 %s379, 1
      %p383 = scmp.eq.s32.totalorder %s36, 1
      %p384 = scmp.ne.s32.totalorder %s379, %s381
      %p385 = scmp.eq.s32.totalorder %s36, 0
      %p386 = por %p384, %p385
      %p387 = scmp.ne.s32.totalorder %s379, %s381
      %p388 = scmp.eq.s32.totalorder %s41, 1
      %p389 = por %p387, %p388
      %p390 = scmp.ne.s32.totalorder %s381, %s382
      %p391 = scmp.eq.s32.totalorder %s41, 0
      %p392 = por %p390, %p391
      %p393 = scmp.ne.s32.totalorder %s381, %s382
      %p394 = scmp.eq.s32.totalorder %s42, 1
      %p395 = por %p393, %p394
      %p397 = scmp.ne.s32.totalorder %s382, %s396
      %p398 = scmp.eq.s32.totalorder %s42, 0
      %p399 = por %p397, %p398
      %s401 = sadd.s32 %s400, 1
      %p404 = scmp.eq.s32.totalorder %s36, 1
      %p405 = scmp.ne.s32.totalorder %s400, %s402
      %p406 = scmp.eq.s32.totalorder %s36, 0
      %p407 = por %p405, %p406
      %p408 = scmp.ne.s32.totalorder %s400, %s402
      %p409 = scmp.eq.s32.totalorder %s41, 1
      %p410 = por %p408, %p409
      %p411 = scmp.ne.s32.totalorder %s402, %s403
      %p412 = scmp.eq.s32.totalorder %s41, 0
      %p413 = por %p411, %p412
      %p414 = scmp.ne.s32.totalorder %s402, %s403
      %p415 = scmp.eq.s32.totalorder %s42, 1
      %p416 = por %p414, %p415
      %p418 = scmp.ne.s32.totalorder %s403, %s417
      %p419 = scmp.eq.s32.totalorder %s42, 0
      %p420 = por %p418, %p419
      %s422 = sadd.s32 %s421, 1
      %p425 = scmp.eq.s32.totalorder %s36, 1
      %p426 = scmp.ne.s32.totalorder %s421, %s423
      %p427 = scmp.eq.s32.totalorder %s36, 0
      %p428 = por %p426, %p427
      %p429 = scmp.ne.s32.totalorder %s421, %s423
      %p430 = scmp.eq.s32.totalorder %s41, 1
      %p431 = por %p429, %p430
      %p432 = scmp.ne.s32.totalorder %s423, %s424
      %p433 = scmp.eq.s32.totalorder %s41, 0
      %p434 = por %p432, %p433
      %p435 = scmp.ne.s32.totalorder %s423, %s424
      %p436 = scmp.eq.s32.totalorder %s42, 1
      %p437 = por %p435, %p436
      %p439 = scmp.ne.s32.totalorder %s424, %s438
      %p440 = scmp.eq.s32.totalorder %s42, 0
      %p441 = por %p439, %p440
      %s443 = sadd.s32 %s442, 1
      %p446 = scmp.eq.s32.totalorder %s36, 1
      %p447 = scmp.ne.s32.totalorder %s442, %s444
      %p448 = scmp.eq.s32.totalorder %s36, 0
      %p449 = por %p447, %p448
      %p450 = scmp.ne.s32.totalorder %s442, %s444
      %p451 = scmp.eq.s32.totalorder %s41, 1
      %p452 = por %p450, %p451
      %p453 = scmp.ne.s32.totalorder %s444, %s445
      %p454 = scmp.eq.s32.totalorder %s41, 0
      %p455 = por %p453, %p454
      %p456 = scmp.ne.s32.totalorder %s444, %s445
      %p457 = scmp.eq.s32.totalorder %s42, 1
      %p458 = por %p456, %p457
      %p460 = scmp.ne.s32.totalorder %s445, %s459
      %p461 = scmp.eq.s32.totalorder %s42, 0
      %p462 = por %p460, %p461
      %s464 = sadd.s32 %s463, 1
      %p467 = scmp.eq.s32.totalorder %s36, 1
      %p468 = scmp.ne.s32.totalorder %s463, %s465
      %p469 = scmp.eq.s32.totalorder %s36, 0
      %p470 = por %p468, %p469
      %p471 = scmp.ne.s32.totalorder %s463, %s465
      %p472 = scmp.eq.s32.totalorder %s41, 1
      %p473 = por %p471, %p472
      %p474 = scmp.ne.s32.totalorder %s465, %s466
      %p475 = scmp.eq.s32.totalorder %s41, 0
      %p476 = por %p474, %p475
      %p477 = scmp.ne.s32.totalorder %s465, %s466
      %p478 = scmp.eq.s32.totalorder %s42, 1
      %p479 = por %p477, %p478
      %p481 = scmp.ne.s32.totalorder %s466, %s480
      %p482 = scmp.eq.s32.totalorder %s42, 0
      %p483 = por %p481, %p482
      %s485 = sadd.s32 %s484, 1
      %p488 = scmp.eq.s32.totalorder %s36, 1
      %p489 = scmp.ne.s32.totalorder %s484, %s486
      %p490 = scmp.eq.s32.totalorder %s36, 0
      %p491 = por %p489, %p490
      %p492 = scmp.ne.s32.totalorder %s484, %s486
      %p493 = scmp.eq.s32.totalorder %s41, 1
      %p494 = por %p492, %p493
      %p495 = scmp.ne.s32.totalorder %s486, %s487
      %p496 = scmp.eq.s32.totalorder %s41, 0
      %p497 = por %p495, %p496
      %p498 = scmp.ne.s32.totalorder %s486, %s487
      %p499 = scmp.eq.s32.totalorder %s42, 1
      %p500 = por %p498, %p499
      %p502 = scmp.ne.s32.totalorder %s487, %s501
      %p503 = scmp.eq.s32.totalorder %s42, 0
      %p504 = por %p502, %p503
      %s506 = sadd.s32 %s505, 1
      %p509 = scmp.eq.s32.totalorder %s36, 1
      %p510 = scmp.ne.s32.totalorder %s505, %s507
      %p511 = scmp.eq.s32.totalorder %s36, 0
      %p512 = por %p510, %p511
      %p513 = scmp.ne.s32.totalorder %s505, %s507
      %p514 = scmp.eq.s32.totalorder %s41, 1
      %p515 = por %p513, %p514
      %p516 = scmp.ne.s32.totalorder %s507, %s508
      %p517 = scmp.eq.s32.totalorder %s41, 0
      %p518 = por %p516, %p517
      %p519 = scmp.ne.s32.totalorder %s507, %s508
      %p520 = scmp.eq.s32.totalorder %s42, 1
      %p521 = por %p519, %p520
      %p523 = scmp.ne.s32.totalorder %s508, %s522
      %p524 = scmp.eq.s32.totalorder %s42, 0
      %p525 = por %p523, %p524
      %s526 = ssub.s32 %s36, %s43
      %p527 = scmp.eq.s32.totalorder %s526, 0
      %s529 = sadd.s32 %s528, 1
      %s530 = scalar_select %p527, %s528, %s529
      %p533 = pneg %p527
      %p534 = scmp.eq.s32.totalorder %s36, 1
      %p535 = por %p533, %p534
      %p536 = scmp.ne.s32.totalorder %s528, %s531
      %p537 = scmp.eq.s32.totalorder %s36, 0
      %p538 = por %p536, %p537
      %p539 = scmp.ne.s32.totalorder %s528, %s531
      %p540 = scmp.eq.s32.totalorder %s41, 1
      %p541 = por %p539, %p540
      %p542 = scmp.ne.s32.totalorder %s531, %s532
      %p543 = scmp.eq.s32.totalorder %s41, 0
      %p544 = por %p542, %p543
      %p545 = scmp.ne.s32.totalorder %s531, %s532
      %p546 = scmp.eq.s32.totalorder %s42, 1
      %p547 = por %p545, %p546
      %p549 = scmp.ne.s32.totalorder %s532, %s548
      %p550 = scmp.eq.s32.totalorder %s42, 0
      %p551 = por %p549, %p550
      %p552 = scmp.le.s32.totalorder 1, %s36
      %p553 = scmp.lt.s32.totalorder %s36, 3
      %p554 = pnand %p552, %p553
      %p555 = pneg %p554
      // Predicated region
      $region9: #{decoder_forward.1} parent=5 // pred_check
        _
      $region10: #{decoder_forward.1} parent=5 // pred_check_branch
        %557 = sbr.rel (%p554) target = $region12
      $region11: #{decoder_forward.1} parent=5 // pred_region
        %s558 = ssub.s32 %s36, 1
        // Predicated region
        $region13: #{decoder_forward.1} parent=11 // pred_check
          %p559 = pneg %p161
        $region14: #{decoder_forward.1} parent=11 // pred_check_branch
          %561 = sbr.rel (%p559) target = $region16
        $region15: #{decoder_forward.1} parent=11 // pred_region
          %s563 = ssub.s32 6144, 6144
          %564 = vsyncadd [#allocation4], %s563
          %s565 = sshll.u32 [#allocation3], 4
          %s566 = int_to_ptr.vmem [resolvable:$true] %s565
          %571 = dma.hbm_to_vmem [thread:$0]  %s4, 6144, %s566, [#allocation4], 192, 192, 12
        $region16: #{decoder_forward.1} parent=11 // pred_fallthru
          _
        // Predicated region
        $region17: #{decoder_forward.1} parent=11 // pred_check
          %p572 = pneg %p182
        $region18: #{decoder_forward.1} parent=11 // pred_check_branch
          %574 = sbr.rel (%p572) target = $region20
        $region19: #{decoder_forward.1} parent=11 // pred_region
          _
        $region20: #{decoder_forward.1} parent=11 // pred_fallthru
          _
        // Predicated region
        $region21: #{decoder_forward.1} parent=11 // pred_check
          %p575 = pneg %p203
        $region22: #{decoder_forward.1} parent=11 // pred_check_branch
          %577 = sbr.rel (%p575) target = $region24
        $region23: #{decoder_forward.1} parent=11 // pred_region
          _
        $region24: #{decoder_forward.1} parent=11 // pred_fallthru
          _
        // Predicated region
        $region25: #{decoder_forward.1} parent=11 // pred_check
          %p578 = pneg %p224
        $region26: #{decoder_forward.1} parent=11 // pred_check_branch
          %580 = sbr.rel (%p578) target = $region28
        $region27: #{decoder_forward.1} parent=11 // pred_region
          %s582 = ssub.s32 32, 32
          %583 = vsyncadd [#allocation7], %s582
          %s584 = sshll.u32 [#allocation6], 4
          %s585 = int_to_ptr.vmem [resolvable:$true] %s584
          %590 = dma.hbm_to_vmem [thread:$0]  %s7, 32, %s585, [#allocation7], 16, 16, 1
        $region28: #{decoder_forward.1} parent=11 // pred_fallthru
          _
        // Predicated region
        $region29: #{decoder_forward.1} parent=11 // pred_check
          %p591 = pneg %p245
        $region30: #{decoder_forward.1} parent=11 // pred_check_branch
          %593 = sbr.rel (%p591) target = $region32
        $region31: #{decoder_forward.1} parent=11 // pred_region
          %s595 = ssub.s32 2048, 2048
          %596 = vsyncadd [#allocation7], %s595
          %s597 = sshll.u32 [#allocation8], 4
          %s598 = int_to_ptr.vmem [resolvable:$true] %s597
          %603 = dma.hbm_to_vmem [thread:$0]  %s8, 2048, %s598, [#allocation7], 64, 64, 4
        $region32: #{decoder_forward.1} parent=11 // pred_fallthru
          _
        // Predicated region
        $region33: #{decoder_forward.1} parent=11 // pred_check
          %p604 = pneg %p266
        $region34: #{decoder_forward.1} parent=11 // pred_check_branch
          %606 = sbr.rel (%p604) target = $region36
        $region35: #{decoder_forward.1} parent=11 // pred_region
          %s608 = ssub.s32 32, 32
          %609 = vsyncadd [#allocation10], %s608
          %s610 = sshll.u32 [#allocation9], 4
          %s611 = int_to_ptr.vmem [resolvable:$true] %s610
          %616 = dma.hbm_to_vmem [thread:$0]  %s9, 32, %s611, [#allocation10], 16, 16, 1
        $region36: #{decoder_forward.1} parent=11 // pred_fallthru
          _
        // Predicated region
        $region37: #{decoder_forward.1} parent=11 // pred_check
          %p617 = pneg %p287
        $region38: #{decoder_forward.1} parent=11 // pred_check_branch
          %619 = sbr.rel (%p617) target = $region40
        $region39: #{decoder_forward.1} parent=11 // pred_region
          %s621 = ssub.s32 4096, 4096
          %622 = vsyncadd [#allocation10], %s621
          %s623 = sshll.u32 [#allocation11], 4
          %s624 = int_to_ptr.vmem [resolvable:$true] %s623
          %629 = dma.hbm_to_vmem [thread:$0]  %s10, 4096, %s624, [#allocation10], 128, 128, 8
        $region40: #{decoder_forward.1} parent=11 // pred_fallthru
          _
        // Predicated region
        $region41: #{decoder_forward.1} parent=11 // pred_check
          %p630 = pneg %p308
        $region42: #{decoder_forward.1} parent=11 // pred_check_branch
          %632 = sbr.rel (%p630) target = $region44
        $region43: #{decoder_forward.1} parent=11 // pred_region
          _
        $region44: #{decoder_forward.1} parent=11 // pred_fallthru
          _
        // Predicated region
        $region45: #{decoder_forward.1} parent=11 // pred_check
          %p633 = pneg %p329
        $region46: #{decoder_forward.1} parent=11 // pred_check_branch
          %635 = sbr.rel (%p633) target = $region48
        $region47: #{decoder_forward.1} parent=11 // pred_region
          %s637 = ssub.s32 2048, 2048
          %638 = vsyncadd [#allocation13], %s637
          %s639 = sshll.u32 [#allocation12], 4
          %s640 = int_to_ptr.vmem [resolvable:$true] %s639
          %645 = dma.hbm_to_vmem [thread:$0]  %s12, 2048, %s640, [#allocation13], 64, 64, 4
        $region48: #{decoder_forward.1} parent=11 // pred_fallthru
          _
        // Predicated region
        $region49: #{decoder_forward.1} parent=11 // pred_check
          %p646 = pneg %p350
        $region50: #{decoder_forward.1} parent=11 // pred_check_branch
          %648 = sbr.rel (%p646) target = $region52
        $region51: #{decoder_forward.1} parent=11 // pred_region
          _
        $region52: #{decoder_forward.1} parent=11 // pred_fallthru
          _
        // Predicated region
        $region53: #{decoder_forward.1} parent=11 // pred_check
          %p649 = pneg %p371
        $region54: #{decoder_forward.1} parent=11 // pred_check_branch
          %651 = sbr.rel (%p649) target = $region56
        $region55: #{decoder_forward.1} parent=11 // pred_region
          %s653 = ssub.s32 4096, 4096
          %654 = vsyncadd [#allocation13], %s653
          %s655 = sshll.u32 [#allocation14], 4
          %s656 = int_to_ptr.vmem [resolvable:$true] %s655
          %661 = dma.hbm_to_vmem [thread:$0]  %s14, 4096, %s656, [#allocation13], 128, 128, 8
        $region56: #{decoder_forward.1} parent=11 // pred_fallthru
          _
        // Predicated region
        $region57: #{decoder_forward.1} parent=11 // pred_check
          %p662 = pneg %p392
        $region58: #{decoder_forward.1} parent=11 // pred_check_branch
          %664 = sbr.rel (%p662) target = $region60
        $region59: #{decoder_forward.1} parent=11 // pred_region
          _
        $region60: #{decoder_forward.1} parent=11 // pred_fallthru
          _
        // Predicated region
        $region61: #{decoder_forward.1} parent=11 // pred_check
          %p665 = pneg %p413
        $region62: #{decoder_forward.1} parent=11 // pred_check_branch
          %667 = sbr.rel (%p665) target = $region64
        $region63: #{decoder_forward.1} parent=11 // pred_region
          %s669 = ssub.s32 4096, 4096
          %670 = vsyncadd [#allocation16], %s669
          %s671 = sshll.u32 [#allocation15], 4
          %s672 = int_to_ptr.vmem [resolvable:$true] %s671
          %677 = dma.hbm_to_vmem [thread:$0]  %s16, 4096, %s672, [#allocation16], 64, 64, 4
        $region64: #{decoder_forward.1} parent=11 // pred_fallthru
          _
        // Predicated region
        $region65: #{decoder_forward.1} parent=11 // pred_check
          %p678 = pneg %p434
        $region66: #{decoder_forward.1} parent=11 // pred_check_branch
          %680 = sbr.rel (%p678) target = $region68
        $region67: #{decoder_forward.1} parent=11 // pred_region
          _
        $region68: #{decoder_forward.1} parent=11 // pred_fallthru
          _
        // Predicated region
        $region69: #{decoder_forward.1} parent=11 // pred_check
          %p681 = pneg %p455
        $region70: #{decoder_forward.1} parent=11 // pred_check_branch
          %683 = sbr.rel (%p681) target = $region72
        $region71: #{decoder_forward.1} parent=11 // pred_region
          _
        $region72: #{decoder_forward.1} parent=11 // pred_fallthru
          _
        // Predicated region
        $region73: #{decoder_forward.1} parent=11 // pred_check
          %p684 = pneg %p476
        $region74: #{decoder_forward.1} parent=11 // pred_check_branch
          %686 = sbr.rel (%p684) target = $region76
        $region75: #{decoder_forward.1} parent=11 // pred_region
          _
        $region76: #{decoder_forward.1} parent=11 // pred_fallthru
          _
        // Predicated region
        $region77: #{decoder_forward.1} parent=11 // pred_check
          %p687 = pneg %p497
        $region78: #{decoder_forward.1} parent=11 // pred_check_branch
          %689 = sbr.rel (%p687) target = $region80
        $region79: #{decoder_forward.1} parent=11 // pred_region
          _
        $region80: #{decoder_forward.1} parent=11 // pred_fallthru
          _
        // Predicated region
        $region81: #{decoder_forward.1} parent=11 // pred_check
          %p690 = pneg %p518
        $region82: #{decoder_forward.1} parent=11 // pred_check_branch
          %692 = sbr.rel (%p690) target = $region84
        $region83: #{decoder_forward.1} parent=11 // pred_region
          _
        $region84: #{decoder_forward.1} parent=11 // pred_fallthru
          _
      $region12: #{decoder_forward.1} parent=5 // pred_fallthru
        _
      %p693 = scmp.lt.s32.totalorder %s36, 2
      // Predicated region
      $region85: #{decoder_forward.1} parent=5 // pred_check
        %p694 = pneg %p693
      $region86: #{decoder_forward.1} parent=5 // pred_check_branch
        %696 = sbr.rel (%p694) target = $region88
      $region87: #{decoder_forward.1} parent=5 // pred_region
        // Predicated region
        $region89: #{decoder_forward.1} parent=87 // pred_check
          %p697 = pneg %p56
        $region90: #{decoder_forward.1} parent=87 // pred_check_branch
          %699 = sbr.rel (%p697) target = $region92
        $region91: #{decoder_forward.1} parent=87 // pred_region
          %p700 = scmp.lt.s32.totalorder %s36, 1
          %s701 = scalar_select %p700, %s36, 1
          %s702 = smul.addr %s701, 8
          %s703 = scalar_lea.vmem %s0, %s702
        $region92: #{decoder_forward.1} parent=87 // pred_fallthru
          _
        // Predicated region
        $region93: #{decoder_forward.1} parent=87 // pred_check
          %p704 = pneg %p82
        $region94: #{decoder_forward.1} parent=87 // pred_check_branch
          %706 = sbr.rel (%p704) target = $region96
        $region95: #{decoder_forward.1} parent=87 // pred_region
          %s707 = sand.u32 %s72, 1
          %s708 = sand.u32 %s72, 1
          %s709 = smul.addr %s708, 16
          %s710 = scalar_lea.vmem [#allocation2], %s709
          %s711 = smul.addr %s36, 2
          %s712 = smul.addr %s711, 4
          %s713 = scalar_lea.vmem %s1, %s712
          // Predicated region
          $region97: #{decoder_forward.1} parent=95 // pred_check
            _
          $region98: #{decoder_forward.1} parent=95 // pred_check_branch
            %715 = sbr.rel (0) target = $region100
          $region99: #{decoder_forward.1} parent=95 // pred_region
            // Predicated region
            $region101: #{decoder_forward.1} parent=99 // pred_check
              _
            $region102: #{decoder_forward.1} parent=99 // pred_check_branch
              %717 = sbr.rel target = $region104
            $region103: #{decoder_forward.1} parent=99 // pred_region
              // Predicated region
              $region116: #{decoder_forward.1} parent=103 // pred_check
                _
              $region117: #{decoder_forward.1} parent=103 // pred_check_branch
                %738 = sbr.rel (0) target = $region119
              $region118: #{decoder_forward.1} parent=103 // pred_region
                loop: start=0, step=1, limit=1
                $region120: #{decoder_forward.1} parent=118 // loop_pre_header
                  _
                $region121: #{decoder_forward.1} parent=118 // loop_header
                  %s740 = sphi 0, %s744
                  %p741 = scmp.ge.s32.totalorder %s740, 1
                  %s745 = sphi %s713, %s713
                  %s746 = sphi %s710, %s710
                $region122: #{decoder_forward.1} parent=118 // loop_header_branch
                  %743 = sbr.rel (%p741) target = $region126
                $region123: #{decoder_forward.1} parent=118 // loop_body
                  _
                $region124: #{decoder_forward.1} parent=118 // loop_footer
                  %s744 = sadd.s32 1, %s740
                $region125: #{decoder_forward.1} parent=118 // loop_footer_branch
                  %739 = sbr.rel target = $region121
                $region126: #{decoder_forward.1} parent=118 // loop_exit
                  _
                loop: start=0, step=1, limit=1
                $region127: #{decoder_forward.1} parent=118 // loop_pre_header
                  _
                $region128: #{decoder_forward.1} parent=118 // loop_header
                  %s749 = sphi 0, %s753
                  %p750 = scmp.ge.s32.totalorder %s749, 1
                  %s754 = sphi %s713, %s713
                  %s755 = sphi %s710, %s710
                $region129: #{decoder_forward.1} parent=118 // loop_header_branch
                  %752 = sbr.rel (%p750) target = $region133
                $region130: #{decoder_forward.1} parent=118 // loop_body
                  %v756 = vld [vmem:[%s754] sm:$0xf]
                  %757 = vst [vmem:[%s755] sm:$0xf] %v756
                  %v758 = vld [vmem:[%s754 + $0x4] sm:$0xf]
                  %759 = vst [vmem:[%s755 + $0x4] sm:$0xf] %v758
                  %v760 = vld [vmem:[%s754 + $0x10] sm:$0xf]
                  %761 = vst [vmem:[%s755 + $0x8] sm:$0xf] %v760
                  %v762 = vld [vmem:[%s754 + $0x14] sm:$0xf]
                  %763 = vst [vmem:[%s755 + $0xc] sm:$0xf] %v762
                $region131: #{decoder_forward.1} parent=118 // loop_footer
                  %s753 = sadd.s32 1, %s749
                $region132: #{decoder_forward.1} parent=118 // loop_footer_branch
                  %748 = sbr.rel target = $region128
                $region133: #{decoder_forward.1} parent=118 // loop_exit
                  _
              $region119: #{decoder_forward.1} parent=103 // pred_fallthru
                _
            $region104: #{decoder_forward.1} parent=99 // pred_fallthru
              _
            // Predicated region
            $region105: #{decoder_forward.1} parent=99 // pred_check
              _
            $region106: #{decoder_forward.1} parent=99 // pred_check_branch
              %719 = sbr.rel (0) target = $region108
            $region107: #{decoder_forward.1} parent=99 // pred_region
              loop: start=0, step=1, limit=1
              $region109: #{decoder_forward.1} parent=107 // loop_pre_header
                _
              $region110: #{decoder_forward.1} parent=107 // loop_header
                %s722 = sphi 0, %s726
                %p723 = scmp.ge.s32.totalorder %s722, 1
                %s727 = sphi %s713, %s713
                %s728 = sphi %s710, %s710
              $region111: #{decoder_forward.1} parent=107 // loop_header_branch
                %725 = sbr.rel (%p723) target = $region115
              $region112: #{decoder_forward.1} parent=107 // loop_body
                %v729 = vld [vmem:[%s727] sm:$0xf]
                %730 = vst [vmem:[%s728] sm:$0xf] %v729
                %v731 = vld [vmem:[%s727 + $0x4] sm:$0xf]
                %732 = vst [vmem:[%s728 + $0x4] sm:$0xf] %v731
                %v733 = vld [vmem:[%s727 + $0x10] sm:$0xf]
                %734 = vst [vmem:[%s728 + $0x8] sm:$0xf] %v733
                %v735 = vld [vmem:[%s727 + $0x14] sm:$0xf]
                %736 = vst [vmem:[%s728 + $0xc] sm:$0xf] %v735
              $region113: #{decoder_forward.1} parent=107 // loop_footer
                %s726 = sadd.s32 1, %s722
              $region114: #{decoder_forward.1} parent=107 // loop_footer_branch
                %721 = sbr.rel target = $region110
              $region115: #{decoder_forward.1} parent=107 // loop_exit
                _
            $region108: #{decoder_forward.1} parent=99 // pred_fallthru
              _
          $region100: #{decoder_forward.1} parent=95 // pred_fallthru
            _
          %764 = vnop
        $region96: #{decoder_forward.1} parent=87 // pred_fallthru
          _
        // Predicated region
        $region134: #{decoder_forward.1} parent=87 // pred_check
          %p765 = pneg %p108
        $region135: #{decoder_forward.1} parent=87 // pred_check_branch
          %767 = sbr.rel (%p765) target = $region137
        $region136: #{decoder_forward.1} parent=87 // pred_region
          %p768 = scmp.lt.s32.totalorder %s36, 1
          %s769 = scalar_select %p768, %s36, 1
          %s770 = scalar_lea.vmem %s2, %s769
        $region137: #{decoder_forward.1} parent=87 // pred_fallthru
          _
        // Predicated region
        $region138: #{decoder_forward.1} parent=87 // pred_check
          %p771 = pneg %p134
        $region139: #{decoder_forward.1} parent=87 // pred_check_branch
          %773 = sbr.rel (%p771) target = $region141
        $region140: #{decoder_forward.1} parent=87 // pred_region
          %p774 = scmp.lt.s32.totalorder %s36, 1
          %s775 = scalar_select %p774, %s36, 1
          %s776 = smul.addr %s775, 8
          %s777 = scalar_lea.vmem %s3, %s776
        $region141: #{decoder_forward.1} parent=87 // pred_fallthru
          _
      $region88: #{decoder_forward.1} parent=5 // pred_fallthru
        _
      %p778 = scmp.le.s32.totalorder 1, %s36
      %p779 = scmp.lt.s32.totalorder %s36, 3
      %p780 = pnand %p778, %p779
      %p781 = pneg %p780
      // Predicated region
      $region142: #{decoder_forward.1} parent=5 // pred_check
        _
      $region143: #{decoder_forward.1} parent=5 // pred_check_branch
        %783 = sbr.rel (%p780) target = $region145
      $region144: #{decoder_forward.1} parent=5 // pred_region
        %s784 = ssub.s32 %s36, 1
        %s785 = sand.u32 %s75, 1
        %s786 = sand.u32 %s75, 1
        %s787 = smul.addr %s786, 16
        %s788 = scalar_lea.vmem [#allocation2], %s787
        // Predicated region
        $region146: #{decoder_forward.1} parent=144 // pred_check
          %p789 = pneg %p88
        $region147: #{decoder_forward.1} parent=144 // pred_check_branch
          %791 = sbr.rel (%p789) target = $region149
        $region148: #{decoder_forward.1} parent=144 // pred_region
          _
        $region149: #{decoder_forward.1} parent=144 // pred_fallthru
          _
        // Predicated region
        $region150: #{decoder_forward.1} parent=144 // pred_check
          %p792 = pneg %p161
        $region151: #{decoder_forward.1} parent=144 // pred_check_branch
          %794 = sbr.rel (%p792) target = $region153
        $region152: #{decoder_forward.1} parent=144 // pred_region
          %795 = dma.done [#allocation4], 6144
        $region153: #{decoder_forward.1} parent=144 // pred_fallthru
          _
        // Predicated region
        $region154: #{decoder_forward.1} parent=144 // pred_check
          %p796 = pneg %p224
        $region155: #{decoder_forward.1} parent=144 // pred_check_branch
          %798 = sbr.rel (%p796) target = $region157
        $region156: #{decoder_forward.1} parent=144 // pred_region
          %799 = dma.done [#allocation7], 32
        $region157: #{decoder_forward.1} parent=144 // pred_fallthru
          _
        // Predicated region
        $region158: #{decoder_forward.1} parent=144 // pred_check
          %p800 = pneg %p245
        $region159: #{decoder_forward.1} parent=144 // pred_check_branch
          %802 = sbr.rel (%p800) target = $region161
        $region160: #{decoder_forward.1} parent=144 // pred_region
          %803 = dma.done [#allocation7], 2048
        $region161: #{decoder_forward.1} parent=144 // pred_fallthru
          _
        // Predicated region
        $region162: #{decoder_forward.1} parent=144 // pred_check
          %p804 = pneg %p266
        $region163: #{decoder_forward.1} parent=144 // pred_check_branch
          %806 = sbr.rel (%p804) target = $region165
        $region164: #{decoder_forward.1} parent=144 // pred_region
          %807 = dma.done [#allocation10], 32
        $region165: #{decoder_forward.1} parent=144 // pred_fallthru
          _
        // Predicated region
        $region166: #{decoder_forward.1} parent=144 // pred_check
          %p808 = pneg %p287
        $region167: #{decoder_forward.1} parent=144 // pred_check_branch
          %810 = sbr.rel (%p808) target = $region169
        $region168: #{decoder_forward.1} parent=144 // pred_region
          %811 = dma.done [#allocation10], 4096
        $region169: #{decoder_forward.1} parent=144 // pred_fallthru
          _
        // Predicated region
        $region170: #{decoder_forward.1} parent=144 // pred_check
          %p812 = pneg %p329
        $region171: #{decoder_forward.1} parent=144 // pred_check_branch
          %814 = sbr.rel (%p812) target = $region173
        $region172: #{decoder_forward.1} parent=144 // pred_region
          %815 = dma.done [#allocation13], 2048
        $region173: #{decoder_forward.1} parent=144 // pred_fallthru
          _
        // Predicated region
        $region174: #{decoder_forward.1} parent=144 // pred_check
          %p816 = pneg %p371
        $region175: #{decoder_forward.1} parent=144 // pred_check_branch
          %818 = sbr.rel (%p816) target = $region177
        $region176: #{decoder_forward.1} parent=144 // pred_region
          %819 = dma.done [#allocation13], 4096
        $region177: #{decoder_forward.1} parent=144 // pred_fallthru
          _
        // Predicated region
        $region178: #{decoder_forward.1} parent=144 // pred_check
          %p820 = pneg %p413
        $region179: #{decoder_forward.1} parent=144 // pred_check_branch
          %822 = sbr.rel (%p820) target = $region181
        $region180: #{decoder_forward.1} parent=144 // pred_region
          %823 = dma.done [#allocation16], 4096
        $region181: #{decoder_forward.1} parent=144 // pred_fallthru
          _
        %p824 = scmp.lt.s32.totalorder %s41, 1
        %s825 = scalar_select %p824, %s41, 1
        %s826 = smul.addr %s825, 8
        %s827 = scalar_lea.vmem %s0, %s826
        %p828 = pneg %p62
        %p829 = pneg %p59
        %s830 = sand.u32 %s75, 1
        %s831 = sand.u32 %s75, 1
        %s832 = smul.addr %s831, 16
        %s833 = scalar_lea.vmem [#allocation2], %s832
        %p834 = pneg %p88
        %p835 = pneg %p85
        %p836 = scmp.lt.s32.totalorder %s41, 1
        %s837 = scalar_select %p836, %s41, 1
        %s838 = scalar_lea.vmem %s2, %s837
        %p839 = pneg %p114
        %p840 = pneg %p111
        %p841 = scmp.lt.s32.totalorder %s41, 1
        %s842 = scalar_select %p841, %s41, 1
        %s843 = smul.addr %s842, 8
        %s844 = scalar_lea.vmem %s3, %s843
        %p845 = pneg %p140
        %p846 = pneg %p137
        %p847 = pneg %p161
        %p848 = pneg %p158
        %p849 = pneg %p182
        %p850 = pneg %p179
        %p851 = pneg %p203
        %p852 = pneg %p200
        %p853 = pneg %p224
        %p854 = pneg %p221
        %p855 = pneg %p245
        %p856 = pneg %p242
        %p857 = pneg %p266
        %p858 = pneg %p263
        %p859 = pneg %p287
        %p860 = pneg %p284
        %p861 = pneg %p308
        %p862 = pneg %p305
        %p863 = pneg %p329
        %p864 = pneg %p326
        %p865 = pneg %p350
        %p866 = pneg %p347
        %p867 = pneg %p371
        %p868 = pneg %p368
        %p869 = pneg %p392
        %p870 = pneg %p389
        %p871 = pneg %p413
        %p872 = pneg %p410
        %p873 = pneg %p434
        %p874 = pneg %p431
        %p875 = pneg %p455
        %p876 = pneg %p452
        %p877 = pneg %p476
        %p878 = pneg %p473
        %p879 = pneg %p497
        %p880 = pneg %p494
        %p881 = pneg %p518
        %p882 = pneg %p515
        %p883 = pneg %p544
        %p884 = pneg %p541
        %s885 = sand.u32 %s531, 1
        %s886 = scalar_lea.sflag [#allocation5], %s885
        %s887 = sand.u32 %s531, 1
        %s888 = smul.addr %s887, 8
        %s889 = scalar_lea.vmem [#allocation17], %s888
        %p890 = scmp.lt.s32.totalorder %s41, 1
        %s891 = scalar_select %p890, %s41, 1
        %s892 = smul.addr %s891, 8
        %s893 = scalar_lea.vmem %s0, %s892
        %p894 = scmp.lt.s32.totalorder %s41, 1
        %s895 = scalar_select %p894, %s41, 1
        %s896 = scalar_lea.vmem %s2, %s895
        %p897 = scmp.lt.s32.totalorder %s41, 1
        %s898 = scalar_select %p897, %s41, 1
        %s899 = smul.addr %s898, 8
        %s900 = scalar_lea.vmem %s3, %s899
        %v902 = vld [vmem:[%s896] sm:$0x1]
        %v903 = vld [vmem:[%s900] sm:$0xff]
        %v904 = vld [vmem:[%s18] sm:$0x1]
        %v905 = vld [vmem:[%s18 + $0x1] sm:$0x1]
        %v906 = vld [vmem:[%s18 + $0x2] sm:$0x1]
        %v907 = vld [vmem:[%s18 + $0x3] sm:$0x1]
        %v908 = vld [vmem:[%s18 + $0x4] sm:$0x1]
        %v909 = vld [vmem:[%s18 + $0x5] sm:$0x1]
        %v910 = vld [vmem:[%s19] sm:$0x1]
        %v911 = vld [vmem:[%s19 + $0x1] sm:$0x1]
        %v912 = vld [vmem:[%s19 + $0x2] sm:$0x1]
        %v913 = vld [vmem:[%s19 + $0x3] sm:$0x1]
        %v914 = vld [vmem:[%s19 + $0x4] sm:$0x1]
        %v915 = vld [vmem:[%s19 + $0x5] sm:$0x1]
        %v916 = vld [vmem:[%s893] sm:$0xff]
        %917 = vadd.xlane.f32.xlu0 %v916
        %v918 = vpop.xlane.xlu0 %917
        %v919 = vrcp.pop 128.0
        %v920 = vmul.f32 %v918, %v919
        %v921 = vsub.f32 %v916, %v920
        %v922 = vmul.f32 %v921, %v921
        %923 = vadd.xlane.f32.xlu0 %v922
        %v924 = vpop.xlane.xlu0 %923
        %v925 = vmul.f32 %v924, 0.007874016
        %v927 = vlaneseq
        %v928 = vshrl.u32 %v927, 7
        %v929 = vsub.s32 0, %v928
        %v930 = vrot.slane %v904, %v929
        %v932 = vmul.f32 %v930, %v921
        %v933 = vrsqrt.pop %v925
        %v934 = vmul.f32 %v925, %v933
        %vm935 = vcmp.eq.f32.partialorder %v925, inf
        %v936 = vsel %vm935, %v925, %v934
        %vm937 = vcmp.eq.f32.partialorder %v925, 0.0
        %v938 = vand.u32 %v925, 2147483648
        %v939 = vsel %vm937, %v938, %v936
        %v940 = vadd.f32 %v939, 1e-06
        %v941 = vrcp.pop %v940
        %v942 = vmul.f32 %v932, %v941
        %v944 = vlaneseq
        %v945 = vshrl.u32 %v944, 7
        %v946 = vsub.s32 0, %v945
        %v947 = vrot.slane %v910, %v946
        %v949 = vadd.f32 %v942, %v947
        %v950 = vpack.c.bf16 %v949, %v949
        %v951 = vld [vmem:[#allocation3] sm:$0xff]
        %v952 = vld [vmem:[#allocation3 + $0x8] sm:$0xf]
        %v953 = vld [vmem:[#allocation3 + $0xc] sm:$0xff]
        %v954 = vld [vmem:[#allocation3 + $0x14] sm:$0xf]
        %v955 = vld [vmem:[#allocation3 + $0x18] sm:$0xff]
        %v956 = vld [vmem:[#allocation3 + $0x20] sm:$0xf]
        %v957 = vld [vmem:[#allocation3 + $0x24] sm:$0xff]
        %v958 = vld [vmem:[#allocation3 + $0x2c] sm:$0xf]
        %v959 = vld [vmem:[#allocation3 + $0x30] sm:$0xff]
        %v960 = vld [vmem:[#allocation3 + $0x38] sm:$0xf]
        %v961 = vld [vmem:[#allocation3 + $0x3c] sm:$0xff]
        %v962 = vld [vmem:[#allocation3 + $0x44] sm:$0xf]
        %v963 = vld [vmem:[#allocation3 + $0x48] sm:$0xff]
        %v964 = vld [vmem:[#allocation3 + $0x50] sm:$0xf]
        %v965 = vld [vmem:[#allocation3 + $0x54] sm:$0xff]
        %v966 = vld [vmem:[#allocation3 + $0x5c] sm:$0xf]
        %v967 = vld [vmem:[#allocation3 + $0x60] sm:$0xff]
        %v968 = vld [vmem:[#allocation3 + $0x68] sm:$0xf]
        %v969 = vld [vmem:[#allocation3 + $0x6c] sm:$0xff]
        %v970 = vld [vmem:[#allocation3 + $0x74] sm:$0xf]
        %v971 = vld [vmem:[#allocation3 + $0x78] sm:$0xff]
        %v972 = vld [vmem:[#allocation3 + $0x80] sm:$0xf]
        %v973 = vld [vmem:[#allocation3 + $0x84] sm:$0xff]
        %v974 = vld [vmem:[#allocation3 + $0x8c] sm:$0xf]
        %v975 = vld [vmem:[#allocation3 + $0x90] sm:$0xff]
        %v976 = vld [vmem:[#allocation3 + $0x98] sm:$0xf]
        %v977 = vld [vmem:[#allocation3 + $0x9c] sm:$0xff]
        %v978 = vld [vmem:[#allocation3 + $0xa4] sm:$0xf]
        %v979 = vld [vmem:[#allocation3 + $0xa8] sm:$0xff]
        %v980 = vld [vmem:[#allocation3 + $0xb0] sm:$0xf]
        %v981 = vld [vmem:[#allocation3 + $0xb4] sm:$0xff]
        %v982 = vld [vmem:[#allocation3 + $0xbc] sm:$0xf]
        %v983 = vld [vmem:[%s5] sm:$0x7]
        %v985 = vlaneseq
        %v986 = vshrl.u32 %v985, 7
        %v987 = vsub.s32 0, %v986
        %v988 = vrot.slane %v983, %v987
        %v989 = vlaneseq
        %v990 = vshrl.u32 %v989, 7
        %v991 = vsub.s32 1, %v990
        %v992 = vrot.slane %v983, %v991
        %v993 = vlaneseq
        %v994 = vshrl.u32 %v993, 7
        %v995 = vsub.s32 2, %v994
        %v996 = vrot.slane %v983, %v995
        %v1032 = vunpack.c.l.b16 %v951
        %v1033 = vunpack.c.h.b16 %v951
        %v1034 = vunpack.c.l.b16 %v952
        %v1035 = vunpack.c.l.b16 %v953
        %v1036 = vunpack.c.h.b16 %v953
        %v1037 = vunpack.c.l.b16 %v954
        %v1038 = vunpack.c.l.b16 %v955
        %v1039 = vunpack.c.h.b16 %v955
        %v1040 = vunpack.c.l.b16 %v956
        %v1041 = vunpack.c.l.b16 %v957
        %v1042 = vunpack.c.h.b16 %v957
        %v1043 = vunpack.c.l.b16 %v958
        %v1044 = vunpack.c.l.b16 %v959
        %v1045 = vunpack.c.h.b16 %v959
        %v1046 = vunpack.c.l.b16 %v960
        %v1047 = vunpack.c.l.b16 %v961
        %v1048 = vunpack.c.h.b16 %v961
        %v1049 = vunpack.c.l.b16 %v962
        %v1050 = vunpack.c.l.b16 %v963
        %v1051 = vunpack.c.h.b16 %v963
        %v1052 = vunpack.c.l.b16 %v964
        %v1053 = vunpack.c.l.b16 %v965
        %v1054 = vunpack.c.h.b16 %v965
        %v1055 = vunpack.c.l.b16 %v966
        %v1056 = vunpack.c.l.b16 %v967
        %v1057 = vunpack.c.h.b16 %v967
        %v1058 = vunpack.c.l.b16 %v968
        %v1059 = vunpack.c.l.b16 %v969
        %v1060 = vunpack.c.h.b16 %v969
        %v1061 = vunpack.c.l.b16 %v970
        %v1062 = vunpack.c.l.b16 %v971
        %v1063 = vunpack.c.h.b16 %v971
        %v1064 = vunpack.c.l.b16 %v972
        %v1065 = vunpack.c.l.b16 %v973
        %v1066 = vunpack.c.h.b16 %v973
        %v1067 = vunpack.c.l.b16 %v974
        %v1068 = vunpack.c.l.b16 %v975
        %v1069 = vunpack.c.h.b16 %v975
        %v1070 = vunpack.c.l.b16 %v976
        %v1071 = vunpack.c.l.b16 %v977
        %v1072 = vunpack.c.h.b16 %v977
        %v1073 = vunpack.c.l.b16 %v978
        %v1074 = vunpack.c.l.b16 %v979
        %v1075 = vunpack.c.h.b16 %v979
        %v1076 = vunpack.c.l.b16 %v980
        %v1077 = vunpack.c.l.b16 %v981
        %v1078 = vunpack.c.h.b16 %v981
        %v1079 = vunpack.c.l.b16 %v982
        %v1080 = vpack.c.b16 %v1035, %v1032
        %v1081 = vpack.c.b16 %v1036, %v1033
        %v1082 = vpack.c.b16 %v1037, %v1034
        %v1083 = vpack.c.b16 %v1041, %v1038
        %v1084 = vpack.c.b16 %v1042, %v1039
        %v1085 = vpack.c.b16 %v1043, %v1040
        %v1086 = vpack.c.b16 %v1047, %v1044
        %v1087 = vpack.c.b16 %v1048, %v1045
        %v1088 = vpack.c.b16 %v1049, %v1046
        %v1089 = vpack.c.b16 %v1053, %v1050
        %v1090 = vpack.c.b16 %v1054, %v1051
        %v1091 = vpack.c.b16 %v1055, %v1052
        %v1092 = vpack.c.b16 %v1059, %v1056
        %v1093 = vpack.c.b16 %v1060, %v1057
        %v1094 = vpack.c.b16 %v1061, %v1058
        %v1095 = vpack.c.b16 %v1065, %v1062
        %v1096 = vpack.c.b16 %v1066, %v1063
        %v1097 = vpack.c.b16 %v1067, %v1064
        %v1098 = vpack.c.b16 %v1071, %v1068
        %v1099 = vpack.c.b16 %v1072, %v1069
        %v1100 = vpack.c.b16 %v1073, %v1070
        %v1101 = vpack.c.b16 %v1077, %v1074
        %v1102 = vpack.c.b16 %v1078, %v1075
        %v1103 = vpack.c.b16 %v1079, %v1076
        %1128 = vmatprep.subr.bf16.mxu0 %v1081
        %1129 = vmatpush1.bf16.msra.mxu0 %v1080
        %1130 = vmatprep.subr.bf16.mxu0 %v1084
        %1131 = vmatpush1.bf16.msra.mxu0 %v1083
        %1132 = vmatprep.subr.bf16.mxu0 %v1087
        %1133 = vmatpush1.bf16.msra.mxu0 %v1086
        %1134 = vmatprep.subr.bf16.mxu0 %v1090
        %1135 = vmatpush1.bf16.msra.mxu0 %v1089
        %1136 = vmatprep.subr.bf16.mxu0 %v1093
        %1137 = vmatpush1.bf16.msra.mxu0 %v1092
        %1138 = vmatprep.subr.bf16.mxu0 %v1096
        %1139 = vmatpush1.bf16.msra.mxu0 %v1095
        %1140 = vmatprep.subr.bf16.mxu0 %v1099
        %1141 = vmatpush1.bf16.msra.mxu0 %v1098
        %1142 = vmatprep.subr.bf16.mxu0 %v1102
        %1143 = vmatpush1.bf16.msra.mxu0 %v1101
        %1144 = vmatprep.subr.bf16.mxu0 0
        %1145 = vmatpush1.bf16.msra.mxu0 0
        %1146 = vmatprep.subr.bf16.mxu0 0
        %1147 = vmatpush1.bf16.msra.mxu0 0
        %1148 = vmatprep.subr.bf16.mxu0 0
        %1149 = vmatpush1.bf16.msra.mxu0 0
        %1150 = vmatprep.subr.bf16.mxu0 0
        %1151 = vmatpush1.bf16.msra.mxu0 0
        %1152 = vmatprep.subr.bf16.mxu0 0
        %1153 = vmatpush1.bf16.msra.mxu0 0
        %1154 = vmatprep.subr.bf16.mxu0 0
        %1155 = vmatpush1.bf16.msra.mxu0 0
        %1156 = vmatprep.subr.bf16.mxu0 0
        %1157 = vmatpush1.bf16.msra.mxu0 0
        %1158 = vmatprep.subr.bf16.mxu0 0
        %1159 = vmatpush1.bf16.msra.mxu0 0
        %1160 = vmatprep.mubr.bf16.mxu0 0
        %1161 = vmatmul.mubr.bf16.gmra.mrb[0].mxu0 %v950
        %v1162 = vpop.f32.mrb[0].mxu0
        %v1163 = vadd.f32 %v988, %v1162
        %v1164 = vpop.f32.mrb[0].mxu0
        %v1165 = vadd.f32 %v992, %v1164
        %v1166 = vpop.f32.mrb[0].mxu0
        %v1167 = vpop.f32.mrb[0].mxu0
        %1168 = vdwg.mxu0
        %1169 = vmatprep.subr.bf16.mxu0 0
        %1170 = vmatpush1.bf16.msra.mxu0 %v1082
        %1171 = vmatprep.subr.bf16.mxu0 0
        %1172 = vmatpush1.bf16.msra.mxu0 %v1085
        %1173 = vmatprep.subr.bf16.mxu0 0
        %1174 = vmatpush1.bf16.msra.mxu0 %v1088
        %1175 = vmatprep.subr.bf16.mxu0 0
        %1176 = vmatpush1.bf16.msra.mxu0 %v1091
        %1177 = vmatprep.subr.bf16.mxu0 0
        %1178 = vmatpush1.bf16.msra.mxu0 %v1094
        %1179 = vmatprep.subr.bf16.mxu0 0
        %1180 = vmatpush1.bf16.msra.mxu0 %v1097
        %1181 = vmatprep.subr.bf16.mxu0 0
        %1182 = vmatpush1.bf16.msra.mxu0 %v1100
        %1183 = vmatprep.subr.bf16.mxu0 0
        %1184 = vmatpush1.bf16.msra.mxu0 %v1103
        %1185 = vmatprep.subr.bf16.mxu0 0
        %1186 = vmatpush1.bf16.msra.mxu0 0
        %1187 = vmatprep.subr.bf16.mxu0 0
        %1188 = vmatpush1.bf16.msra.mxu0 0
        %1189 = vmatprep.subr.bf16.mxu0 0
        %1190 = vmatpush1.bf16.msra.mxu0 0
        %1191 = vmatprep.subr.bf16.mxu0 0
        %1192 = vmatpush1.bf16.msra.mxu0 0
        %1193 = vmatprep.subr.bf16.mxu0 0
        %1194 = vmatpush1.bf16.msra.mxu0 0
        %1195 = vmatprep.subr.bf16.mxu0 0
        %1196 = vmatpush1.bf16.msra.mxu0 0
        %1197 = vmatprep.subr.bf16.mxu0 0
        %1198 = vmatpush1.bf16.msra.mxu0 0
        %1199 = vmatprep.subr.bf16.mxu0 0
        %1200 = vmatpush1.bf16.msra.mxu0 0
        %1201 = vmatprep.mubr.bf16.mxu0 0
        %1202 = vmatmul.mubr.bf16.gmra.mrb[0].mxu0 %v950
        %v1203 = vpop.f32.mrb[0].mxu0
        %v1204 = vadd.f32 %v996, %v1203
        %v1205 = vpop.f32.mrb[0].mxu0
        %v1206 = vpop.f32.mrb[0].mxu0
        %v1207 = vpop.f32.mrb[0].mxu0
        %1208 = vdwg.mxu0
        %v1209 = vmul.f32 %v1163, 0.17677669
        %1211 = vrot.lane.b32.xlu0 %v1209, 96
        %v1212 = vpop.permute.xlu0 %1211
        %1214 = vrot.lane.b32.xlu0 %v1209, 64
        %v1215 = vpop.permute.xlu0 %1214
        %1217 = vrot.lane.b32.xlu0 %v1209, 32
        %v1218 = vpop.permute.xlu0 %1217
        %v1220 = vpack.c.bf16 %v1209, %v1209
        %v1221 = vpack.c.bf16 %v1212, %v1212
        %v1222 = vpack.c.bf16 %v1215, %v1215
        %v1223 = vpack.c.bf16 %v1218, %v1218
        %1225 = vrot.lane.b32.xlu0 %v1165, 96
        %v1226 = vpop.permute.xlu0 %1225
        %1228 = vrot.lane.b32.xlu0 %v1165, 64
        %v1229 = vpop.permute.xlu0 %1228
        %1231 = vrot.lane.b32.xlu0 %v1165, 32
        %v1232 = vpop.permute.xlu0 %1231
        %v1234 = vpack.c.bf16 %v1165, %v1165
        %v1235 = vpack.c.bf16 %v1226, %v1226
        %v1236 = vpack.c.bf16 %v1229, %v1229
        %v1237 = vpack.c.bf16 %v1232, %v1232
        %1239 = vrot.lane.b32.xlu0 %v1204, 96
        %v1240 = vpop.permute.xlu0 %1239
        %1242 = vrot.lane.b32.xlu0 %v1204, 64
        %v1243 = vpop.permute.xlu0 %1242
        %1245 = vrot.lane.b32.xlu0 %v1204, 32
        %v1246 = vpop.permute.xlu0 %1245
        %v1248 = vpack.c.bf16 %v1204, %v1204
        %v1249 = vpack.c.bf16 %v1240, %v1240
        %v1250 = vpack.c.bf16 %v1243, %v1243
        %v1251 = vpack.c.bf16 %v1246, %v1246
        %vm1252 = vcmask 261120
        %v1254 = vsel %vm1252, %v1220, 0
        %v1257 = vsel %vm1252, %v1234, 0
        %1259 = vmatprep.subr.bf16.mxu0 0
        %1260 = vmatpush1.bf16.xpose.msra.mxu0 %v1257
        %1261 = vmatprep.subr.bf16.mxu0 0
        %1262 = vmatpush1.bf16.xpose.msra.mxu0 0
        %1263 = vmatprep.subr.bf16.mxu0 0
        %1264 = vmatpush1.bf16.xpose.msra.mxu0 0
        %1265 = vmatprep.subr.bf16.mxu0 0
        %1266 = vmatpush1.bf16.xpose.msra.mxu0 0
        %1267 = vmatprep.subr.bf16.mxu0 0
        %1268 = vmatpush1.bf16.xpose.msra.mxu0 0
        %1269 = vmatprep.subr.bf16.mxu0 0
        %1270 = vmatpush1.bf16.xpose.msra.mxu0 0
        %1271 = vmatprep.subr.bf16.mxu0 0
        %1272 = vmatpush1.bf16.xpose.msra.mxu0 0
        %1273 = vmatprep.subr.bf16.mxu0 0
        %1274 = vmatpush1.bf16.xpose.msra.mxu0 0
        %1275 = vmatprep.subr.bf16.mxu0 0
        %1276 = vmatpush1.bf16.xpose.msra.mxu0 0
        %1277 = vmatprep.subr.bf16.mxu0 0
        %1278 = vmatpush1.bf16.xpose.msra.mxu0 0
        %1279 = vmatprep.subr.bf16.mxu0 0
        %1280 = vmatpush1.bf16.xpose.msra.mxu0 0
        %1281 = vmatprep.subr.bf16.mxu0 0
        %1282 = vmatpush1.bf16.xpose.msra.mxu0 0
        %1283 = vmatprep.subr.bf16.mxu0 0
        %1284 = vmatpush1.bf16.xpose.msra.mxu0 0
        %1285 = vmatprep.subr.bf16.mxu0 0
        %1286 = vmatpush1.bf16.xpose.msra.mxu0 0
        %1287 = vmatprep.subr.bf16.mxu0 0
        %1288 = vmatpush1.bf16.xpose.msra.mxu0 0
        %1289 = vmatprep.subr.bf16.mxu0 0
        %1290 = vmatpush1.bf16.xpose.msra.mxu0 0
        %1291 = vmatprep.mubr.bf16.mxu0 0
        %1292 = vmatmul.mubr.bf16.gmra.mrb[0].mxu0 %v1254
        %v1293 = vpop.f32.mrb[0].mxu0
        %v1294 = vadd.f32 %v903, %v1293
        %v1295 = vpop.f32.mrb[0].mxu0
        %v1296 = vpop.f32.mrb[0].mxu0
        %v1297 = vpop.f32.mrb[0].mxu0
        %1298 = vdwg.mxu0
        %v1300 = vsel %vm1252, %v1221, 0
        %v1303 = vsel %vm1252, %v1235, 0
        %1305 = vmatprep.subr.bf16.mxu0 0
        %1306 = vmatpush1.bf16.xpose.msra.mxu0 %v1303
        %1307 = vmatprep.subr.bf16.mxu0 0
        %1308 = vmatpush1.bf16.xpose.msra.mxu0 0
        %1309 = vmatprep.subr.bf16.mxu0 0
        %1310 = vmatpush1.bf16.xpose.msra.mxu0 0
        %1311 = vmatprep.subr.bf16.mxu0 0
        %1312 = vmatpush1.bf16.xpose.msra.mxu0 0
        %1313 = vmatprep.subr.bf16.mxu0 0
        %1314 = vmatpush1.bf16.xpose.msra.mxu0 0
        %1315 = vmatprep.subr.bf16.mxu0 0
        %1316 = vmatpush1.bf16.xpose.msra.mxu0 0
        %1317 = vmatprep.subr.bf16.mxu0 0
        %1318 = vmatpush1.bf16.xpose.msra.mxu0 0
        %1319 = vmatprep.subr.bf16.mxu0 0
        %1320 = vmatpush1.bf16.xpose.msra.mxu0 0
        %1321 = vmatprep.subr.bf16.mxu0 0
        %1322 = vmatpush1.bf16.xpose.msra.mxu0 0
        %1323 = vmatprep.subr.bf16.mxu0 0
        %1324 = vmatpush1.bf16.xpose.msra.mxu0 0
        %1325 = vmatprep.subr.bf16.mxu0 0
        %1326 = vmatpush1.bf16.xpose.msra.mxu0 0
        %1327 = vmatprep.subr.bf16.mxu0 0
        %1328 = vmatpush1.bf16.xpose.msra.mxu0 0
        %1329 = vmatprep.subr.bf16.mxu0 0
        %1330 = vmatpush1.bf16.xpose.msra.mxu0 0
        %1331 = vmatprep.subr.bf16.mxu0 0
        %1332 = vmatpush1.bf16.xpose.msra.mxu0 0
        %1333 = vmatprep.subr.bf16.mxu0 0
        %1334 = vmatpush1.bf16.xpose.msra.mxu0 0
        %1335 = vmatprep.subr.bf16.mxu0 0
        %1336 = vmatpush1.bf16.xpose.msra.mxu0 0
        %1337 = vmatprep.mubr.bf16.mxu0 0
        %1338 = vmatmul.mubr.bf16.gmra.mrb[0].mxu0 %v1300
        %v1339 = vpop.f32.mrb[0].mxu0
        %v1340 = vadd.f32 %v903, %v1339
        %v1341 = vpop.f32.mrb[0].mxu0
        %v1342 = vpop.f32.mrb[0].mxu0
        %v1343 = vpop.f32.mrb[0].mxu0
        %1344 = vdwg.mxu0
        %v1346 = vsel %vm1252, %v1222, 0
        %v1349 = vsel %vm1252, %v1236, 0
        %1351 = vmatprep.subr.bf16.mxu0 0
        %1352 = vmatpush1.bf16.xpose.msra.mxu0 %v1349
        %1353 = vmatprep.subr.bf16.mxu0 0
        %1354 = vmatpush1.bf16.xpose.msra.mxu0 0
        %1355 = vmatprep.subr.bf16.mxu0 0
        %1356 = vmatpush1.bf16.xpose.msra.mxu0 0
        %1357 = vmatprep.subr.bf16.mxu0 0
        %1358 = vmatpush1.bf16.xpose.msra.mxu0 0
        %1359 = vmatprep.subr.bf16.mxu0 0
        %1360 = vmatpush1.bf16.xpose.msra.mxu0 0
        %1361 = vmatprep.subr.bf16.mxu0 0
        %1362 = vmatpush1.bf16.xpose.msra.mxu0 0
        %1363 = vmatprep.subr.bf16.mxu0 0
        %1364 = vmatpush1.bf16.xpose.msra.mxu0 0
        %1365 = vmatprep.subr.bf16.mxu0 0
        %1366 = vmatpush1.bf16.xpose.msra.mxu0 0
        %1367 = vmatprep.subr.bf16.mxu0 0
        %1368 = vmatpush1.bf16.xpose.msra.mxu0 0
        %1369 = vmatprep.subr.bf16.mxu0 0
        %1370 = vmatpush1.bf16.xpose.msra.mxu0 0
        %1371 = vmatprep.subr.bf16.mxu0 0
        %1372 = vmatpush1.bf16.xpose.msra.mxu0 0
        %1373 = vmatprep.subr.bf16.mxu0 0
        %1374 = vmatpush1.bf16.xpose.msra.mxu0 0
        %1375 = vmatprep.subr.bf16.mxu0 0
        %1376 = vmatpush1.bf16.xpose.msra.mxu0 0
        %1377 = vmatprep.subr.bf16.mxu0 0
        %1378 = vmatpush1.bf16.xpose.msra.mxu0 0
        %1379 = vmatprep.subr.bf16.mxu0 0
        %1380 = vmatpush1.bf16.xpose.msra.mxu0 0
        %1381 = vmatprep.subr.bf16.mxu0 0
        %1382 = vmatpush1.bf16.xpose.msra.mxu0 0
        %1383 = vmatprep.mubr.bf16.mxu0 0
        %1384 = vmatmul.mubr.bf16.gmra.mrb[0].mxu0 %v1346
        %v1385 = vpop.f32.mrb[0].mxu0
        %v1386 = vadd.f32 %v903, %v1385
        %v1387 = vpop.f32.mrb[0].mxu0
        %v1388 = vpop.f32.mrb[0].mxu0
        %v1389 = vpop.f32.mrb[0].mxu0
        %1390 = vdwg.mxu0
        %v1392 = vsel %vm1252, %v1223, 0
        %v1395 = vsel %vm1252, %v1237, 0
        %1397 = vmatprep.subr.bf16.mxu0 0
        %1398 = vmatpush1.bf16.xpose.msra.mxu0 %v1395
        %1399 = vmatprep.subr.bf16.mxu0 0
        %1400 = vmatpush1.bf16.xpose.msra.mxu0 0
        %1401 = vmatprep.subr.bf16.mxu0 0
        %1402 = vmatpush1.bf16.xpose.msra.mxu0 0
        %1403 = vmatprep.subr.bf16.mxu0 0
        %1404 = vmatpush1.bf16.xpose.msra.mxu0 0
        %1405 = vmatprep.subr.bf16.mxu0 0
        %1406 = vmatpush1.bf16.xpose.msra.mxu0 0
        %1407 = vmatprep.subr.bf16.mxu0 0
        %1408 = vmatpush1.bf16.xpose.msra.mxu0 0
        %1409 = vmatprep.subr.bf16.mxu0 0
        %1410 = vmatpush1.bf16.xpose.msra.mxu0 0
        %1411 = vmatprep.subr.bf16.mxu0 0
        %1412 = vmatpush1.bf16.xpose.msra.mxu0 0
        %1413 = vmatprep.subr.bf16.mxu0 0
        %1414 = vmatpush1.bf16.xpose.msra.mxu0 0
        %1415 = vmatprep.subr.bf16.mxu0 0
        %1416 = vmatpush1.bf16.xpose.msra.mxu0 0
        %1417 = vmatprep.subr.bf16.mxu0 0
        %1418 = vmatpush1.bf16.xpose.msra.mxu0 0
        %1419 = vmatprep.subr.bf16.mxu0 0
        %1420 = vmatpush1.bf16.xpose.msra.mxu0 0
        %1421 = vmatprep.subr.bf16.mxu0 0
        %1422 = vmatpush1.bf16.xpose.msra.mxu0 0
        %1423 = vmatprep.subr.bf16.mxu0 0
        %1424 = vmatpush1.bf16.xpose.msra.mxu0 0
        %1425 = vmatprep.subr.bf16.mxu0 0
        %1426 = vmatpush1.bf16.xpose.msra.mxu0 0
        %1427 = vmatprep.subr.bf16.mxu0 0
        %1428 = vmatpush1.bf16.xpose.msra.mxu0 0
        %1429 = vmatprep.mubr.bf16.mxu0 0
        %1430 = vmatmul.mubr.bf16.gmra.mrb[0].mxu0 %v1392
        %v1431 = vpop.f32.mrb[0].mxu0
        %v1432 = vadd.f32 %v903, %v1431
        %v1433 = vpop.f32.mrb[0].mxu0
        %v1434 = vpop.f32.mrb[0].mxu0
        %v1435 = vpop.f32.mrb[0].mxu0
        %1436 = vdwg.mxu0
        %vm1437 = vcmask 64512
        %v1438 = vsel %vm1437, %v1294, -inf
        %1439 = vmax.xlane.f32.xlu0 %v1438
        %v1440 = vpop.xlane.xlu0 %1439
        %v1441 = vsel %vm1437, %v1340, -inf
        %1442 = vmax.xlane.f32.xlu0 %v1441
        %v1443 = vpop.xlane.xlu0 %1442
        %v1444 = vsel %vm1437, %v1386, -inf
        %1445 = vmax.xlane.f32.xlu0 %v1444
        %v1446 = vpop.xlane.xlu0 %1445
        %v1447 = vsel %vm1437, %v1432, -inf
        %1448 = vmax.xlane.f32.xlu0 %v1447
        %v1449 = vpop.xlane.xlu0 %1448
        %v1450 = vsub.f32 %v1294, %v1440
        %v1451 = vsub.f32 %v1340, %v1443
        %v1452 = vsub.f32 %v1386, %v1446
        %v1453 = vsub.f32 %v1432, %v1449
        %v1454 = vmul.f32 %v1450, 1.442695
        %v1455 = vpow.pop %v1454
        %v1456 = vmul.f32 %v1451, 1.442695
        %v1457 = vpow.pop %v1456
        %v1458 = vmul.f32 %v1452, 1.442695
        %v1459 = vpow.pop %v1458
        %v1460 = vmul.f32 %v1453, 1.442695
        %v1461 = vpow.pop %v1460
        %v1462 = vsel %vm1437, %v1455, 0.0
        %1463 = vadd.xlane.f32.xlu0 %v1462
        %v1464 = vpop.xlane.xlu0 %1463
        %v1465 = vsel %vm1437, %v1457, 0.0
        %1466 = vadd.xlane.f32.xlu0 %v1465
        %v1467 = vpop.xlane.xlu0 %1466
        %v1468 = vsel %vm1437, %v1459, 0.0
        %1469 = vadd.xlane.f32.xlu0 %v1468
        %v1470 = vpop.xlane.xlu0 %1469
        %v1471 = vsel %vm1437, %v1461, 0.0
        %1472 = vadd.xlane.f32.xlu0 %v1471
        %v1473 = vpop.xlane.xlu0 %1472
        %v1474 = vrcp.pop %v1464
        %v1475 = vrcp.pop %v1467
        %v1476 = vrcp.pop %v1470
        %v1477 = vrcp.pop %v1473
        %v1478 = vmul.f32 %v1455, %v1474
        %v1479 = vmul.f32 %v1457, %v1475
        %v1480 = vmul.f32 %v1459, %v1476
        %v1481 = vmul.f32 %v1461, %v1477
        %v1482 = vpack.c.bf16 %v1478, %v1478
        %v1483 = vpack.c.bf16 %v1479, %v1479
        %v1484 = vpack.c.bf16 %v1480, %v1480
        %v1485 = vpack.c.bf16 %v1481, %v1481
        %v1487 = vsel %vm1437, %v1482, 0
        %vm1489 = vcmask 1043456
        %v1491 = vsel %vm1489, %v1248, 0
        %1493 = vmatprep.subr.bf16.mxu0 0
        %1494 = vmatpush1.bf16.msra.mxu0 %v1491
        %1495 = vmatprep.subr.bf16.mxu0 0
        %1496 = vmatpush1.bf16.msra.mxu0 0
        %1497 = vmatprep.subr.bf16.mxu0 0
        %1498 = vmatpush1.bf16.msra.mxu0 0
        %1499 = vmatprep.subr.bf16.mxu0 0
        %1500 = vmatpush1.bf16.msra.mxu0 0
        %1501 = vmatprep.subr.bf16.mxu0 0
        %1502 = vmatpush1.bf16.msra.mxu0 0
        %1503 = vmatprep.subr.bf16.mxu0 0
        %1504 = vmatpush1.bf16.msra.mxu0 0
        %1505 = vmatprep.subr.bf16.mxu0 0
        %1506 = vmatpush1.bf16.msra.mxu0 0
        %1507 = vmatprep.subr.bf16.mxu0 0
        %1508 = vmatpush1.bf16.msra.mxu0 0
        %1509 = vmatprep.subr.bf16.mxu0 0
        %1510 = vmatpush1.bf16.msra.mxu0 0
        %1511 = vmatprep.subr.bf16.mxu0 0
        %1512 = vmatpush1.bf16.msra.mxu0 0
        %1513 = vmatprep.subr.bf16.mxu0 0
        %1514 = vmatpush1.bf16.msra.mxu0 0
        %1515 = vmatprep.subr.bf16.mxu0 0
        %1516 = vmatpush1.bf16.msra.mxu0 0
        %1517 = vmatprep.subr.bf16.mxu0 0
        %1518 = vmatpush1.bf16.msra.mxu0 0
        %1519 = vmatprep.subr.bf16.mxu0 0
        %1520 = vmatpush1.bf16.msra.mxu0 0
        %1521 = vmatprep.subr.bf16.mxu0 0
        %1522 = vmatpush1.bf16.msra.mxu0 0
        %1523 = vmatprep.subr.bf16.mxu0 0
        %1524 = vmatpush1.bf16.msra.mxu0 0
        %1525 = vmatprep.mubr.bf16.mxu0 0
        %1526 = vmatmul.mubr.bf16.gmra.mrb[0].mxu0 %v1487
        %v1527 = vpop.f32.mrb[0].mxu0
        %v1528 = vadd.f32 0.0, %v1527
        %v1529 = vpop.f32.mrb[0].mxu0
        %v1530 = vpop.f32.mrb[0].mxu0
        %v1531 = vpop.f32.mrb[0].mxu0
        %1532 = vdwg.mxu0
        %v1534 = vsel %vm1437, %v1483, 0
        %v1537 = vsel %vm1489, %v1249, 0
        %1539 = vmatprep.subr.bf16.mxu0 0
        %1540 = vmatpush1.bf16.msra.mxu0 %v1537
        %1541 = vmatprep.subr.bf16.mxu0 0
        %1542 = vmatpush1.bf16.msra.mxu0 0
        %1543 = vmatprep.subr.bf16.mxu0 0
        %1544 = vmatpush1.bf16.msra.mxu0 0
        %1545 = vmatprep.subr.bf16.mxu0 0
        %1546 = vmatpush1.bf16.msra.mxu0 0
        %1547 = vmatprep.subr.bf16.mxu0 0
        %1548 = vmatpush1.bf16.msra.mxu0 0
        %1549 = vmatprep.subr.bf16.mxu0 0
        %1550 = vmatpush1.bf16.msra.mxu0 0
        %1551 = vmatprep.subr.bf16.mxu0 0
        %1552 = vmatpush1.bf16.msra.mxu0 0
        %1553 = vmatprep.subr.bf16.mxu0 0
        %1554 = vmatpush1.bf16.msra.mxu0 0
        %1555 = vmatprep.subr.bf16.mxu0 0
        %1556 = vmatpush1.bf16.msra.mxu0 0
        %1557 = vmatprep.subr.bf16.mxu0 0
        %1558 = vmatpush1.bf16.msra.mxu0 0
        %1559 = vmatprep.subr.bf16.mxu0 0
        %1560 = vmatpush1.bf16.msra.mxu0 0
        %1561 = vmatprep.subr.bf16.mxu0 0
        %1562 = vmatpush1.bf16.msra.mxu0 0
        %1563 = vmatprep.subr.bf16.mxu0 0
        %1564 = vmatpush1.bf16.msra.mxu0 0
        %1565 = vmatprep.subr.bf16.mxu0 0
        %1566 = vmatpush1.bf16.msra.mxu0 0
        %1567 = vmatprep.subr.bf16.mxu0 0
        %1568 = vmatpush1.bf16.msra.mxu0 0
        %1569 = vmatprep.subr.bf16.mxu0 0
        %1570 = vmatpush1.bf16.msra.mxu0 0
        %1571 = vmatprep.mubr.bf16.mxu0 0
        %1572 = vmatmul.mubr.bf16.gmra.mrb[0].mxu0 %v1534
        %v1573 = vpop.f32.mrb[0].mxu0
        %v1574 = vadd.f32 0.0, %v1573
        %v1575 = vpop.f32.mrb[0].mxu0
        %v1576 = vpop.f32.mrb[0].mxu0
        %v1577 = vpop.f32.mrb[0].mxu0
        %1578 = vdwg.mxu0
        %v1580 = vsel %vm1437, %v1484, 0
        %v1583 = vsel %vm1489, %v1250, 0
        %1585 = vmatprep.subr.bf16.mxu0 0
        %1586 = vmatpush1.bf16.msra.mxu0 %v1583
        %1587 = vmatprep.subr.bf16.mxu0 0
        %1588 = vmatpush1.bf16.msra.mxu0 0
        %1589 = vmatprep.subr.bf16.mxu0 0
        %1590 = vmatpush1.bf16.msra.mxu0 0
        %1591 = vmatprep.subr.bf16.mxu0 0
        %1592 = vmatpush1.bf16.msra.mxu0 0
        %1593 = vmatprep.subr.bf16.mxu0 0
        %1594 = vmatpush1.bf16.msra.mxu0 0
        %1595 = vmatprep.subr.bf16.mxu0 0
        %1596 = vmatpush1.bf16.msra.mxu0 0
        %1597 = vmatprep.subr.bf16.mxu0 0
        %1598 = vmatpush1.bf16.msra.mxu0 0
        %1599 = vmatprep.subr.bf16.mxu0 0
        %1600 = vmatpush1.bf16.msra.mxu0 0
        %1601 = vmatprep.subr.bf16.mxu0 0
        %1602 = vmatpush1.bf16.msra.mxu0 0
        %1603 = vmatprep.subr.bf16.mxu0 0
        %1604 = vmatpush1.bf16.msra.mxu0 0
        %1605 = vmatprep.subr.bf16.mxu0 0
        %1606 = vmatpush1.bf16.msra.mxu0 0
        %1607 = vmatprep.subr.bf16.mxu0 0
        %1608 = vmatpush1.bf16.msra.mxu0 0
        %1609 = vmatprep.subr.bf16.mxu0 0
        %1610 = vmatpush1.bf16.msra.mxu0 0
        %1611 = vmatprep.subr.bf16.mxu0 0
        %1612 = vmatpush1.bf16.msra.mxu0 0
        %1613 = vmatprep.subr.bf16.mxu0 0
        %1614 = vmatpush1.bf16.msra.mxu0 0
        %1615 = vmatprep.subr.bf16.mxu0 0
        %1616 = vmatpush1.bf16.msra.mxu0 0
        %1617 = vmatprep.mubr.bf16.mxu0 0
        %1618 = vmatmul.mubr.bf16.gmra.mrb[0].mxu0 %v1580
        %v1619 = vpop.f32.mrb[0].mxu0
        %v1620 = vadd.f32 0.0, %v1619
        %v1621 = vpop.f32.mrb[0].mxu0
        %v1622 = vpop.f32.mrb[0].mxu0
        %v1623 = vpop.f32.mrb[0].mxu0
        %1624 = vdwg.mxu0
        %v1626 = vsel %vm1437, %v1485, 0
        %v1629 = vsel %vm1489, %v1251, 0
        %1631 = vmatprep.subr.bf16.mxu0 0
        %1632 = vmatpush1.bf16.msra.mxu0 %v1629
        %1633 = vmatprep.subr.bf16.mxu0 0
        %1634 = vmatpush1.bf16.msra.mxu0 0
        %1635 = vmatprep.subr.bf16.mxu0 0
        %1636 = vmatpush1.bf16.msra.mxu0 0
        %1637 = vmatprep.subr.bf16.mxu0 0
        %1638 = vmatpush1.bf16.msra.mxu0 0
        %1639 = vmatprep.subr.bf16.mxu0 0
        %1640 = vmatpush1.bf16.msra.mxu0 0
        %1641 = vmatprep.subr.bf16.mxu0 0
        %1642 = vmatpush1.bf16.msra.mxu0 0
        %1643 = vmatprep.subr.bf16.mxu0 0
        %1644 = vmatpush1.bf16.msra.mxu0 0
        %1645 = vmatprep.subr.bf16.mxu0 0
        %1646 = vmatpush1.bf16.msra.mxu0 0
        %1647 = vmatprep.subr.bf16.mxu0 0
        %1648 = vmatpush1.bf16.msra.mxu0 0
        %1649 = vmatprep.subr.bf16.mxu0 0
        %1650 = vmatpush1.bf16.msra.mxu0 0
        %1651 = vmatprep.subr.bf16.mxu0 0
        %1652 = vmatpush1.bf16.msra.mxu0 0
        %1653 = vmatprep.subr.bf16.mxu0 0
        %1654 = vmatpush1.bf16.msra.mxu0 0
        %1655 = vmatprep.subr.bf16.mxu0 0
        %1656 = vmatpush1.bf16.msra.mxu0 0
        %1657 = vmatprep.subr.bf16.mxu0 0
        %1658 = vmatpush1.bf16.msra.mxu0 0
        %1659 = vmatprep.subr.bf16.mxu0 0
        %1660 = vmatpush1.bf16.msra.mxu0 0
        %1661 = vmatprep.subr.bf16.mxu0 0
        %1662 = vmatpush1.bf16.msra.mxu0 0
        %1663 = vmatprep.mubr.bf16.mxu0 0
        %1664 = vmatmul.mubr.bf16.gmra.mrb[0].mxu0 %v1626
        %v1665 = vpop.f32.mrb[0].mxu0
        %v1666 = vadd.f32 0.0, %v1665
        %v1667 = vpop.f32.mrb[0].mxu0
        %v1668 = vpop.f32.mrb[0].mxu0
        %v1669 = vpop.f32.mrb[0].mxu0
        %1670 = vdwg.mxu0
        %1672 = vrot.lane.b32.xlu0 %v1574, 32
        %v1673 = vpop.permute.xlu0 %1672
        %1676 = vrot.lane.b32.xlu0 %v1620, 64
        %v1677 = vpop.permute.xlu0 %1676
        %1680 = vrot.lane.b32.xlu0 %v1666, 96
        %v1681 = vpop.permute.xlu0 %1680
        %v1683 = vsel %vm1252, %v1528, %v1673
        %vm1684 = vcmask 523264
        %v1685 = vsel %vm1684, %v1683, %v1677
        %vm1686 = vcmask 785408
        %v1687 = vsel %vm1686, %v1685, %v1681
        %v1688 = vpack.c.bf16 %v1687, %v1687
        %v1689 = vld [vmem:[%s6] sm:$0xf]
        %v1690 = vld [vmem:[%s6 + $0x4] sm:$0xf]
        %v1691 = vld [vmem:[%s6 + $0x8] sm:$0xf]
        %v1692 = vld [vmem:[%s6 + $0xc] sm:$0xf]
        %v1693 = vld [vmem:[%s6 + $0x10] sm:$0xf]
        %v1694 = vld [vmem:[%s6 + $0x14] sm:$0xf]
        %v1695 = vld [vmem:[%s6 + $0x18] sm:$0xf]
        %v1696 = vld [vmem:[%s6 + $0x1c] sm:$0xf]
        %v1697 = vld [vmem:[%s6 + $0x20] sm:$0xf]
        %v1698 = vld [vmem:[%s6 + $0x24] sm:$0xf]
        %v1699 = vld [vmem:[%s6 + $0x28] sm:$0xf]
        %v1700 = vld [vmem:[%s6 + $0x2c] sm:$0xf]
        %v1701 = vld [vmem:[%s6 + $0x30] sm:$0xf]
        %v1702 = vld [vmem:[%s6 + $0x34] sm:$0xf]
        %v1703 = vld [vmem:[%s6 + $0x38] sm:$0xf]
        %v1704 = vld [vmem:[%s6 + $0x3c] sm:$0xf]
        %v1721 = vunpack.c.l.b16 %v1689
        %v1722 = vunpack.c.l.b16 %v1690
        %v1723 = vunpack.c.l.b16 %v1691
        %v1724 = vunpack.c.l.b16 %v1692
        %v1725 = vunpack.c.l.b16 %v1693
        %v1726 = vunpack.c.l.b16 %v1694
        %v1727 = vunpack.c.l.b16 %v1695
        %v1728 = vunpack.c.l.b16 %v1696
        %v1729 = vunpack.c.l.b16 %v1697
        %v1730 = vunpack.c.l.b16 %v1698
        %v1731 = vunpack.c.l.b16 %v1699
        %v1732 = vunpack.c.l.b16 %v1700
        %v1733 = vunpack.c.l.b16 %v1701
        %v1734 = vunpack.c.l.b16 %v1702
        %v1735 = vunpack.c.l.b16 %v1703
        %v1736 = vunpack.c.l.b16 %v1704
        %v1737 = vpack.c.b16 %v1722, %v1721
        %v1738 = vpack.c.b16 %v1724, %v1723
        %v1739 = vpack.c.b16 %v1726, %v1725
        %v1740 = vpack.c.b16 %v1728, %v1727
        %v1741 = vpack.c.b16 %v1730, %v1729
        %v1742 = vpack.c.b16 %v1732, %v1731
        %v1743 = vpack.c.b16 %v1734, %v1733
        %v1744 = vpack.c.b16 %v1736, %v1735
        %1753 = vmatprep.subr.bf16.mxu0 0
        %1754 = vmatpush1.bf16.msra.mxu0 %v1737
        %1755 = vmatprep.subr.bf16.mxu0 0
        %1756 = vmatpush1.bf16.msra.mxu0 %v1738
        %1757 = vmatprep.subr.bf16.mxu0 0
        %1758 = vmatpush1.bf16.msra.mxu0 %v1739
        %1759 = vmatprep.subr.bf16.mxu0 0
        %1760 = vmatpush1.bf16.msra.mxu0 %v1740
        %1761 = vmatprep.subr.bf16.mxu0 0
        %1762 = vmatpush1.bf16.msra.mxu0 %v1741
        %1763 = vmatprep.subr.bf16.mxu0 0
        %1764 = vmatpush1.bf16.msra.mxu0 %v1742
        %1765 = vmatprep.subr.bf16.mxu0 0
        %1766 = vmatpush1.bf16.msra.mxu0 %v1743
        %1767 = vmatprep.subr.bf16.mxu0 0
        %1768 = vmatpush1.bf16.msra.mxu0 %v1744
        %1769 = vmatprep.subr.bf16.mxu0 0
        %1770 = vmatpush1.bf16.msra.mxu0 0
        %1771 = vmatprep.subr.bf16.mxu0 0
        %1772 = vmatpush1.bf16.msra.mxu0 0
        %1773 = vmatprep.subr.bf16.mxu0 0
        %1774 = vmatpush1.bf16.msra.mxu0 0
        %1775 = vmatprep.subr.bf16.mxu0 0
        %1776 = vmatpush1.bf16.msra.mxu0 0
        %1777 = vmatprep.subr.bf16.mxu0 0
        %1778 = vmatpush1.bf16.msra.mxu0 0
        %1779 = vmatprep.subr.bf16.mxu0 0
        %1780 = vmatpush1.bf16.msra.mxu0 0
        %1781 = vmatprep.subr.bf16.mxu0 0
        %1782 = vmatpush1.bf16.msra.mxu0 0
        %1783 = vmatprep.subr.bf16.mxu0 0
        %1784 = vmatpush1.bf16.msra.mxu0 0
        %1785 = vmatprep.mubr.bf16.mxu0 0
        %1786 = vmatmul.mubr.bf16.gmra.mrb[0].mxu0 %v1688
        %v1787 = vpop.f32.mrb[0].mxu0
        %v1788 = vadd.f32 0.0, %v1787
        %v1789 = vpop.f32.mrb[0].mxu0
        %v1790 = vpop.f32.mrb[0].mxu0
        %v1791 = vpop.f32.mrb[0].mxu0
        %1792 = vdwg.mxu0
        %v1793 = vadd.f32 %v916, %v1788
        %v1794 = vld [vmem:[#allocation6] sm:$0x1]
        %v1796 = vlaneseq
        %v1797 = vshrl.u32 %v1796, 7
        %v1798 = vsub.s32 0, %v1797
        %v1799 = vrot.slane %v1794, %v1798
        %v1801 = vadd.f32 %v1793, %v1799
        %1802 = vadd.xlane.f32.xlu0 %v1801
        %v1803 = vpop.xlane.xlu0 %1802
        %v1804 = vmul.f32 %v1803, %v919
        %v1805 = vsub.f32 %v1801, %v1804
        %v1806 = vmul.f32 %v1805, %v1805
        %1807 = vadd.xlane.f32.xlu0 %v1806
        %v1808 = vpop.xlane.xlu0 %1807
        %v1809 = vmul.f32 %v1808, 0.007874016
        %v1811 = vlaneseq
        %v1812 = vshrl.u32 %v1811, 7
        %v1813 = vsub.s32 0, %v1812
        %v1814 = vrot.slane %v905, %v1813
        %v1816 = vmul.f32 %v1814, %v1805
        %v1817 = vrsqrt.pop %v1809
        %v1818 = vmul.f32 %v1809, %v1817
        %vm1819 = vcmp.eq.f32.partialorder %v1809, inf
        %v1820 = vsel %vm1819, %v1809, %v1818
        %vm1821 = vcmp.eq.f32.partialorder %v1809, 0.0
        %v1822 = vand.u32 %v1809, 2147483648
        %v1823 = vsel %vm1821, %v1822, %v1820
        %v1824 = vadd.f32 %v1823, 1e-06
        %v1825 = vrcp.pop %v1824
        %v1826 = vmul.f32 %v1816, %v1825
        %v1828 = vlaneseq
        %v1829 = vshrl.u32 %v1828, 7
        %v1830 = vsub.s32 0, %v1829
        %v1831 = vrot.slane %v911, %v1830
        %v1833 = vadd.f32 %v1826, %v1831
        %v1834 = vpack.c.bf16 %v1833, %v1833
        %v1835 = vld [vmem:[#allocation8] sm:$0xf]
        %v1836 = vld [vmem:[#allocation8 + $0x4] sm:$0xf]
        %v1837 = vld [vmem:[#allocation8 + $0x8] sm:$0xf]
        %v1838 = vld [vmem:[#allocation8 + $0xc] sm:$0xf]
        %v1839 = vld [vmem:[#allocation8 + $0x10] sm:$0xf]
        %v1840 = vld [vmem:[#allocation8 + $0x14] sm:$0xf]
        %v1841 = vld [vmem:[#allocation8 + $0x18] sm:$0xf]
        %v1842 = vld [vmem:[#allocation8 + $0x1c] sm:$0xf]
        %v1843 = vld [vmem:[#allocation8 + $0x20] sm:$0xf]
        %v1844 = vld [vmem:[#allocation8 + $0x24] sm:$0xf]
        %v1845 = vld [vmem:[#allocation8 + $0x28] sm:$0xf]
        %v1846 = vld [vmem:[#allocation8 + $0x2c] sm:$0xf]
        %v1847 = vld [vmem:[#allocation8 + $0x30] sm:$0xf]
        %v1848 = vld [vmem:[#allocation8 + $0x34] sm:$0xf]
        %v1849 = vld [vmem:[#allocation8 + $0x38] sm:$0xf]
        %v1850 = vld [vmem:[#allocation8 + $0x3c] sm:$0xf]
        %v1851 = vld [vmem:[#allocation9] sm:$0x1]
        %v1853 = vlaneseq
        %v1854 = vshrl.u32 %v1853, 7
        %v1855 = vsub.s32 0, %v1854
        %v1856 = vrot.slane %v1851, %v1855
        %v1874 = vunpack.c.l.b16 %v1835
        %v1875 = vunpack.c.l.b16 %v1836
        %v1876 = vunpack.c.l.b16 %v1837
        %v1877 = vunpack.c.l.b16 %v1838
        %v1878 = vunpack.c.l.b16 %v1839
        %v1879 = vunpack.c.l.b16 %v1840
        %v1880 = vunpack.c.l.b16 %v1841
        %v1881 = vunpack.c.l.b16 %v1842
        %v1882 = vunpack.c.l.b16 %v1843
        %v1883 = vunpack.c.l.b16 %v1844
        %v1884 = vunpack.c.l.b16 %v1845
        %v1885 = vunpack.c.l.b16 %v1846
        %v1886 = vunpack.c.l.b16 %v1847
        %v1887 = vunpack.c.l.b16 %v1848
        %v1888 = vunpack.c.l.b16 %v1849
        %v1889 = vunpack.c.l.b16 %v1850
        %v1890 = vpack.c.b16 %v1875, %v1874
        %v1891 = vpack.c.b16 %v1877, %v1876
        %v1892 = vpack.c.b16 %v1879, %v1878
        %v1893 = vpack.c.b16 %v1881, %v1880
        %v1894 = vpack.c.b16 %v1883, %v1882
        %v1895 = vpack.c.b16 %v1885, %v1884
        %v1896 = vpack.c.b16 %v1887, %v1886
        %v1897 = vpack.c.b16 %v1889, %v1888
        %1906 = vmatprep.subr.bf16.mxu0 0
        %1907 = vmatpush1.bf16.msra.mxu0 %v1890
        %1908 = vmatprep.subr.bf16.mxu0 0
        %1909 = vmatpush1.bf16.msra.mxu0 %v1891
        %1910 = vmatprep.subr.bf16.mxu0 0
        %1911 = vmatpush1.bf16.msra.mxu0 %v1892
        %1912 = vmatprep.subr.bf16.mxu0 0
        %1913 = vmatpush1.bf16.msra.mxu0 %v1893
        %1914 = vmatprep.subr.bf16.mxu0 0
        %1915 = vmatpush1.bf16.msra.mxu0 %v1894
        %1916 = vmatprep.subr.bf16.mxu0 0
        %1917 = vmatpush1.bf16.msra.mxu0 %v1895
        %1918 = vmatprep.subr.bf16.mxu0 0
        %1919 = vmatpush1.bf16.msra.mxu0 %v1896
        %1920 = vmatprep.subr.bf16.mxu0 0
        %1921 = vmatpush1.bf16.msra.mxu0 %v1897
        %1922 = vmatprep.subr.bf16.mxu0 0
        %1923 = vmatpush1.bf16.msra.mxu0 0
        %1924 = vmatprep.subr.bf16.mxu0 0
        %1925 = vmatpush1.bf16.msra.mxu0 0
        %1926 = vmatprep.subr.bf16.mxu0 0
        %1927 = vmatpush1.bf16.msra.mxu0 0
        %1928 = vmatprep.subr.bf16.mxu0 0
        %1929 = vmatpush1.bf16.msra.mxu0 0
        %1930 = vmatprep.subr.bf16.mxu0 0
        %1931 = vmatpush1.bf16.msra.mxu0 0
        %1932 = vmatprep.subr.bf16.mxu0 0
        %1933 = vmatpush1.bf16.msra.mxu0 0
        %1934 = vmatprep.subr.bf16.mxu0 0
        %1935 = vmatpush1.bf16.msra.mxu0 0
        %1936 = vmatprep.subr.bf16.mxu0 0
        %1937 = vmatpush1.bf16.msra.mxu0 0
        %1938 = vmatprep.mubr.bf16.mxu0 0
        %1939 = vmatmul.mubr.bf16.gmra.mrb[0].mxu0 %v1834
        %v1940 = vpop.f32.mrb[0].mxu0
        %v1941 = vadd.f32 %v1856, %v1940
        %v1942 = vpop.f32.mrb[0].mxu0
        %v1943 = vpop.f32.mrb[0].mxu0
        %v1944 = vpop.f32.mrb[0].mxu0
        %1945 = vdwg.mxu0
        %v1946 = vld [vmem:[%s788] sm:$0xf]
        %v1947 = vld [vmem:[%s788 + $0x4] sm:$0xf]
        %v1948 = vld [vmem:[#allocation11] sm:$0xff]
        %v1949 = vld [vmem:[#allocation11 + $0x8] sm:$0xff]
        %v1950 = vld [vmem:[#allocation11 + $0x10] sm:$0xff]
        %v1951 = vld [vmem:[#allocation11 + $0x18] sm:$0xff]
        %v1952 = vld [vmem:[#allocation11 + $0x20] sm:$0xff]
        %v1953 = vld [vmem:[#allocation11 + $0x28] sm:$0xff]
        %v1954 = vld [vmem:[#allocation11 + $0x30] sm:$0xff]
        %v1955 = vld [vmem:[#allocation11 + $0x38] sm:$0xff]
        %v1956 = vld [vmem:[#allocation11 + $0x40] sm:$0xff]
        %v1957 = vld [vmem:[#allocation11 + $0x48] sm:$0xff]
        %v1958 = vld [vmem:[#allocation11 + $0x50] sm:$0xff]
        %v1959 = vld [vmem:[#allocation11 + $0x58] sm:$0xff]
        %v1960 = vld [vmem:[#allocation11 + $0x60] sm:$0xff]
        %v1961 = vld [vmem:[#allocation11 + $0x68] sm:$0xff]
        %v1962 = vld [vmem:[#allocation11 + $0x70] sm:$0xff]
        %v1963 = vld [vmem:[#allocation11 + $0x78] sm:$0xff]
        %v1964 = vld [vmem:[%s11] sm:$0x3]
        %v1966 = vlaneseq
        %v1967 = vshrl.u32 %v1966, 7
        %v1968 = vsub.s32 0, %v1967
        %v1969 = vrot.slane %v1964, %v1968
        %v1970 = vlaneseq
        %v1971 = vshrl.u32 %v1970, 7
        %v1972 = vsub.s32 1, %v1971
        %v1973 = vrot.slane %v1964, %v1972
        %v1978 = vunpack.c.l.b16 %v1946
        %v1979 = vunpack.c.l.b16 %v1947
        %v1980 = vpack.c.b16 %v1979, %v1978
        %v1998 = vunpack.c.l.b16 %v1948
        %v1999 = vunpack.c.h.b16 %v1948
        %v2000 = vunpack.c.l.b16 %v1949
        %v2001 = vunpack.c.h.b16 %v1949
        %v2002 = vunpack.c.l.b16 %v1950
        %v2003 = vunpack.c.h.b16 %v1950
        %v2004 = vunpack.c.l.b16 %v1951
        %v2005 = vunpack.c.h.b16 %v1951
        %v2006 = vunpack.c.l.b16 %v1952
        %v2007 = vunpack.c.h.b16 %v1952
        %v2008 = vunpack.c.l.b16 %v1953
        %v2009 = vunpack.c.h.b16 %v1953
        %v2010 = vunpack.c.l.b16 %v1954
        %v2011 = vunpack.c.h.b16 %v1954
        %v2012 = vunpack.c.l.b16 %v1955
        %v2013 = vunpack.c.h.b16 %v1955
        %v2014 = vunpack.c.l.b16 %v1956
        %v2015 = vunpack.c.h.b16 %v1956
        %v2016 = vunpack.c.l.b16 %v1957
        %v2017 = vunpack.c.h.b16 %v1957
        %v2018 = vunpack.c.l.b16 %v1958
        %v2019 = vunpack.c.h.b16 %v1958
        %v2020 = vunpack.c.l.b16 %v1959
        %v2021 = vunpack.c.h.b16 %v1959
        %v2022 = vunpack.c.l.b16 %v1960
        %v2023 = vunpack.c.h.b16 %v1960
        %v2024 = vunpack.c.l.b16 %v1961
        %v2025 = vunpack.c.h.b16 %v1961
        %v2026 = vunpack.c.l.b16 %v1962
        %v2027 = vunpack.c.h.b16 %v1962
        %v2028 = vunpack.c.l.b16 %v1963
        %v2029 = vunpack.c.h.b16 %v1963
        %v2030 = vpack.c.b16 %v2000, %v1998
        %v2031 = vpack.c.b16 %v2001, %v1999
        %v2032 = vpack.c.b16 %v2004, %v2002
        %v2033 = vpack.c.b16 %v2005, %v2003
        %v2034 = vpack.c.b16 %v2008, %v2006
        %v2035 = vpack.c.b16 %v2009, %v2007
        %v2036 = vpack.c.b16 %v2012, %v2010
        %v2037 = vpack.c.b16 %v2013, %v2011
        %v2038 = vpack.c.b16 %v2016, %v2014
        %v2039 = vpack.c.b16 %v2017, %v2015
        %v2040 = vpack.c.b16 %v2020, %v2018
        %v2041 = vpack.c.b16 %v2021, %v2019
        %v2042 = vpack.c.b16 %v2024, %v2022
        %v2043 = vpack.c.b16 %v2025, %v2023
        %v2044 = vpack.c.b16 %v2028, %v2026
        %v2045 = vpack.c.b16 %v2029, %v2027
        %2062 = vmatprep.subr.bf16.mxu0 %v2031
        %2063 = vmatpush1.bf16.msra.mxu0 %v2030
        %2064 = vmatprep.subr.bf16.mxu0 %v2033
        %2065 = vmatpush1.bf16.msra.mxu0 %v2032
        %2066 = vmatprep.subr.bf16.mxu0 %v2035
        %2067 = vmatpush1.bf16.msra.mxu0 %v2034
        %2068 = vmatprep.subr.bf16.mxu0 %v2037
        %2069 = vmatpush1.bf16.msra.mxu0 %v2036
        %2070 = vmatprep.subr.bf16.mxu0 %v2039
        %2071 = vmatpush1.bf16.msra.mxu0 %v2038
        %2072 = vmatprep.subr.bf16.mxu0 %v2041
        %2073 = vmatpush1.bf16.msra.mxu0 %v2040
        %2074 = vmatprep.subr.bf16.mxu0 %v2043
        %2075 = vmatpush1.bf16.msra.mxu0 %v2042
        %2076 = vmatprep.subr.bf16.mxu0 %v2045
        %2077 = vmatpush1.bf16.msra.mxu0 %v2044
        %2078 = vmatprep.subr.bf16.mxu0 0
        %2079 = vmatpush1.bf16.msra.mxu0 0
        %2080 = vmatprep.subr.bf16.mxu0 0
        %2081 = vmatpush1.bf16.msra.mxu0 0
        %2082 = vmatprep.subr.bf16.mxu0 0
        %2083 = vmatpush1.bf16.msra.mxu0 0
        %2084 = vmatprep.subr.bf16.mxu0 0
        %2085 = vmatpush1.bf16.msra.mxu0 0
        %2086 = vmatprep.subr.bf16.mxu0 0
        %2087 = vmatpush1.bf16.msra.mxu0 0
        %2088 = vmatprep.subr.bf16.mxu0 0
        %2089 = vmatpush1.bf16.msra.mxu0 0
        %2090 = vmatprep.subr.bf16.mxu0 0
        %2091 = vmatpush1.bf16.msra.mxu0 0
        %2092 = vmatprep.subr.bf16.mxu0 0
        %2093 = vmatpush1.bf16.msra.mxu0 0
        %2094 = vmatprep.mubr.bf16.mxu0 0
        %2095 = vmatmul.mubr.bf16.gmra.mrb[0].mxu0 %v1980
        %v2096 = vpop.f32.mrb[0].mxu0
        %v2097 = vadd.f32 %v1969, %v2096
        %v2098 = vpop.f32.mrb[0].mxu0
        %v2099 = vadd.f32 %v1973, %v2098
        %v2100 = vpop.f32.mrb[0].mxu0
        %v2101 = vadd.f32 %v1969, %v2100
        %v2102 = vpop.f32.mrb[0].mxu0
        %v2103 = vadd.f32 %v1973, %v2102
        %2104 = vdwg.mxu0
        %v2105 = vmul.f32 %v1941, 0.17677669
        %2107 = vrot.lane.b32.xlu0 %v2105, 96
        %v2108 = vpop.permute.xlu0 %2107
        %2110 = vrot.lane.b32.xlu0 %v2105, 64
        %v2111 = vpop.permute.xlu0 %2110
        %2113 = vrot.lane.b32.xlu0 %v2105, 32
        %v2114 = vpop.permute.xlu0 %2113
        %v2116 = vpack.c.bf16 %v2105, %v2105
        %v2117 = vpack.c.bf16 %v2108, %v2108
        %v2118 = vpack.c.bf16 %v2111, %v2111
        %v2119 = vpack.c.bf16 %v2114, %v2114
        %2122 = vrot.lane.b32.xlu0 %v2097, 96
        %v2123 = vpop.permute.xlu0 %2122
        %2124 = vrot.lane.b32.xlu0 %v2101, 96
        %v2125 = vpop.permute.xlu0 %2124
        %2128 = vrot.lane.b32.xlu0 %v2097, 64
        %v2129 = vpop.permute.xlu0 %2128
        %2130 = vrot.lane.b32.xlu0 %v2101, 64
        %v2131 = vpop.permute.xlu0 %2130
        %2134 = vrot.lane.b32.xlu0 %v2097, 32
        %v2135 = vpop.permute.xlu0 %2134
        %2136 = vrot.lane.b32.xlu0 %v2101, 32
        %v2137 = vpop.permute.xlu0 %2136
        %v2140 = vpack.c.bf16 %v2101, %v2097
        %v2141 = vpack.c.bf16 %v2125, %v2123
        %v2142 = vpack.c.bf16 %v2131, %v2129
        %v2143 = vpack.c.bf16 %v2137, %v2135
        %2146 = vrot.lane.b32.xlu0 %v2099, 96
        %v2147 = vpop.permute.xlu0 %2146
        %2148 = vrot.lane.b32.xlu0 %v2103, 96
        %v2149 = vpop.permute.xlu0 %2148
        %2152 = vrot.lane.b32.xlu0 %v2099, 64
        %v2153 = vpop.permute.xlu0 %2152
        %2154 = vrot.lane.b32.xlu0 %v2103, 64
        %v2155 = vpop.permute.xlu0 %2154
        %2158 = vrot.lane.b32.xlu0 %v2099, 32
        %v2159 = vpop.permute.xlu0 %2158
        %2160 = vrot.lane.b32.xlu0 %v2103, 32
        %v2161 = vpop.permute.xlu0 %2160
        %v2164 = vpack.c.bf16 %v2103, %v2099
        %v2165 = vpack.c.bf16 %v2149, %v2147
        %v2166 = vpack.c.bf16 %v2155, %v2153
        %v2167 = vpack.c.bf16 %v2161, %v2159
        %v2169 = vlaneseq
        %v2170 = vshrl.u32 %v2169, 7
        %v2171 = vsub.s32 0, %v2170
        %v2172 = vrot.slane %v902, %v2171
        %v2175 = vsel %vm1252, %v2116, 0
        %v2178 = vsel %vm1252, %v2140, 0
        %2180 = vmatprep.subr.bf16.mxu0 0
        %2181 = vmatpush1.bf16.xpose.msra.mxu0 %v2178
        %2182 = vmatprep.subr.bf16.mxu0 0
        %2183 = vmatpush1.bf16.xpose.msra.mxu0 0
        %2184 = vmatprep.subr.bf16.mxu0 0
        %2185 = vmatpush1.bf16.xpose.msra.mxu0 0
        %2186 = vmatprep.subr.bf16.mxu0 0
        %2187 = vmatpush1.bf16.xpose.msra.mxu0 0
        %2188 = vmatprep.subr.bf16.mxu0 0
        %2189 = vmatpush1.bf16.xpose.msra.mxu0 0
        %2190 = vmatprep.subr.bf16.mxu0 0
        %2191 = vmatpush1.bf16.xpose.msra.mxu0 0
        %2192 = vmatprep.subr.bf16.mxu0 0
        %2193 = vmatpush1.bf16.xpose.msra.mxu0 0
        %2194 = vmatprep.subr.bf16.mxu0 0
        %2195 = vmatpush1.bf16.xpose.msra.mxu0 0
        %2196 = vmatprep.subr.bf16.mxu0 0
        %2197 = vmatpush1.bf16.xpose.msra.mxu0 0
        %2198 = vmatprep.subr.bf16.mxu0 0
        %2199 = vmatpush1.bf16.xpose.msra.mxu0 0
        %2200 = vmatprep.subr.bf16.mxu0 0
        %2201 = vmatpush1.bf16.xpose.msra.mxu0 0
        %2202 = vmatprep.subr.bf16.mxu0 0
        %2203 = vmatpush1.bf16.xpose.msra.mxu0 0
        %2204 = vmatprep.subr.bf16.mxu0 0
        %2205 = vmatpush1.bf16.xpose.msra.mxu0 0
        %2206 = vmatprep.subr.bf16.mxu0 0
        %2207 = vmatpush1.bf16.xpose.msra.mxu0 0
        %2208 = vmatprep.subr.bf16.mxu0 0
        %2209 = vmatpush1.bf16.xpose.msra.mxu0 0
        %2210 = vmatprep.subr.bf16.mxu0 0
        %2211 = vmatpush1.bf16.xpose.msra.mxu0 0
        %2212 = vmatprep.mubr.bf16.mxu0 0
        %2213 = vmatmul.mubr.bf16.gmra.mrb[0].mxu0 %v2175
        %v2214 = vpop.f32.mrb[0].mxu0
        %v2215 = vadd.f32 %v2172, %v2214
        %v2216 = vpop.f32.mrb[0].mxu0
        %v2217 = vpop.f32.mrb[0].mxu0
        %v2218 = vpop.f32.mrb[0].mxu0
        %2219 = vdwg.mxu0
        %v2221 = vsel %vm1252, %v2117, 0
        %v2224 = vsel %vm1252, %v2141, 0
        %2226 = vmatprep.subr.bf16.mxu0 0
        %2227 = vmatpush1.bf16.xpose.msra.mxu0 %v2224
        %2228 = vmatprep.subr.bf16.mxu0 0
        %2229 = vmatpush1.bf16.xpose.msra.mxu0 0
        %2230 = vmatprep.subr.bf16.mxu0 0
        %2231 = vmatpush1.bf16.xpose.msra.mxu0 0
        %2232 = vmatprep.subr.bf16.mxu0 0
        %2233 = vmatpush1.bf16.xpose.msra.mxu0 0
        %2234 = vmatprep.subr.bf16.mxu0 0
        %2235 = vmatpush1.bf16.xpose.msra.mxu0 0
        %2236 = vmatprep.subr.bf16.mxu0 0
        %2237 = vmatpush1.bf16.xpose.msra.mxu0 0
        %2238 = vmatprep.subr.bf16.mxu0 0
        %2239 = vmatpush1.bf16.xpose.msra.mxu0 0
        %2240 = vmatprep.subr.bf16.mxu0 0
        %2241 = vmatpush1.bf16.xpose.msra.mxu0 0
        %2242 = vmatprep.subr.bf16.mxu0 0
        %2243 = vmatpush1.bf16.xpose.msra.mxu0 0
        %2244 = vmatprep.subr.bf16.mxu0 0
        %2245 = vmatpush1.bf16.xpose.msra.mxu0 0
        %2246 = vmatprep.subr.bf16.mxu0 0
        %2247 = vmatpush1.bf16.xpose.msra.mxu0 0
        %2248 = vmatprep.subr.bf16.mxu0 0
        %2249 = vmatpush1.bf16.xpose.msra.mxu0 0
        %2250 = vmatprep.subr.bf16.mxu0 0
        %2251 = vmatpush1.bf16.xpose.msra.mxu0 0
        %2252 = vmatprep.subr.bf16.mxu0 0
        %2253 = vmatpush1.bf16.xpose.msra.mxu0 0
        %2254 = vmatprep.subr.bf16.mxu0 0
        %2255 = vmatpush1.bf16.xpose.msra.mxu0 0
        %2256 = vmatprep.subr.bf16.mxu0 0
        %2257 = vmatpush1.bf16.xpose.msra.mxu0 0
        %2258 = vmatprep.mubr.bf16.mxu0 0
        %2259 = vmatmul.mubr.bf16.gmra.mrb[0].mxu0 %v2221
        %v2260 = vpop.f32.mrb[0].mxu0
        %v2261 = vadd.f32 %v2172, %v2260
        %v2262 = vpop.f32.mrb[0].mxu0
        %v2263 = vpop.f32.mrb[0].mxu0
        %v2264 = vpop.f32.mrb[0].mxu0
        %2265 = vdwg.mxu0
        %v2267 = vsel %vm1252, %v2118, 0
        %v2270 = vsel %vm1252, %v2142, 0
        %2272 = vmatprep.subr.bf16.mxu0 0
        %2273 = vmatpush1.bf16.xpose.msra.mxu0 %v2270
        %2274 = vmatprep.subr.bf16.mxu0 0
        %2275 = vmatpush1.bf16.xpose.msra.mxu0 0
        %2276 = vmatprep.subr.bf16.mxu0 0
        %2277 = vmatpush1.bf16.xpose.msra.mxu0 0
        %2278 = vmatprep.subr.bf16.mxu0 0
        %2279 = vmatpush1.bf16.xpose.msra.mxu0 0
        %2280 = vmatprep.subr.bf16.mxu0 0
        %2281 = vmatpush1.bf16.xpose.msra.mxu0 0
        %2282 = vmatprep.subr.bf16.mxu0 0
        %2283 = vmatpush1.bf16.xpose.msra.mxu0 0
        %2284 = vmatprep.subr.bf16.mxu0 0
        %2285 = vmatpush1.bf16.xpose.msra.mxu0 0
        %2286 = vmatprep.subr.bf16.mxu0 0
        %2287 = vmatpush1.bf16.xpose.msra.mxu0 0
        %2288 = vmatprep.subr.bf16.mxu0 0
        %2289 = vmatpush1.bf16.xpose.msra.mxu0 0
        %2290 = vmatprep.subr.bf16.mxu0 0
        %2291 = vmatpush1.bf16.xpose.msra.mxu0 0
        %2292 = vmatprep.subr.bf16.mxu0 0
        %2293 = vmatpush1.bf16.xpose.msra.mxu0 0
        %2294 = vmatprep.subr.bf16.mxu0 0
        %2295 = vmatpush1.bf16.xpose.msra.mxu0 0
        %2296 = vmatprep.subr.bf16.mxu0 0
        %2297 = vmatpush1.bf16.xpose.msra.mxu0 0
        %2298 = vmatprep.subr.bf16.mxu0 0
        %2299 = vmatpush1.bf16.xpose.msra.mxu0 0
        %2300 = vmatprep.subr.bf16.mxu0 0
        %2301 = vmatpush1.bf16.xpose.msra.mxu0 0
        %2302 = vmatprep.subr.bf16.mxu0 0
        %2303 = vmatpush1.bf16.xpose.msra.mxu0 0
        %2304 = vmatprep.mubr.bf16.mxu0 0
        %2305 = vmatmul.mubr.bf16.gmra.mrb[0].mxu0 %v2267
        %v2306 = vpop.f32.mrb[0].mxu0
        %v2307 = vadd.f32 %v2172, %v2306
        %v2308 = vpop.f32.mrb[0].mxu0
        %v2309 = vpop.f32.mrb[0].mxu0
        %v2310 = vpop.f32.mrb[0].mxu0
        %2311 = vdwg.mxu0
        %v2313 = vsel %vm1252, %v2119, 0
        %v2316 = vsel %vm1252, %v2143, 0
        %2318 = vmatprep.subr.bf16.mxu0 0
        %2319 = vmatpush1.bf16.xpose.msra.mxu0 %v2316
        %2320 = vmatprep.subr.bf16.mxu0 0
        %2321 = vmatpush1.bf16.xpose.msra.mxu0 0
        %2322 = vmatprep.subr.bf16.mxu0 0
        %2323 = vmatpush1.bf16.xpose.msra.mxu0 0
        %2324 = vmatprep.subr.bf16.mxu0 0
        %2325 = vmatpush1.bf16.xpose.msra.mxu0 0
        %2326 = vmatprep.subr.bf16.mxu0 0
        %2327 = vmatpush1.bf16.xpose.msra.mxu0 0
        %2328 = vmatprep.subr.bf16.mxu0 0
        %2329 = vmatpush1.bf16.xpose.msra.mxu0 0
        %2330 = vmatprep.subr.bf16.mxu0 0
        %2331 = vmatpush1.bf16.xpose.msra.mxu0 0
        %2332 = vmatprep.subr.bf16.mxu0 0
        %2333 = vmatpush1.bf16.xpose.msra.mxu0 0
        %2334 = vmatprep.subr.bf16.mxu0 0
        %2335 = vmatpush1.bf16.xpose.msra.mxu0 0
        %2336 = vmatprep.subr.bf16.mxu0 0
        %2337 = vmatpush1.bf16.xpose.msra.mxu0 0
        %2338 = vmatprep.subr.bf16.mxu0 0
        %2339 = vmatpush1.bf16.xpose.msra.mxu0 0
        %2340 = vmatprep.subr.bf16.mxu0 0
        %2341 = vmatpush1.bf16.xpose.msra.mxu0 0
        %2342 = vmatprep.subr.bf16.mxu0 0
        %2343 = vmatpush1.bf16.xpose.msra.mxu0 0
        %2344 = vmatprep.subr.bf16.mxu0 0
        %2345 = vmatpush1.bf16.xpose.msra.mxu0 0
        %2346 = vmatprep.subr.bf16.mxu0 0
        %2347 = vmatpush1.bf16.xpose.msra.mxu0 0
        %2348 = vmatprep.subr.bf16.mxu0 0
        %2349 = vmatpush1.bf16.xpose.msra.mxu0 0
        %2350 = vmatprep.mubr.bf16.mxu0 0
        %2351 = vmatmul.mubr.bf16.gmra.mrb[0].mxu0 %v2313
        %v2352 = vpop.f32.mrb[0].mxu0
        %v2353 = vadd.f32 %v2172, %v2352
        %v2354 = vpop.f32.mrb[0].mxu0
        %v2355 = vpop.f32.mrb[0].mxu0
        %v2356 = vpop.f32.mrb[0].mxu0
        %2357 = vdwg.mxu0
        %vm2358 = vcmask 130048
        %v2359 = vsel %vm2358, %v2215, -inf
        %2360 = vmax.xlane.f32.xlu0 %v2359
        %v2361 = vpop.xlane.xlu0 %2360
        %v2362 = vsel %vm2358, %v2261, -inf
        %2363 = vmax.xlane.f32.xlu0 %v2362
        %v2364 = vpop.xlane.xlu0 %2363
        %v2365 = vsel %vm2358, %v2307, -inf
        %2366 = vmax.xlane.f32.xlu0 %v2365
        %v2367 = vpop.xlane.xlu0 %2366
        %v2368 = vsel %vm2358, %v2353, -inf
        %2369 = vmax.xlane.f32.xlu0 %v2368
        %v2370 = vpop.xlane.xlu0 %2369
        %v2371 = vsub.f32 %v2215, %v2361
        %v2372 = vsub.f32 %v2261, %v2364
        %v2373 = vsub.f32 %v2307, %v2367
        %v2374 = vsub.f32 %v2353, %v2370
        %v2375 = vmul.f32 %v2371, 1.442695
        %v2376 = vpow.pop %v2375
        %v2377 = vmul.f32 %v2372, 1.442695
        %v2378 = vpow.pop %v2377
        %v2379 = vmul.f32 %v2373, 1.442695
        %v2380 = vpow.pop %v2379
        %v2381 = vmul.f32 %v2374, 1.442695
        %v2382 = vpow.pop %v2381
        %v2383 = vsel %vm2358, %v2376, 0.0
        %2384 = vadd.xlane.f32.xlu0 %v2383
        %v2385 = vpop.xlane.xlu0 %2384
        %v2386 = vsel %vm2358, %v2378, 0.0
        %2387 = vadd.xlane.f32.xlu0 %v2386
        %v2388 = vpop.xlane.xlu0 %2387
        %v2389 = vsel %vm2358, %v2380, 0.0
        %2390 = vadd.xlane.f32.xlu0 %v2389
        %v2391 = vpop.xlane.xlu0 %2390
        %v2392 = vsel %vm2358, %v2382, 0.0
        %2393 = vadd.xlane.f32.xlu0 %v2392
        %v2394 = vpop.xlane.xlu0 %2393
        %v2395 = vrcp.pop %v2385
        %v2396 = vrcp.pop %v2388
        %v2397 = vrcp.pop %v2391
        %v2398 = vrcp.pop %v2394
        %v2399 = vmul.f32 %v2376, %v2395
        %v2400 = vmul.f32 %v2378, %v2396
        %v2401 = vmul.f32 %v2380, %v2397
        %v2402 = vmul.f32 %v2382, %v2398
        %v2403 = vpack.c.bf16 %v2399, %v2399
        %v2404 = vpack.c.bf16 %v2400, %v2400
        %v2405 = vpack.c.bf16 %v2401, %v2401
        %v2406 = vpack.c.bf16 %v2402, %v2402
        %v2408 = vsel %vm2358, %v2403, 0
        %2410 = vmatprep.subr.bf16.mxu0 0
        %2411 = vmatpush1.bf16.msra.mxu0 %v2164
        %2412 = vmatprep.subr.bf16.mxu0 0
        %2413 = vmatpush1.bf16.msra.mxu0 0
        %2414 = vmatprep.subr.bf16.mxu0 0
        %2415 = vmatpush1.bf16.msra.mxu0 0
        %2416 = vmatprep.subr.bf16.mxu0 0
        %2417 = vmatpush1.bf16.msra.mxu0 0
        %2418 = vmatprep.subr.bf16.mxu0 0
        %2419 = vmatpush1.bf16.msra.mxu0 0
        %2420 = vmatprep.subr.bf16.mxu0 0
        %2421 = vmatpush1.bf16.msra.mxu0 0
        %2422 = vmatprep.subr.bf16.mxu0 0
        %2423 = vmatpush1.bf16.msra.mxu0 0
        %2424 = vmatprep.subr.bf16.mxu0 0
        %2425 = vmatpush1.bf16.msra.mxu0 0
        %2426 = vmatprep.subr.bf16.mxu0 0
        %2427 = vmatpush1.bf16.msra.mxu0 0
        %2428 = vmatprep.subr.bf16.mxu0 0
        %2429 = vmatpush1.bf16.msra.mxu0 0
        %2430 = vmatprep.subr.bf16.mxu0 0
        %2431 = vmatpush1.bf16.msra.mxu0 0
        %2432 = vmatprep.subr.bf16.mxu0 0
        %2433 = vmatpush1.bf16.msra.mxu0 0
        %2434 = vmatprep.subr.bf16.mxu0 0
        %2435 = vmatpush1.bf16.msra.mxu0 0
        %2436 = vmatprep.subr.bf16.mxu0 0
        %2437 = vmatpush1.bf16.msra.mxu0 0
        %2438 = vmatprep.subr.bf16.mxu0 0
        %2439 = vmatpush1.bf16.msra.mxu0 0
        %2440 = vmatprep.subr.bf16.mxu0 0
        %2441 = vmatpush1.bf16.msra.mxu0 0
        %2442 = vmatprep.mubr.bf16.mxu0 0
        %2443 = vmatmul.mubr.bf16.gmra.mrb[0].mxu0 %v2408
        %v2444 = vpop.f32.mrb[0].mxu0
        %v2445 = vadd.f32 0.0, %v2444
        %v2446 = vpop.f32.mrb[0].mxu0
        %v2447 = vpop.f32.mrb[0].mxu0
        %v2448 = vpop.f32.mrb[0].mxu0
        %2449 = vdwg.mxu0
        %v2451 = vsel %vm2358, %v2404, 0
        %2453 = vmatprep.subr.bf16.mxu0 0
        %2454 = vmatpush1.bf16.msra.mxu0 %v2165
        %2455 = vmatprep.subr.bf16.mxu0 0
        %2456 = vmatpush1.bf16.msra.mxu0 0
        %2457 = vmatprep.subr.bf16.mxu0 0
        %2458 = vmatpush1.bf16.msra.mxu0 0
        %2459 = vmatprep.subr.bf16.mxu0 0
        %2460 = vmatpush1.bf16.msra.mxu0 0
        %2461 = vmatprep.subr.bf16.mxu0 0
        %2462 = vmatpush1.bf16.msra.mxu0 0
        %2463 = vmatprep.subr.bf16.mxu0 0
        %2464 = vmatpush1.bf16.msra.mxu0 0
        %2465 = vmatprep.subr.bf16.mxu0 0
        %2466 = vmatpush1.bf16.msra.mxu0 0
        %2467 = vmatprep.subr.bf16.mxu0 0
        %2468 = vmatpush1.bf16.msra.mxu0 0
        %2469 = vmatprep.subr.bf16.mxu0 0
        %2470 = vmatpush1.bf16.msra.mxu0 0
        %2471 = vmatprep.subr.bf16.mxu0 0
        %2472 = vmatpush1.bf16.msra.mxu0 0
        %2473 = vmatprep.subr.bf16.mxu0 0
        %2474 = vmatpush1.bf16.msra.mxu0 0
        %2475 = vmatprep.subr.bf16.mxu0 0
        %2476 = vmatpush1.bf16.msra.mxu0 0
        %2477 = vmatprep.subr.bf16.mxu0 0
        %2478 = vmatpush1.bf16.msra.mxu0 0
        %2479 = vmatprep.subr.bf16.mxu0 0
        %2480 = vmatpush1.bf16.msra.mxu0 0
        %2481 = vmatprep.subr.bf16.mxu0 0
        %2482 = vmatpush1.bf16.msra.mxu0 0
        %2483 = vmatprep.subr.bf16.mxu0 0
        %2484 = vmatpush1.bf16.msra.mxu0 0
        %2485 = vmatprep.mubr.bf16.mxu0 0
        %2486 = vmatmul.mubr.bf16.gmra.mrb[0].mxu0 %v2451
        %v2487 = vpop.f32.mrb[0].mxu0
        %v2488 = vadd.f32 0.0, %v2487
        %v2489 = vpop.f32.mrb[0].mxu0
        %v2490 = vpop.f32.mrb[0].mxu0
        %v2491 = vpop.f32.mrb[0].mxu0
        %2492 = vdwg.mxu0
        %v2494 = vsel %vm2358, %v2405, 0
        %2496 = vmatprep.subr.bf16.mxu0 0
        %2497 = vmatpush1.bf16.msra.mxu0 %v2166
        %2498 = vmatprep.subr.bf16.mxu0 0
        %2499 = vmatpush1.bf16.msra.mxu0 0
        %2500 = vmatprep.subr.bf16.mxu0 0
        %2501 = vmatpush1.bf16.msra.mxu0 0
        %2502 = vmatprep.subr.bf16.mxu0 0
        %2503 = vmatpush1.bf16.msra.mxu0 0
        %2504 = vmatprep.subr.bf16.mxu0 0
        %2505 = vmatpush1.bf16.msra.mxu0 0
        %2506 = vmatprep.subr.bf16.mxu0 0
        %2507 = vmatpush1.bf16.msra.mxu0 0
        %2508 = vmatprep.subr.bf16.mxu0 0
        %2509 = vmatpush1.bf16.msra.mxu0 0
        %2510 = vmatprep.subr.bf16.mxu0 0
        %2511 = vmatpush1.bf16.msra.mxu0 0
        %2512 = vmatprep.subr.bf16.mxu0 0
        %2513 = vmatpush1.bf16.msra.mxu0 0
        %2514 = vmatprep.subr.bf16.mxu0 0
        %2515 = vmatpush1.bf16.msra.mxu0 0
        %2516 = vmatprep.subr.bf16.mxu0 0
        %2517 = vmatpush1.bf16.msra.mxu0 0
        %2518 = vmatprep.subr.bf16.mxu0 0
        %2519 = vmatpush1.bf16.msra.mxu0 0
        %2520 = vmatprep.subr.bf16.mxu0 0
        %2521 = vmatpush1.bf16.msra.mxu0 0
        %2522 = vmatprep.subr.bf16.mxu0 0
        %2523 = vmatpush1.bf16.msra.mxu0 0
        %2524 = vmatprep.subr.bf16.mxu0 0
        %2525 = vmatpush1.bf16.msra.mxu0 0
        %2526 = vmatprep.subr.bf16.mxu0 0
        %2527 = vmatpush1.bf16.msra.mxu0 0
        %2528 = vmatprep.mubr.bf16.mxu0 0
        %2529 = vmatmul.mubr.bf16.gmra.mrb[0].mxu0 %v2494
        %v2530 = vpop.f32.mrb[0].mxu0
        %v2531 = vadd.f32 0.0, %v2530
        %v2532 = vpop.f32.mrb[0].mxu0
        %v2533 = vpop.f32.mrb[0].mxu0
        %v2534 = vpop.f32.mrb[0].mxu0
        %2535 = vdwg.mxu0
        %v2537 = vsel %vm2358, %v2406, 0
        %2539 = vmatprep.subr.bf16.mxu0 0
        %2540 = vmatpush1.bf16.msra.mxu0 %v2167
        %2541 = vmatprep.subr.bf16.mxu0 0
        %2542 = vmatpush1.bf16.msra.mxu0 0
        %2543 = vmatprep.subr.bf16.mxu0 0
        %2544 = vmatpush1.bf16.msra.mxu0 0
        %2545 = vmatprep.subr.bf16.mxu0 0
        %2546 = vmatpush1.bf16.msra.mxu0 0
        %2547 = vmatprep.subr.bf16.mxu0 0
        %2548 = vmatpush1.bf16.msra.mxu0 0
        %2549 = vmatprep.subr.bf16.mxu0 0
        %2550 = vmatpush1.bf16.msra.mxu0 0
        %2551 = vmatprep.subr.bf16.mxu0 0
        %2552 = vmatpush1.bf16.msra.mxu0 0
        %2553 = vmatprep.subr.bf16.mxu0 0
        %2554 = vmatpush1.bf16.msra.mxu0 0
        %2555 = vmatprep.subr.bf16.mxu0 0
        %2556 = vmatpush1.bf16.msra.mxu0 0
        %2557 = vmatprep.subr.bf16.mxu0 0
        %2558 = vmatpush1.bf16.msra.mxu0 0
        %2559 = vmatprep.subr.bf16.mxu0 0
        %2560 = vmatpush1.bf16.msra.mxu0 0
        %2561 = vmatprep.subr.bf16.mxu0 0
        %2562 = vmatpush1.bf16.msra.mxu0 0
        %2563 = vmatprep.subr.bf16.mxu0 0
        %2564 = vmatpush1.bf16.msra.mxu0 0
        %2565 = vmatprep.subr.bf16.mxu0 0
        %2566 = vmatpush1.bf16.msra.mxu0 0
        %2567 = vmatprep.subr.bf16.mxu0 0
        %2568 = vmatpush1.bf16.msra.mxu0 0
        %2569 = vmatprep.subr.bf16.mxu0 0
        %2570 = vmatpush1.bf16.msra.mxu0 0
        %2571 = vmatprep.mubr.bf16.mxu0 0
        %2572 = vmatmul.mubr.bf16.gmra.mrb[0].mxu0 %v2537
        %v2573 = vpop.f32.mrb[0].mxu0
        %v2574 = vadd.f32 0.0, %v2573
        %v2575 = vpop.f32.mrb[0].mxu0
        %v2576 = vpop.f32.mrb[0].mxu0
        %v2577 = vpop.f32.mrb[0].mxu0
        %2578 = vdwg.mxu0
        %2580 = vrot.lane.b32.xlu0 %v2488, 32
        %v2581 = vpop.permute.xlu0 %2580
        %2584 = vrot.lane.b32.xlu0 %v2531, 64
        %v2585 = vpop.permute.xlu0 %2584
        %2588 = vrot.lane.b32.xlu0 %v2574, 96
        %v2589 = vpop.permute.xlu0 %2588
        %v2591 = vsel %vm1252, %v2445, %v2581
        %v2592 = vsel %vm1684, %v2591, %v2585
        %v2593 = vsel %vm1686, %v2592, %v2589
        %v2594 = vpack.c.bf16 %v2593, %v2593
        %v2595 = vld [vmem:[#allocation12] sm:$0xf]
        %v2596 = vld [vmem:[#allocation12 + $0x4] sm:$0xf]
        %v2597 = vld [vmem:[#allocation12 + $0x8] sm:$0xf]
        %v2598 = vld [vmem:[#allocation12 + $0xc] sm:$0xf]
        %v2599 = vld [vmem:[#allocation12 + $0x10] sm:$0xf]
        %v2600 = vld [vmem:[#allocation12 + $0x14] sm:$0xf]
        %v2601 = vld [vmem:[#allocation12 + $0x18] sm:$0xf]
        %v2602 = vld [vmem:[#allocation12 + $0x1c] sm:$0xf]
        %v2603 = vld [vmem:[#allocation12 + $0x20] sm:$0xf]
        %v2604 = vld [vmem:[#allocation12 + $0x24] sm:$0xf]
        %v2605 = vld [vmem:[#allocation12 + $0x28] sm:$0xf]
        %v2606 = vld [vmem:[#allocation12 + $0x2c] sm:$0xf]
        %v2607 = vld [vmem:[#allocation12 + $0x30] sm:$0xf]
        %v2608 = vld [vmem:[#allocation12 + $0x34] sm:$0xf]
        %v2609 = vld [vmem:[#allocation12 + $0x38] sm:$0xf]
        %v2610 = vld [vmem:[#allocation12 + $0x3c] sm:$0xf]
        %v2627 = vunpack.c.l.b16 %v2595
        %v2628 = vunpack.c.l.b16 %v2596
        %v2629 = vunpack.c.l.b16 %v2597
        %v2630 = vunpack.c.l.b16 %v2598
        %v2631 = vunpack.c.l.b16 %v2599
        %v2632 = vunpack.c.l.b16 %v2600
        %v2633 = vunpack.c.l.b16 %v2601
        %v2634 = vunpack.c.l.b16 %v2602
        %v2635 = vunpack.c.l.b16 %v2603
        %v2636 = vunpack.c.l.b16 %v2604
        %v2637 = vunpack.c.l.b16 %v2605
        %v2638 = vunpack.c.l.b16 %v2606
        %v2639 = vunpack.c.l.b16 %v2607
        %v2640 = vunpack.c.l.b16 %v2608
        %v2641 = vunpack.c.l.b16 %v2609
        %v2642 = vunpack.c.l.b16 %v2610
        %v2643 = vpack.c.b16 %v2628, %v2627
        %v2644 = vpack.c.b16 %v2630, %v2629
        %v2645 = vpack.c.b16 %v2632, %v2631
        %v2646 = vpack.c.b16 %v2634, %v2633
        %v2647 = vpack.c.b16 %v2636, %v2635
        %v2648 = vpack.c.b16 %v2638, %v2637
        %v2649 = vpack.c.b16 %v2640, %v2639
        %v2650 = vpack.c.b16 %v2642, %v2641
        %2659 = vmatprep.subr.bf16.mxu0 0
        %2660 = vmatpush1.bf16.msra.mxu0 %v2643
        %2661 = vmatprep.subr.bf16.mxu0 0
        %2662 = vmatpush1.bf16.msra.mxu0 %v2644
        %2663 = vmatprep.subr.bf16.mxu0 0
        %2664 = vmatpush1.bf16.msra.mxu0 %v2645
        %2665 = vmatprep.subr.bf16.mxu0 0
        %2666 = vmatpush1.bf16.msra.mxu0 %v2646
        %2667 = vmatprep.subr.bf16.mxu0 0
        %2668 = vmatpush1.bf16.msra.mxu0 %v2647
        %2669 = vmatprep.subr.bf16.mxu0 0
        %2670 = vmatpush1.bf16.msra.mxu0 %v2648
        %2671 = vmatprep.subr.bf16.mxu0 0
        %2672 = vmatpush1.bf16.msra.mxu0 %v2649
        %2673 = vmatprep.subr.bf16.mxu0 0
        %2674 = vmatpush1.bf16.msra.mxu0 %v2650
        %2675 = vmatprep.subr.bf16.mxu0 0
        %2676 = vmatpush1.bf16.msra.mxu0 0
        %2677 = vmatprep.subr.bf16.mxu0 0
        %2678 = vmatpush1.bf16.msra.mxu0 0
        %2679 = vmatprep.subr.bf16.mxu0 0
        %2680 = vmatpush1.bf16.msra.mxu0 0
        %2681 = vmatprep.subr.bf16.mxu0 0
        %2682 = vmatpush1.bf16.msra.mxu0 0
        %2683 = vmatprep.subr.bf16.mxu0 0
        %2684 = vmatpush1.bf16.msra.mxu0 0
        %2685 = vmatprep.subr.bf16.mxu0 0
        %2686 = vmatpush1.bf16.msra.mxu0 0
        %2687 = vmatprep.subr.bf16.mxu0 0
        %2688 = vmatpush1.bf16.msra.mxu0 0
        %2689 = vmatprep.subr.bf16.mxu0 0
        %2690 = vmatpush1.bf16.msra.mxu0 0
        %2691 = vmatprep.mubr.bf16.mxu0 0
        %2692 = vmatmul.mubr.bf16.gmra.mrb[0].mxu0 %v2594
        %v2693 = vpop.f32.mrb[0].mxu0
        %v2694 = vadd.f32 0.0, %v2693
        %v2695 = vpop.f32.mrb[0].mxu0
        %v2696 = vpop.f32.mrb[0].mxu0
        %v2697 = vpop.f32.mrb[0].mxu0
        %2698 = vdwg.mxu0
        %v2699 = vadd.f32 %v1801, %v2694
        %v2700 = vld [vmem:[%s13] sm:$0x1]
        %v2702 = vlaneseq
        %v2703 = vshrl.u32 %v2702, 7
        %v2704 = vsub.s32 0, %v2703
        %v2705 = vrot.slane %v2700, %v2704
        %v2707 = vadd.f32 %v2699, %v2705
        %2708 = vadd.xlane.f32.xlu0 %v2707
        %v2709 = vpop.xlane.xlu0 %2708
        %v2710 = vmul.f32 %v2709, %v919
        %v2711 = vsub.f32 %v2707, %v2710
        %v2712 = vmul.f32 %v2711, %v2711
        %2713 = vadd.xlane.f32.xlu0 %v2712
        %v2714 = vpop.xlane.xlu0 %2713
        %v2715 = vmul.f32 %v2714, 0.007874016
        %v2717 = vlaneseq
        %v2718 = vshrl.u32 %v2717, 7
        %v2719 = vsub.s32 0, %v2718
        %v2720 = vrot.slane %v906, %v2719
        %v2722 = vmul.f32 %v2720, %v2711
        %v2723 = vrsqrt.pop %v2715
        %v2724 = vmul.f32 %v2715, %v2723
        %vm2725 = vcmp.eq.f32.partialorder %v2715, inf
        %v2726 = vsel %vm2725, %v2715, %v2724
        %vm2727 = vcmp.eq.f32.partialorder %v2715, 0.0
        %v2728 = vand.u32 %v2715, 2147483648
        %v2729 = vsel %vm2727, %v2728, %v2726
        %v2730 = vadd.f32 %v2729, 1e-06
        %v2731 = vrcp.pop %v2730
        %v2732 = vmul.f32 %v2722, %v2731
        %v2734 = vlaneseq
        %v2735 = vshrl.u32 %v2734, 7
        %v2736 = vsub.s32 0, %v2735
        %v2737 = vrot.slane %v912, %v2736
        %v2739 = vadd.f32 %v2732, %v2737
        %v2740 = vpack.c.bf16 %v2739, %v2739
        %v2741 = vld [vmem:[#allocation14] sm:$0xff]
        %v2742 = vld [vmem:[#allocation14 + $0x8] sm:$0xff]
        %v2743 = vld [vmem:[#allocation14 + $0x10] sm:$0xff]
        %v2744 = vld [vmem:[#allocation14 + $0x18] sm:$0xff]
        %v2745 = vld [vmem:[#allocation14 + $0x20] sm:$0xff]
        %v2746 = vld [vmem:[#allocation14 + $0x28] sm:$0xff]
        %v2747 = vld [vmem:[#allocation14 + $0x30] sm:$0xff]
        %v2748 = vld [vmem:[#allocation14 + $0x38] sm:$0xff]
        %v2749 = vld [vmem:[#allocation14 + $0x40] sm:$0xff]
        %v2750 = vld [vmem:[#allocation14 + $0x48] sm:$0xff]
        %v2751 = vld [vmem:[#allocation14 + $0x50] sm:$0xff]
        %v2752 = vld [vmem:[#allocation14 + $0x58] sm:$0xff]
        %v2753 = vld [vmem:[#allocation14 + $0x60] sm:$0xff]
        %v2754 = vld [vmem:[#allocation14 + $0x68] sm:$0xff]
        %v2755 = vld [vmem:[#allocation14 + $0x70] sm:$0xff]
        %v2756 = vld [vmem:[#allocation14 + $0x78] sm:$0xff]
        %v2757 = vld [vmem:[%s15] sm:$0x3]
        %v2759 = vlaneseq
        %v2760 = vshrl.u32 %v2759, 7
        %v2761 = vsub.s32 0, %v2760
        %v2762 = vrot.slane %v2757, %v2761
        %v2763 = vlaneseq
        %v2764 = vshrl.u32 %v2763, 7
        %v2765 = vsub.s32 1, %v2764
        %v2766 = vrot.slane %v2757, %v2765
        %v2785 = vunpack.c.l.b16 %v2741
        %v2786 = vunpack.c.h.b16 %v2741
        %v2787 = vunpack.c.l.b16 %v2742
        %v2788 = vunpack.c.h.b16 %v2742
        %v2789 = vunpack.c.l.b16 %v2743
        %v2790 = vunpack.c.h.b16 %v2743
        %v2791 = vunpack.c.l.b16 %v2744
        %v2792 = vunpack.c.h.b16 %v2744
        %v2793 = vunpack.c.l.b16 %v2745
        %v2794 = vunpack.c.h.b16 %v2745
        %v2795 = vunpack.c.l.b16 %v2746
        %v2796 = vunpack.c.h.b16 %v2746
        %v2797 = vunpack.c.l.b16 %v2747
        %v2798 = vunpack.c.h.b16 %v2747
        %v2799 = vunpack.c.l.b16 %v2748
        %v2800 = vunpack.c.h.b16 %v2748
        %v2801 = vunpack.c.l.b16 %v2749
        %v2802 = vunpack.c.h.b16 %v2749
        %v2803 = vunpack.c.l.b16 %v2750
        %v2804 = vunpack.c.h.b16 %v2750
        %v2805 = vunpack.c.l.b16 %v2751
        %v2806 = vunpack.c.h.b16 %v2751
        %v2807 = vunpack.c.l.b16 %v2752
        %v2808 = vunpack.c.h.b16 %v2752
        %v2809 = vunpack.c.l.b16 %v2753
        %v2810 = vunpack.c.h.b16 %v2753
        %v2811 = vunpack.c.l.b16 %v2754
        %v2812 = vunpack.c.h.b16 %v2754
        %v2813 = vunpack.c.l.b16 %v2755
        %v2814 = vunpack.c.h.b16 %v2755
        %v2815 = vunpack.c.l.b16 %v2756
        %v2816 = vunpack.c.h.b16 %v2756
        %v2817 = vpack.c.b16 %v2787, %v2785
        %v2818 = vpack.c.b16 %v2788, %v2786
        %v2819 = vpack.c.b16 %v2791, %v2789
        %v2820 = vpack.c.b16 %v2792, %v2790
        %v2821 = vpack.c.b16 %v2795, %v2793
        %v2822 = vpack.c.b16 %v2796, %v2794
        %v2823 = vpack.c.b16 %v2799, %v2797
        %v2824 = vpack.c.b16 %v2800, %v2798
        %v2825 = vpack.c.b16 %v2803, %v2801
        %v2826 = vpack.c.b16 %v2804, %v2802
        %v2827 = vpack.c.b16 %v2807, %v2805
        %v2828 = vpack.c.b16 %v2808, %v2806
        %v2829 = vpack.c.b16 %v2811, %v2809
        %v2830 = vpack.c.b16 %v2812, %v2810
        %v2831 = vpack.c.b16 %v2815, %v2813
        %v2832 = vpack.c.b16 %v2816, %v2814
        %2849 = vmatprep.subr.bf16.mxu0 %v2818
        %2850 = vmatpush1.bf16.msra.mxu0 %v2817
        %2851 = vmatprep.subr.bf16.mxu0 %v2820
        %2852 = vmatpush1.bf16.msra.mxu0 %v2819
        %2853 = vmatprep.subr.bf16.mxu0 %v2822
        %2854 = vmatpush1.bf16.msra.mxu0 %v2821
        %2855 = vmatprep.subr.bf16.mxu0 %v2824
        %2856 = vmatpush1.bf16.msra.mxu0 %v2823
        %2857 = vmatprep.subr.bf16.mxu0 %v2826
        %2858 = vmatpush1.bf16.msra.mxu0 %v2825
        %2859 = vmatprep.subr.bf16.mxu0 %v2828
        %2860 = vmatpush1.bf16.msra.mxu0 %v2827
        %2861 = vmatprep.subr.bf16.mxu0 %v2830
        %2862 = vmatpush1.bf16.msra.mxu0 %v2829
        %2863 = vmatprep.subr.bf16.mxu0 %v2832
        %2864 = vmatpush1.bf16.msra.mxu0 %v2831
        %2865 = vmatprep.subr.bf16.mxu0 0
        %2866 = vmatpush1.bf16.msra.mxu0 0
        %2867 = vmatprep.subr.bf16.mxu0 0
        %2868 = vmatpush1.bf16.msra.mxu0 0
        %2869 = vmatprep.subr.bf16.mxu0 0
        %2870 = vmatpush1.bf16.msra.mxu0 0
        %2871 = vmatprep.subr.bf16.mxu0 0
        %2872 = vmatpush1.bf16.msra.mxu0 0
        %2873 = vmatprep.subr.bf16.mxu0 0
        %2874 = vmatpush1.bf16.msra.mxu0 0
        %2875 = vmatprep.subr.bf16.mxu0 0
        %2876 = vmatpush1.bf16.msra.mxu0 0
        %2877 = vmatprep.subr.bf16.mxu0 0
        %2878 = vmatpush1.bf16.msra.mxu0 0
        %2879 = vmatprep.subr.bf16.mxu0 0
        %2880 = vmatpush1.bf16.msra.mxu0 0
        %2881 = vmatprep.mubr.bf16.mxu0 0
        %2882 = vmatmul.mubr.bf16.gmra.mrb[0].mxu0 %v2740
        %v2883 = vpop.f32.mrb[0].mxu0
        %v2884 = vadd.f32 %v2762, %v2883
        %v2885 = vpop.f32.mrb[0].mxu0
        %v2886 = vadd.f32 %v2766, %v2885
        %v2887 = vpop.f32.mrb[0].mxu0
        %v2888 = vpop.f32.mrb[0].mxu0
        %2889 = vdwg.mxu0
        %v2890 = vmax.f32 %v2884, 0.0
        %v2891 = vmax.f32 %v2886, 0.0
        %v2892 = vpack.c.bf16 %v2890, %v2890
        %v2893 = vpack.c.bf16 %v2891, %v2891
        %v2894 = vld [vmem:[#allocation15] sm:$0xf]
        %v2895 = vld [vmem:[#allocation15 + $0x4] sm:$0xf]
        %v2896 = vld [vmem:[#allocation15 + $0x8] sm:$0xf]
        %v2897 = vld [vmem:[#allocation15 + $0xc] sm:$0xf]
        %v2898 = vld [vmem:[#allocation15 + $0x10] sm:$0xf]
        %v2899 = vld [vmem:[#allocation15 + $0x14] sm:$0xf]
        %v2900 = vld [vmem:[#allocation15 + $0x18] sm:$0xf]
        %v2901 = vld [vmem:[#allocation15 + $0x1c] sm:$0xf]
        %v2902 = vld [vmem:[#allocation15 + $0x20] sm:$0xf]
        %v2903 = vld [vmem:[#allocation15 + $0x24] sm:$0xf]
        %v2904 = vld [vmem:[#allocation15 + $0x28] sm:$0xf]
        %v2905 = vld [vmem:[#allocation15 + $0x2c] sm:$0xf]
        %v2906 = vld [vmem:[#allocation15 + $0x30] sm:$0xf]
        %v2907 = vld [vmem:[#allocation15 + $0x34] sm:$0xf]
        %v2908 = vld [vmem:[#allocation15 + $0x38] sm:$0xf]
        %v2909 = vld [vmem:[#allocation15 + $0x3c] sm:$0xf]
        %v2910 = vld [vmem:[#allocation15 + $0x40] sm:$0xf]
        %v2911 = vld [vmem:[#allocation15 + $0x44] sm:$0xf]
        %v2912 = vld [vmem:[#allocation15 + $0x48] sm:$0xf]
        %v2913 = vld [vmem:[#allocation15 + $0x4c] sm:$0xf]
        %v2914 = vld [vmem:[#allocation15 + $0x50] sm:$0xf]
        %v2915 = vld [vmem:[#allocation15 + $0x54] sm:$0xf]
        %v2916 = vld [vmem:[#allocation15 + $0x58] sm:$0xf]
        %v2917 = vld [vmem:[#allocation15 + $0x5c] sm:$0xf]
        %v2918 = vld [vmem:[#allocation15 + $0x60] sm:$0xf]
        %v2919 = vld [vmem:[#allocation15 + $0x64] sm:$0xf]
        %v2920 = vld [vmem:[#allocation15 + $0x68] sm:$0xf]
        %v2921 = vld [vmem:[#allocation15 + $0x6c] sm:$0xf]
        %v2922 = vld [vmem:[#allocation15 + $0x70] sm:$0xf]
        %v2923 = vld [vmem:[#allocation15 + $0x74] sm:$0xf]
        %v2924 = vld [vmem:[#allocation15 + $0x78] sm:$0xf]
        %v2925 = vld [vmem:[#allocation15 + $0x7c] sm:$0xf]
        %v2958 = vunpack.c.l.b16 %v2894
        %v2959 = vunpack.c.l.b16 %v2895
        %v2960 = vunpack.c.l.b16 %v2896
        %v2961 = vunpack.c.l.b16 %v2897
        %v2962 = vunpack.c.l.b16 %v2898
        %v2963 = vunpack.c.l.b16 %v2899
        %v2964 = vunpack.c.l.b16 %v2900
        %v2965 = vunpack.c.l.b16 %v2901
        %v2966 = vunpack.c.l.b16 %v2902
        %v2967 = vunpack.c.l.b16 %v2903
        %v2968 = vunpack.c.l.b16 %v2904
        %v2969 = vunpack.c.l.b16 %v2905
        %v2970 = vunpack.c.l.b16 %v2906
        %v2971 = vunpack.c.l.b16 %v2907
        %v2972 = vunpack.c.l.b16 %v2908
        %v2973 = vunpack.c.l.b16 %v2909
        %v2974 = vunpack.c.l.b16 %v2910
        %v2975 = vunpack.c.l.b16 %v2911
        %v2976 = vunpack.c.l.b16 %v2912
        %v2977 = vunpack.c.l.b16 %v2913
        %v2978 = vunpack.c.l.b16 %v2914
        %v2979 = vunpack.c.l.b16 %v2915
        %v2980 = vunpack.c.l.b16 %v2916
        %v2981 = vunpack.c.l.b16 %v2917
        %v2982 = vunpack.c.l.b16 %v2918
        %v2983 = vunpack.c.l.b16 %v2919
        %v2984 = vunpack.c.l.b16 %v2920
        %v2985 = vunpack.c.l.b16 %v2921
        %v2986 = vunpack.c.l.b16 %v2922
        %v2987 = vunpack.c.l.b16 %v2923
        %v2988 = vunpack.c.l.b16 %v2924
        %v2989 = vunpack.c.l.b16 %v2925
        %v2990 = vpack.c.b16 %v2959, %v2958
        %v2991 = vpack.c.b16 %v2961, %v2960
        %v2992 = vpack.c.b16 %v2963, %v2962
        %v2993 = vpack.c.b16 %v2965, %v2964
        %v2994 = vpack.c.b16 %v2967, %v2966
        %v2995 = vpack.c.b16 %v2969, %v2968
        %v2996 = vpack.c.b16 %v2971, %v2970
        %v2997 = vpack.c.b16 %v2973, %v2972
        %v2998 = vpack.c.b16 %v2975, %v2974
        %v2999 = vpack.c.b16 %v2977, %v2976
        %v3000 = vpack.c.b16 %v2979, %v2978
        %v3001 = vpack.c.b16 %v2981, %v2980
        %v3002 = vpack.c.b16 %v2983, %v2982
        %v3003 = vpack.c.b16 %v2985, %v2984
        %v3004 = vpack.c.b16 %v2987, %v2986
        %v3005 = vpack.c.b16 %v2989, %v2988
        %3022 = vmatprep.subr.bf16.mxu0 0
        %3023 = vmatpush1.bf16.msra.mxu0 %v2990
        %3024 = vmatprep.subr.bf16.mxu0 0
        %3025 = vmatpush1.bf16.msra.mxu0 %v2991
        %3026 = vmatprep.subr.bf16.mxu0 0
        %3027 = vmatpush1.bf16.msra.mxu0 %v2992
        %3028 = vmatprep.subr.bf16.mxu0 0
        %3029 = vmatpush1.bf16.msra.mxu0 %v2993
        %3030 = vmatprep.subr.bf16.mxu0 0
        %3031 = vmatpush1.bf16.msra.mxu0 %v2994
        %3032 = vmatprep.subr.bf16.mxu0 0
        %3033 = vmatpush1.bf16.msra.mxu0 %v2995
        %3034 = vmatprep.subr.bf16.mxu0 0
        %3035 = vmatpush1.bf16.msra.mxu0 %v2996
        %3036 = vmatprep.subr.bf16.mxu0 0
        %3037 = vmatpush1.bf16.msra.mxu0 %v2997
        %3038 = vmatprep.subr.bf16.mxu0 0
        %3039 = vmatpush1.bf16.msra.mxu0 %v2998
        %3040 = vmatprep.subr.bf16.mxu0 0
        %3041 = vmatpush1.bf16.msra.mxu0 %v2999
        %3042 = vmatprep.subr.bf16.mxu0 0
        %3043 = vmatpush1.bf16.msra.mxu0 %v3000
        %3044 = vmatprep.subr.bf16.mxu0 0
        %3045 = vmatpush1.bf16.msra.mxu0 %v3001
        %3046 = vmatprep.subr.bf16.mxu0 0
        %3047 = vmatpush1.bf16.msra.mxu0 %v3002
        %3048 = vmatprep.subr.bf16.mxu0 0
        %3049 = vmatpush1.bf16.msra.mxu0 %v3003
        %3050 = vmatprep.subr.bf16.mxu0 0
        %3051 = vmatpush1.bf16.msra.mxu0 %v3004
        %3052 = vmatprep.subr.bf16.mxu0 0
        %3053 = vmatpush1.bf16.msra.mxu0 %v3005
        %3054 = vmatprep.mubr.bf16.mxu0 %v2893
        %3055 = vmatmul.mubr.bf16.gmra.mrb[0].mxu0 %v2892
        %v3056 = vpop.f32.mrb[0].mxu0
        %v3057 = vadd.f32 0.0, %v3056
        %v3058 = vpop.f32.mrb[0].mxu0
        %v3059 = vpop.f32.mrb[0].mxu0
        %v3060 = vpop.f32.mrb[0].mxu0
        %3061 = vdwg.mxu0
        %v3062 = vadd.f32 %v2707, %v3057
        %v3063 = vld [vmem:[%s17] sm:$0x1]
        %v3065 = vlaneseq
        %v3066 = vshrl.u32 %v3065, 7
        %v3067 = vsub.s32 0, %v3066
        %v3068 = vrot.slane %v3063, %v3067
        %v3070 = vadd.f32 %v3062, %v3068
        %3071 = vadd.xlane.f32.xlu0 %v3070
        %v3072 = vpop.xlane.xlu0 %3071
        %v3073 = vmul.f32 %v3072, %v919
        %v3074 = vsub.f32 %v3070, %v3073
        %v3075 = vmul.f32 %v3074, %v3074
        %3076 = vadd.xlane.f32.xlu0 %v3075
        %v3077 = vpop.xlane.xlu0 %3076
        %v3078 = vmul.f32 %v3077, 0.007874016
        %v3080 = vlaneseq
        %v3081 = vshrl.u32 %v3080, 7
        %v3082 = vsub.s32 0, %v3081
        %v3083 = vrot.slane %v907, %v3082
        %v3085 = vmul.f32 %v3083, %v3074
        %v3086 = vrsqrt.pop %v3078
        %v3087 = vmul.f32 %v3078, %v3086
        %vm3088 = vcmp.eq.f32.partialorder %v3078, inf
        %v3089 = vsel %vm3088, %v3078, %v3087
        %vm3090 = vcmp.eq.f32.partialorder %v3078, 0.0
        %v3091 = vand.u32 %v3078, 2147483648
        %v3092 = vsel %vm3090, %v3091, %v3089
        %v3093 = vadd.f32 %v3092, 1e-06
        %v3094 = vrcp.pop %v3093
        %v3095 = vmul.f32 %v3085, %v3094
        %v3097 = vlaneseq
        %v3098 = vshrl.u32 %v3097, 7
        %v3099 = vsub.s32 0, %v3098
        %v3100 = vrot.slane %v913, %v3099
        %v3102 = vadd.f32 %v3095, %v3100
        %v3103 = vpack.c.bf16 %v3102, %v3102
        %s3104 = scalar_lea.vmem [#allocation3], 192
        %v3105 = vld [vmem:[%s3104] sm:$0xff]
        %v3106 = vld [vmem:[%s3104 + $0x8] sm:$0xf]
        %v3107 = vld [vmem:[%s3104 + $0xc] sm:$0xff]
        %v3108 = vld [vmem:[%s3104 + $0x14] sm:$0xf]
        %v3109 = vld [vmem:[%s3104 + $0x18] sm:$0xff]
        %v3110 = vld [vmem:[%s3104 + $0x20] sm:$0xf]
        %v3111 = vld [vmem:[%s3104 + $0x24] sm:$0xff]
        %v3112 = vld [vmem:[%s3104 + $0x2c] sm:$0xf]
        %v3113 = vld [vmem:[%s3104 + $0x30] sm:$0xff]
        %v3114 = vld [vmem:[%s3104 + $0x38] sm:$0xf]
        %v3115 = vld [vmem:[%s3104 + $0x3c] sm:$0xff]
        %v3116 = vld [vmem:[%s3104 + $0x44] sm:$0xf]
        %v3117 = vld [vmem:[%s3104 + $0x48] sm:$0xff]
        %v3118 = vld [vmem:[%s3104 + $0x50] sm:$0xf]
        %v3119 = vld [vmem:[%s3104 + $0x54] sm:$0xff]
        %v3120 = vld [vmem:[%s3104 + $0x5c] sm:$0xf]
        %v3121 = vld [vmem:[%s3104 + $0x60] sm:$0xff]
        %v3122 = vld [vmem:[%s3104 + $0x68] sm:$0xf]
        %v3123 = vld [vmem:[%s3104 + $0x6c] sm:$0xff]
        %v3124 = vld [vmem:[%s3104 + $0x74] sm:$0xf]
        %v3125 = vld [vmem:[%s3104 + $0x78] sm:$0xff]
        %v3126 = vld [vmem:[%s3104 + $0x80] sm:$0xf]
        %v3127 = vld [vmem:[%s3104 + $0x84] sm:$0xff]
        %v3128 = vld [vmem:[%s3104 + $0x8c] sm:$0xf]
        %v3129 = vld [vmem:[%s3104 + $0x90] sm:$0xff]
        %v3130 = vld [vmem:[%s3104 + $0x98] sm:$0xf]
        %v3131 = vld [vmem:[%s3104 + $0x9c] sm:$0xff]
        %v3132 = vld [vmem:[%s3104 + $0xa4] sm:$0xf]
        %v3133 = vld [vmem:[%s3104 + $0xa8] sm:$0xff]
        %v3134 = vld [vmem:[%s3104 + $0xb0] sm:$0xf]
        %v3135 = vld [vmem:[%s3104 + $0xb4] sm:$0xff]
        %v3136 = vld [vmem:[%s3104 + $0xbc] sm:$0xf]
        %s3137 = scalar_lea.vmem %s5, 3
        %v3138 = vld [vmem:[%s3137] sm:$0x7]
        %v3140 = vlaneseq
        %v3141 = vshrl.u32 %v3140, 7
        %v3142 = vsub.s32 0, %v3141
        %v3143 = vrot.slane %v3138, %v3142
        %v3144 = vlaneseq
        %v3145 = vshrl.u32 %v3144, 7
        %v3146 = vsub.s32 1, %v3145
        %v3147 = vrot.slane %v3138, %v3146
        %v3148 = vlaneseq
        %v3149 = vshrl.u32 %v3148, 7
        %v3150 = vsub.s32 2, %v3149
        %v3151 = vrot.slane %v3138, %v3150
        %v3187 = vunpack.c.l.b16 %v3105
        %v3188 = vunpack.c.h.b16 %v3105
        %v3189 = vunpack.c.l.b16 %v3106
        %v3190 = vunpack.c.l.b16 %v3107
        %v3191 = vunpack.c.h.b16 %v3107
        %v3192 = vunpack.c.l.b16 %v3108
        %v3193 = vunpack.c.l.b16 %v3109
        %v3194 = vunpack.c.h.b16 %v3109
        %v3195 = vunpack.c.l.b16 %v3110
        %v3196 = vunpack.c.l.b16 %v3111
        %v3197 = vunpack.c.h.b16 %v3111
        %v3198 = vunpack.c.l.b16 %v3112
        %v3199 = vunpack.c.l.b16 %v3113
        %v3200 = vunpack.c.h.b16 %v3113
        %v3201 = vunpack.c.l.b16 %v3114
        %v3202 = vunpack.c.l.b16 %v3115
        %v3203 = vunpack.c.h.b16 %v3115
        %v3204 = vunpack.c.l.b16 %v3116
        %v3205 = vunpack.c.l.b16 %v3117
        %v3206 = vunpack.c.h.b16 %v3117
        %v3207 = vunpack.c.l.b16 %v3118
        %v3208 = vunpack.c.l.b16 %v3119
        %v3209 = vunpack.c.h.b16 %v3119
        %v3210 = vunpack.c.l.b16 %v3120
        %v3211 = vunpack.c.l.b16 %v3121
        %v3212 = vunpack.c.h.b16 %v3121
        %v3213 = vunpack.c.l.b16 %v3122
        %v3214 = vunpack.c.l.b16 %v3123
        %v3215 = vunpack.c.h.b16 %v3123
        %v3216 = vunpack.c.l.b16 %v3124
        %v3217 = vunpack.c.l.b16 %v3125
        %v3218 = vunpack.c.h.b16 %v3125
        %v3219 = vunpack.c.l.b16 %v3126
        %v3220 = vunpack.c.l.b16 %v3127
        %v3221 = vunpack.c.h.b16 %v3127
        %v3222 = vunpack.c.l.b16 %v3128
        %v3223 = vunpack.c.l.b16 %v3129
        %v3224 = vunpack.c.h.b16 %v3129
        %v3225 = vunpack.c.l.b16 %v3130
        %v3226 = vunpack.c.l.b16 %v3131
        %v3227 = vunpack.c.h.b16 %v3131
        %v3228 = vunpack.c.l.b16 %v3132
        %v3229 = vunpack.c.l.b16 %v3133
        %v3230 = vunpack.c.h.b16 %v3133
        %v3231 = vunpack.c.l.b16 %v3134
        %v3232 = vunpack.c.l.b16 %v3135
        %v3233 = vunpack.c.h.b16 %v3135
        %v3234 = vunpack.c.l.b16 %v3136
        %v3235 = vpack.c.b16 %v3190, %v3187
        %v3236 = vpack.c.b16 %v3191, %v3188
        %v3237 = vpack.c.b16 %v3192, %v3189
        %v3238 = vpack.c.b16 %v3196, %v3193
        %v3239 = vpack.c.b16 %v3197, %v3194
        %v3240 = vpack.c.b16 %v3198, %v3195
        %v3241 = vpack.c.b16 %v3202, %v3199
        %v3242 = vpack.c.b16 %v3203, %v3200
        %v3243 = vpack.c.b16 %v3204, %v3201
        %v3244 = vpack.c.b16 %v3208, %v3205
        %v3245 = vpack.c.b16 %v3209, %v3206
        %v3246 = vpack.c.b16 %v3210, %v3207
        %v3247 = vpack.c.b16 %v3214, %v3211
        %v3248 = vpack.c.b16 %v3215, %v3212
        %v3249 = vpack.c.b16 %v3216, %v3213
        %v3250 = vpack.c.b16 %v3220, %v3217
        %v3251 = vpack.c.b16 %v3221, %v3218
        %v3252 = vpack.c.b16 %v3222, %v3219
        %v3253 = vpack.c.b16 %v3226, %v3223
        %v3254 = vpack.c.b16 %v3227, %v3224
        %v3255 = vpack.c.b16 %v3228, %v3225
        %v3256 = vpack.c.b16 %v3232, %v3229
        %v3257 = vpack.c.b16 %v3233, %v3230
        %v3258 = vpack.c.b16 %v3234, %v3231
        %3283 = vmatprep.subr.bf16.mxu0 %v3236
        %3284 = vmatpush1.bf16.msra.mxu0 %v3235
        %3285 = vmatprep.subr.bf16.mxu0 %v3239
        %3286 = vmatpush1.bf16.msra.mxu0 %v3238
        %3287 = vmatprep.subr.bf16.mxu0 %v3242
        %3288 = vmatpush1.bf16.msra.mxu0 %v3241
        %3289 = vmatprep.subr.bf16.mxu0 %v3245
        %3290 = vmatpush1.bf16.msra.mxu0 %v3244
        %3291 = vmatprep.subr.bf16.mxu0 %v3248
        %3292 = vmatpush1.bf16.msra.mxu0 %v3247
        %3293 = vmatprep.subr.bf16.mxu0 %v3251
        %3294 = vmatpush1.bf16.msra.mxu0 %v3250
        %3295 = vmatprep.subr.bf16.mxu0 %v3254
        %3296 = vmatpush1.bf16.msra.mxu0 %v3253
        %3297 = vmatprep.subr.bf16.mxu0 %v3257
        %3298 = vmatpush1.bf16.msra.mxu0 %v3256
        %3299 = vmatprep.subr.bf16.mxu0 0
        %3300 = vmatpush1.bf16.msra.mxu0 0
        %3301 = vmatprep.subr.bf16.mxu0 0
        %3302 = vmatpush1.bf16.msra.mxu0 0
        %3303 = vmatprep.subr.bf16.mxu0 0
        %3304 = vmatpush1.bf16.msra.mxu0 0
        %3305 = vmatprep.subr.bf16.mxu0 0
        %3306 = vmatpush1.bf16.msra.mxu0 0
        %3307 = vmatprep.subr.bf16.mxu0 0
        %3308 = vmatpush1.bf16.msra.mxu0 0
        %3309 = vmatprep.subr.bf16.mxu0 0
        %3310 = vmatpush1.bf16.msra.mxu0 0
        %3311 = vmatprep.subr.bf16.mxu0 0
        %3312 = vmatpush1.bf16.msra.mxu0 0
        %3313 = vmatprep.subr.bf16.mxu0 0
        %3314 = vmatpush1.bf16.msra.mxu0 0
        %3315 = vmatprep.mubr.bf16.mxu0 0
        %3316 = vmatmul.mubr.bf16.gmra.mrb[0].mxu0 %v3103
        %v3317 = vpop.f32.mrb[0].mxu0
        %v3318 = vadd.f32 %v3143, %v3317
        %v3319 = vpop.f32.mrb[0].mxu0
        %v3320 = vadd.f32 %v3147, %v3319
        %v3321 = vpop.f32.mrb[0].mxu0
        %v3322 = vpop.f32.mrb[0].mxu0
        %3323 = vdwg.mxu0
        %3324 = vmatprep.subr.bf16.mxu0 0
        %3325 = vmatpush1.bf16.msra.mxu0 %v3237
        %3326 = vmatprep.subr.bf16.mxu0 0
        %3327 = vmatpush1.bf16.msra.mxu0 %v3240
        %3328 = vmatprep.subr.bf16.mxu0 0
        %3329 = vmatpush1.bf16.msra.mxu0 %v3243
        %3330 = vmatprep.subr.bf16.mxu0 0
        %3331 = vmatpush1.bf16.msra.mxu0 %v3246
        %3332 = vmatprep.subr.bf16.mxu0 0
        %3333 = vmatpush1.bf16.msra.mxu0 %v3249
        %3334 = vmatprep.subr.bf16.mxu0 0
        %3335 = vmatpush1.bf16.msra.mxu0 %v3252
        %3336 = vmatprep.subr.bf16.mxu0 0
        %3337 = vmatpush1.bf16.msra.mxu0 %v3255
        %3338 = vmatprep.subr.bf16.mxu0 0
        %3339 = vmatpush1.bf16.msra.mxu0 %v3258
        %3340 = vmatprep.subr.bf16.mxu0 0
        %3341 = vmatpush1.bf16.msra.mxu0 0
        %3342 = vmatprep.subr.bf16.mxu0 0
        %3343 = vmatpush1.bf16.msra.mxu0 0
        %3344 = vmatprep.subr.bf16.mxu0 0
        %3345 = vmatpush1.bf16.msra.mxu0 0
        %3346 = vmatprep.subr.bf16.mxu0 0
        %3347 = vmatpush1.bf16.msra.mxu0 0
        %3348 = vmatprep.subr.bf16.mxu0 0
        %3349 = vmatpush1.bf16.msra.mxu0 0
        %3350 = vmatprep.subr.bf16.mxu0 0
        %3351 = vmatpush1.bf16.msra.mxu0 0
        %3352 = vmatprep.subr.bf16.mxu0 0
        %3353 = vmatpush1.bf16.msra.mxu0 0
        %3354 = vmatprep.subr.bf16.mxu0 0
        %3355 = vmatpush1.bf16.msra.mxu0 0
        %3356 = vmatprep.mubr.bf16.mxu0 0
        %3357 = vmatmul.mubr.bf16.gmra.mrb[0].mxu0 %v3103
        %v3358 = vpop.f32.mrb[0].mxu0
        %v3359 = vadd.f32 %v3151, %v3358
        %v3360 = vpop.f32.mrb[0].mxu0
        %v3361 = vpop.f32.mrb[0].mxu0
        %v3362 = vpop.f32.mrb[0].mxu0
        %3363 = vdwg.mxu0
        %v3364 = vmul.f32 %v3318, 0.17677669
        %3366 = vrot.lane.b32.xlu0 %v3364, 96
        %v3367 = vpop.permute.xlu0 %3366
        %3369 = vrot.lane.b32.xlu0 %v3364, 64
        %v3370 = vpop.permute.xlu0 %3369
        %3372 = vrot.lane.b32.xlu0 %v3364, 32
        %v3373 = vpop.permute.xlu0 %3372
        %v3375 = vpack.c.bf16 %v3364, %v3364
        %v3376 = vpack.c.bf16 %v3367, %v3367
        %v3377 = vpack.c.bf16 %v3370, %v3370
        %v3378 = vpack.c.bf16 %v3373, %v3373
        %3380 = vrot.lane.b32.xlu0 %v3320, 96
        %v3381 = vpop.permute.xlu0 %3380
        %3383 = vrot.lane.b32.xlu0 %v3320, 64
        %v3384 = vpop.permute.xlu0 %3383
        %3386 = vrot.lane.b32.xlu0 %v3320, 32
        %v3387 = vpop.permute.xlu0 %3386
        %v3389 = vpack.c.bf16 %v3320, %v3320
        %v3390 = vpack.c.bf16 %v3381, %v3381
        %v3391 = vpack.c.bf16 %v3384, %v3384
        %v3392 = vpack.c.bf16 %v3387, %v3387
        %3394 = vrot.lane.b32.xlu0 %v3359, 96
        %v3395 = vpop.permute.xlu0 %3394
        %3397 = vrot.lane.b32.xlu0 %v3359, 64
        %v3398 = vpop.permute.xlu0 %3397
        %3400 = vrot.lane.b32.xlu0 %v3359, 32
        %v3401 = vpop.permute.xlu0 %3400
        %v3403 = vpack.c.bf16 %v3359, %v3359
        %v3404 = vpack.c.bf16 %v3395, %v3395
        %v3405 = vpack.c.bf16 %v3398, %v3398
        %v3406 = vpack.c.bf16 %v3401, %v3401
        %v3408 = vsel %vm1252, %v3375, 0
        %v3411 = vsel %vm1252, %v3389, 0
        %3413 = vmatprep.subr.bf16.mxu0 0
        %3414 = vmatpush1.bf16.xpose.msra.mxu0 %v3411
        %3415 = vmatprep.subr.bf16.mxu0 0
        %3416 = vmatpush1.bf16.xpose.msra.mxu0 0
        %3417 = vmatprep.subr.bf16.mxu0 0
        %3418 = vmatpush1.bf16.xpose.msra.mxu0 0
        %3419 = vmatprep.subr.bf16.mxu0 0
        %3420 = vmatpush1.bf16.xpose.msra.mxu0 0
        %3421 = vmatprep.subr.bf16.mxu0 0
        %3422 = vmatpush1.bf16.xpose.msra.mxu0 0
        %3423 = vmatprep.subr.bf16.mxu0 0
        %3424 = vmatpush1.bf16.xpose.msra.mxu0 0
        %3425 = vmatprep.subr.bf16.mxu0 0
        %3426 = vmatpush1.bf16.xpose.msra.mxu0 0
        %3427 = vmatprep.subr.bf16.mxu0 0
        %3428 = vmatpush1.bf16.xpose.msra.mxu0 0
        %3429 = vmatprep.subr.bf16.mxu0 0
        %3430 = vmatpush1.bf16.xpose.msra.mxu0 0
        %3431 = vmatprep.subr.bf16.mxu0 0
        %3432 = vmatpush1.bf16.xpose.msra.mxu0 0
        %3433 = vmatprep.subr.bf16.mxu0 0
        %3434 = vmatpush1.bf16.xpose.msra.mxu0 0
        %3435 = vmatprep.subr.bf16.mxu0 0
        %3436 = vmatpush1.bf16.xpose.msra.mxu0 0
        %3437 = vmatprep.subr.bf16.mxu0 0
        %3438 = vmatpush1.bf16.xpose.msra.mxu0 0
        %3439 = vmatprep.subr.bf16.mxu0 0
        %3440 = vmatpush1.bf16.xpose.msra.mxu0 0
        %3441 = vmatprep.subr.bf16.mxu0 0
        %3442 = vmatpush1.bf16.xpose.msra.mxu0 0
        %3443 = vmatprep.subr.bf16.mxu0 0
        %3444 = vmatpush1.bf16.xpose.msra.mxu0 0
        %3445 = vmatprep.mubr.bf16.mxu0 0
        %3446 = vmatmul.mubr.bf16.gmra.mrb[0].mxu0 %v3408
        %v3447 = vpop.f32.mrb[0].mxu0
        %v3448 = vadd.f32 %v903, %v3447
        %v3449 = vpop.f32.mrb[0].mxu0
        %v3450 = vpop.f32.mrb[0].mxu0
        %v3451 = vpop.f32.mrb[0].mxu0
        %3452 = vdwg.mxu0
        %v3454 = vsel %vm1252, %v3376, 0
        %v3457 = vsel %vm1252, %v3390, 0
        %3459 = vmatprep.subr.bf16.mxu0 0
        %3460 = vmatpush1.bf16.xpose.msra.mxu0 %v3457
        %3461 = vmatprep.subr.bf16.mxu0 0
        %3462 = vmatpush1.bf16.xpose.msra.mxu0 0
        %3463 = vmatprep.subr.bf16.mxu0 0
        %3464 = vmatpush1.bf16.xpose.msra.mxu0 0
        %3465 = vmatprep.subr.bf16.mxu0 0
        %3466 = vmatpush1.bf16.xpose.msra.mxu0 0
        %3467 = vmatprep.subr.bf16.mxu0 0
        %3468 = vmatpush1.bf16.xpose.msra.mxu0 0
        %3469 = vmatprep.subr.bf16.mxu0 0
        %3470 = vmatpush1.bf16.xpose.msra.mxu0 0
        %3471 = vmatprep.subr.bf16.mxu0 0
        %3472 = vmatpush1.bf16.xpose.msra.mxu0 0
        %3473 = vmatprep.subr.bf16.mxu0 0
        %3474 = vmatpush1.bf16.xpose.msra.mxu0 0
        %3475 = vmatprep.subr.bf16.mxu0 0
        %3476 = vmatpush1.bf16.xpose.msra.mxu0 0
        %3477 = vmatprep.subr.bf16.mxu0 0
        %3478 = vmatpush1.bf16.xpose.msra.mxu0 0
        %3479 = vmatprep.subr.bf16.mxu0 0
        %3480 = vmatpush1.bf16.xpose.msra.mxu0 0
        %3481 = vmatprep.subr.bf16.mxu0 0
        %3482 = vmatpush1.bf16.xpose.msra.mxu0 0
        %3483 = vmatprep.subr.bf16.mxu0 0
        %3484 = vmatpush1.bf16.xpose.msra.mxu0 0
        %3485 = vmatprep.subr.bf16.mxu0 0
        %3486 = vmatpush1.bf16.xpose.msra.mxu0 0
        %3487 = vmatprep.subr.bf16.mxu0 0
        %3488 = vmatpush1.bf16.xpose.msra.mxu0 0
        %3489 = vmatprep.subr.bf16.mxu0 0
        %3490 = vmatpush1.bf16.xpose.msra.mxu0 0
        %3491 = vmatprep.mubr.bf16.mxu0 0
        %3492 = vmatmul.mubr.bf16.gmra.mrb[0].mxu0 %v3454
        %v3493 = vpop.f32.mrb[0].mxu0
        %v3494 = vadd.f32 %v903, %v3493
        %v3495 = vpop.f32.mrb[0].mxu0
        %v3496 = vpop.f32.mrb[0].mxu0
        %v3497 = vpop.f32.mrb[0].mxu0
        %3498 = vdwg.mxu0
        %v3500 = vsel %vm1252, %v3377, 0
        %v3503 = vsel %vm1252, %v3391, 0
        %3505 = vmatprep.subr.bf16.mxu0 0
        %3506 = vmatpush1.bf16.xpose.msra.mxu0 %v3503
        %3507 = vmatprep.subr.bf16.mxu0 0
        %3508 = vmatpush1.bf16.xpose.msra.mxu0 0
        %3509 = vmatprep.subr.bf16.mxu0 0
        %3510 = vmatpush1.bf16.xpose.msra.mxu0 0
        %3511 = vmatprep.subr.bf16.mxu0 0
        %3512 = vmatpush1.bf16.xpose.msra.mxu0 0
        %3513 = vmatprep.subr.bf16.mxu0 0
        %3514 = vmatpush1.bf16.xpose.msra.mxu0 0
        %3515 = vmatprep.subr.bf16.mxu0 0
        %3516 = vmatpush1.bf16.xpose.msra.mxu0 0
        %3517 = vmatprep.subr.bf16.mxu0 0
        %3518 = vmatpush1.bf16.xpose.msra.mxu0 0
        %3519 = vmatprep.subr.bf16.mxu0 0
        %3520 = vmatpush1.bf16.xpose.msra.mxu0 0
        %3521 = vmatprep.subr.bf16.mxu0 0
        %3522 = vmatpush1.bf16.xpose.msra.mxu0 0
        %3523 = vmatprep.subr.bf16.mxu0 0
        %3524 = vmatpush1.bf16.xpose.msra.mxu0 0
        %3525 = vmatprep.subr.bf16.mxu0 0
        %3526 = vmatpush1.bf16.xpose.msra.mxu0 0
        %3527 = vmatprep.subr.bf16.mxu0 0
        %3528 = vmatpush1.bf16.xpose.msra.mxu0 0
        %3529 = vmatprep.subr.bf16.mxu0 0
        %3530 = vmatpush1.bf16.xpose.msra.mxu0 0
        %3531 = vmatprep.subr.bf16.mxu0 0
        %3532 = vmatpush1.bf16.xpose.msra.mxu0 0
        %3533 = vmatprep.subr.bf16.mxu0 0
        %3534 = vmatpush1.bf16.xpose.msra.mxu0 0
        %3535 = vmatprep.subr.bf16.mxu0 0
        %3536 = vmatpush1.bf16.xpose.msra.mxu0 0
        %3537 = vmatprep.mubr.bf16.mxu0 0
        %3538 = vmatmul.mubr.bf16.gmra.mrb[0].mxu0 %v3500
        %v3539 = vpop.f32.mrb[0].mxu0
        %v3540 = vadd.f32 %v903, %v3539
        %v3541 = vpop.f32.mrb[0].mxu0
        %v3542 = vpop.f32.mrb[0].mxu0
        %v3543 = vpop.f32.mrb[0].mxu0
        %3544 = vdwg.mxu0
        %v3546 = vsel %vm1252, %v3378, 0
        %v3549 = vsel %vm1252, %v3392, 0
        %3551 = vmatprep.subr.bf16.mxu0 0
        %3552 = vmatpush1.bf16.xpose.msra.mxu0 %v3549
        %3553 = vmatprep.subr.bf16.mxu0 0
        %3554 = vmatpush1.bf16.xpose.msra.mxu0 0
        %3555 = vmatprep.subr.bf16.mxu0 0
        %3556 = vmatpush1.bf16.xpose.msra.mxu0 0
        %3557 = vmatprep.subr.bf16.mxu0 0
        %3558 = vmatpush1.bf16.xpose.msra.mxu0 0
        %3559 = vmatprep.subr.bf16.mxu0 0
        %3560 = vmatpush1.bf16.xpose.msra.mxu0 0
        %3561 = vmatprep.subr.bf16.mxu0 0
        %3562 = vmatpush1.bf16.xpose.msra.mxu0 0
        %3563 = vmatprep.subr.bf16.mxu0 0
        %3564 = vmatpush1.bf16.xpose.msra.mxu0 0
        %3565 = vmatprep.subr.bf16.mxu0 0
        %3566 = vmatpush1.bf16.xpose.msra.mxu0 0
        %3567 = vmatprep.subr.bf16.mxu0 0
        %3568 = vmatpush1.bf16.xpose.msra.mxu0 0
        %3569 = vmatprep.subr.bf16.mxu0 0
        %3570 = vmatpush1.bf16.xpose.msra.mxu0 0
        %3571 = vmatprep.subr.bf16.mxu0 0
        %3572 = vmatpush1.bf16.xpose.msra.mxu0 0
        %3573 = vmatprep.subr.bf16.mxu0 0
        %3574 = vmatpush1.bf16.xpose.msra.mxu0 0
        %3575 = vmatprep.subr.bf16.mxu0 0
        %3576 = vmatpush1.bf16.xpose.msra.mxu0 0
        %3577 = vmatprep.subr.bf16.mxu0 0
        %3578 = vmatpush1.bf16.xpose.msra.mxu0 0
        %3579 = vmatprep.subr.bf16.mxu0 0
        %3580 = vmatpush1.bf16.xpose.msra.mxu0 0
        %3581 = vmatprep.subr.bf16.mxu0 0
        %3582 = vmatpush1.bf16.xpose.msra.mxu0 0
        %3583 = vmatprep.mubr.bf16.mxu0 0
        %3584 = vmatmul.mubr.bf16.gmra.mrb[0].mxu0 %v3546
        %v3585 = vpop.f32.mrb[0].mxu0
        %v3586 = vadd.f32 %v903, %v3585
        %v3587 = vpop.f32.mrb[0].mxu0
        %v3588 = vpop.f32.mrb[0].mxu0
        %v3589 = vpop.f32.mrb[0].mxu0
        %3590 = vdwg.mxu0
        %v3591 = vsel %vm1437, %v3448, -inf
        %3592 = vmax.xlane.f32.xlu0 %v3591
        %v3593 = vpop.xlane.xlu0 %3592
        %v3594 = vsel %vm1437, %v3494, -inf
        %3595 = vmax.xlane.f32.xlu0 %v3594
        %v3596 = vpop.xlane.xlu0 %3595
        %v3597 = vsel %vm1437, %v3540, -inf
        %3598 = vmax.xlane.f32.xlu0 %v3597
        %v3599 = vpop.xlane.xlu0 %3598
        %v3600 = vsel %vm1437, %v3586, -inf
        %3601 = vmax.xlane.f32.xlu0 %v3600
        %v3602 = vpop.xlane.xlu0 %3601
        %v3603 = vsub.f32 %v3448, %v3593
        %v3604 = vsub.f32 %v3494, %v3596
        %v3605 = vsub.f32 %v3540, %v3599
        %v3606 = vsub.f32 %v3586, %v3602
        %v3607 = vmul.f32 %v3603, 1.442695
        %v3608 = vpow.pop %v3607
        %v3609 = vmul.f32 %v3604, 1.442695
        %v3610 = vpow.pop %v3609
        %v3611 = vmul.f32 %v3605, 1.442695
        %v3612 = vpow.pop %v3611
        %v3613 = vmul.f32 %v3606, 1.442695
        %v3614 = vpow.pop %v3613
        %v3615 = vsel %vm1437, %v3608, 0.0
        %3616 = vadd.xlane.f32.xlu0 %v3615
        %v3617 = vpop.xlane.xlu0 %3616
        %v3618 = vsel %vm1437, %v3610, 0.0
        %3619 = vadd.xlane.f32.xlu0 %v3618
        %v3620 = vpop.xlane.xlu0 %3619
        %v3621 = vsel %vm1437, %v3612, 0.0
        %3622 = vadd.xlane.f32.xlu0 %v3621
        %v3623 = vpop.xlane.xlu0 %3622
        %v3624 = vsel %vm1437, %v3614, 0.0
        %3625 = vadd.xlane.f32.xlu0 %v3624
        %v3626 = vpop.xlane.xlu0 %3625
        %v3627 = vrcp.pop %v3617
        %v3628 = vrcp.pop %v3620
        %v3629 = vrcp.pop %v3623
        %v3630 = vrcp.pop %v3626
        %v3631 = vmul.f32 %v3608, %v3627
        %v3632 = vmul.f32 %v3610, %v3628
        %v3633 = vmul.f32 %v3612, %v3629
        %v3634 = vmul.f32 %v3614, %v3630
        %v3635 = vpack.c.bf16 %v3631, %v3631
        %v3636 = vpack.c.bf16 %v3632, %v3632
        %v3637 = vpack.c.bf16 %v3633, %v3633
        %v3638 = vpack.c.bf16 %v3634, %v3634
        %v3640 = vsel %vm1437, %v3635, 0
        %v3643 = vsel %vm1489, %v3403, 0
        %3645 = vmatprep.subr.bf16.mxu0 0
        %3646 = vmatpush1.bf16.msra.mxu0 %v3643
        %3647 = vmatprep.subr.bf16.mxu0 0
        %3648 = vmatpush1.bf16.msra.mxu0 0
        %3649 = vmatprep.subr.bf16.mxu0 0
        %3650 = vmatpush1.bf16.msra.mxu0 0
        %3651 = vmatprep.subr.bf16.mxu0 0
        %3652 = vmatpush1.bf16.msra.mxu0 0
        %3653 = vmatprep.subr.bf16.mxu0 0
        %3654 = vmatpush1.bf16.msra.mxu0 0
        %3655 = vmatprep.subr.bf16.mxu0 0
        %3656 = vmatpush1.bf16.msra.mxu0 0
        %3657 = vmatprep.subr.bf16.mxu0 0
        %3658 = vmatpush1.bf16.msra.mxu0 0
        %3659 = vmatprep.subr.bf16.mxu0 0
        %3660 = vmatpush1.bf16.msra.mxu0 0
        %3661 = vmatprep.subr.bf16.mxu0 0
        %3662 = vmatpush1.bf16.msra.mxu0 0
        %3663 = vmatprep.subr.bf16.mxu0 0
        %3664 = vmatpush1.bf16.msra.mxu0 0
        %3665 = vmatprep.subr.bf16.mxu0 0
        %3666 = vmatpush1.bf16.msra.mxu0 0
        %3667 = vmatprep.subr.bf16.mxu0 0
        %3668 = vmatpush1.bf16.msra.mxu0 0
        %3669 = vmatprep.subr.bf16.mxu0 0
        %3670 = vmatpush1.bf16.msra.mxu0 0
        %3671 = vmatprep.subr.bf16.mxu0 0
        %3672 = vmatpush1.bf16.msra.mxu0 0
        %3673 = vmatprep.subr.bf16.mxu0 0
        %3674 = vmatpush1.bf16.msra.mxu0 0
        %3675 = vmatprep.subr.bf16.mxu0 0
        %3676 = vmatpush1.bf16.msra.mxu0 0
        %3677 = vmatprep.mubr.bf16.mxu0 0
        %3678 = vmatmul.mubr.bf16.gmra.mrb[0].mxu0 %v3640
        %v3679 = vpop.f32.mrb[0].mxu0
        %v3680 = vadd.f32 0.0, %v3679
        %v3681 = vpop.f32.mrb[0].mxu0
        %v3682 = vpop.f32.mrb[0].mxu0
        %v3683 = vpop.f32.mrb[0].mxu0
        %3684 = vdwg.mxu0
        %v3686 = vsel %vm1437, %v3636, 0
        %v3689 = vsel %vm1489, %v3404, 0
        %3691 = vmatprep.subr.bf16.mxu0 0
        %3692 = vmatpush1.bf16.msra.mxu0 %v3689
        %3693 = vmatprep.subr.bf16.mxu0 0
        %3694 = vmatpush1.bf16.msra.mxu0 0
        %3695 = vmatprep.subr.bf16.mxu0 0
        %3696 = vmatpush1.bf16.msra.mxu0 0
        %3697 = vmatprep.subr.bf16.mxu0 0
        %3698 = vmatpush1.bf16.msra.mxu0 0
        %3699 = vmatprep.subr.bf16.mxu0 0
        %3700 = vmatpush1.bf16.msra.mxu0 0
        %3701 = vmatprep.subr.bf16.mxu0 0
        %3702 = vmatpush1.bf16.msra.mxu0 0
        %3703 = vmatprep.subr.bf16.mxu0 0
        %3704 = vmatpush1.bf16.msra.mxu0 0
        %3705 = vmatprep.subr.bf16.mxu0 0
        %3706 = vmatpush1.bf16.msra.mxu0 0
        %3707 = vmatprep.subr.bf16.mxu0 0
        %3708 = vmatpush1.bf16.msra.mxu0 0
        %3709 = vmatprep.subr.bf16.mxu0 0
        %3710 = vmatpush1.bf16.msra.mxu0 0
        %3711 = vmatprep.subr.bf16.mxu0 0
        %3712 = vmatpush1.bf16.msra.mxu0 0
        %3713 = vmatprep.subr.bf16.mxu0 0
        %3714 = vmatpush1.bf16.msra.mxu0 0
        %3715 = vmatprep.subr.bf16.mxu0 0
        %3716 = vmatpush1.bf16.msra.mxu0 0
        %3717 = vmatprep.subr.bf16.mxu0 0
        %3718 = vmatpush1.bf16.msra.mxu0 0
        %3719 = vmatprep.subr.bf16.mxu0 0
        %3720 = vmatpush1.bf16.msra.mxu0 0
        %3721 = vmatprep.subr.bf16.mxu0 0
        %3722 = vmatpush1.bf16.msra.mxu0 0
        %3723 = vmatprep.mubr.bf16.mxu0 0
        %3724 = vmatmul.mubr.bf16.gmra.mrb[0].mxu0 %v3686
        %v3725 = vpop.f32.mrb[0].mxu0
        %v3726 = vadd.f32 0.0, %v3725
        %v3727 = vpop.f32.mrb[0].mxu0
        %v3728 = vpop.f32.mrb[0].mxu0
        %v3729 = vpop.f32.mrb[0].mxu0
        %3730 = vdwg.mxu0
        %v3732 = vsel %vm1437, %v3637, 0
        %v3735 = vsel %vm1489, %v3405, 0
        %3737 = vmatprep.subr.bf16.mxu0 0
        %3738 = vmatpush1.bf16.msra.mxu0 %v3735
        %3739 = vmatprep.subr.bf16.mxu0 0
        %3740 = vmatpush1.bf16.msra.mxu0 0
        %3741 = vmatprep.subr.bf16.mxu0 0
        %3742 = vmatpush1.bf16.msra.mxu0 0
        %3743 = vmatprep.subr.bf16.mxu0 0
        %3744 = vmatpush1.bf16.msra.mxu0 0
        %3745 = vmatprep.subr.bf16.mxu0 0
        %3746 = vmatpush1.bf16.msra.mxu0 0
        %3747 = vmatprep.subr.bf16.mxu0 0
        %3748 = vmatpush1.bf16.msra.mxu0 0
        %3749 = vmatprep.subr.bf16.mxu0 0
        %3750 = vmatpush1.bf16.msra.mxu0 0
        %3751 = vmatprep.subr.bf16.mxu0 0
        %3752 = vmatpush1.bf16.msra.mxu0 0
        %3753 = vmatprep.subr.bf16.mxu0 0
        %3754 = vmatpush1.bf16.msra.mxu0 0
        %3755 = vmatprep.subr.bf16.mxu0 0
        %3756 = vmatpush1.bf16.msra.mxu0 0
        %3757 = vmatprep.subr.bf16.mxu0 0
        %3758 = vmatpush1.bf16.msra.mxu0 0
        %3759 = vmatprep.subr.bf16.mxu0 0
        %3760 = vmatpush1.bf16.msra.mxu0 0
        %3761 = vmatprep.subr.bf16.mxu0 0
        %3762 = vmatpush1.bf16.msra.mxu0 0
        %3763 = vmatprep.subr.bf16.mxu0 0
        %3764 = vmatpush1.bf16.msra.mxu0 0
        %3765 = vmatprep.subr.bf16.mxu0 0
        %3766 = vmatpush1.bf16.msra.mxu0 0
        %3767 = vmatprep.subr.bf16.mxu0 0
        %3768 = vmatpush1.bf16.msra.mxu0 0
        %3769 = vmatprep.mubr.bf16.mxu0 0
        %3770 = vmatmul.mubr.bf16.gmra.mrb[0].mxu0 %v3732
        %v3771 = vpop.f32.mrb[0].mxu0
        %v3772 = vadd.f32 0.0, %v3771
        %v3773 = vpop.f32.mrb[0].mxu0
        %v3774 = vpop.f32.mrb[0].mxu0
        %v3775 = vpop.f32.mrb[0].mxu0
        %3776 = vdwg.mxu0
        %v3778 = vsel %vm1437, %v3638, 0
        %v3781 = vsel %vm1489, %v3406, 0
        %3783 = vmatprep.subr.bf16.mxu0 0
        %3784 = vmatpush1.bf16.msra.mxu0 %v3781
        %3785 = vmatprep.subr.bf16.mxu0 0
        %3786 = vmatpush1.bf16.msra.mxu0 0
        %3787 = vmatprep.subr.bf16.mxu0 0
        %3788 = vmatpush1.bf16.msra.mxu0 0
        %3789 = vmatprep.subr.bf16.mxu0 0
        %3790 = vmatpush1.bf16.msra.mxu0 0
        %3791 = vmatprep.subr.bf16.mxu0 0
        %3792 = vmatpush1.bf16.msra.mxu0 0
        %3793 = vmatprep.subr.bf16.mxu0 0
        %3794 = vmatpush1.bf16.msra.mxu0 0
        %3795 = vmatprep.subr.bf16.mxu0 0
        %3796 = vmatpush1.bf16.msra.mxu0 0
        %3797 = vmatprep.subr.bf16.mxu0 0
        %3798 = vmatpush1.bf16.msra.mxu0 0
        %3799 = vmatprep.subr.bf16.mxu0 0
        %3800 = vmatpush1.bf16.msra.mxu0 0
        %3801 = vmatprep.subr.bf16.mxu0 0
        %3802 = vmatpush1.bf16.msra.mxu0 0
        %3803 = vmatprep.subr.bf16.mxu0 0
        %3804 = vmatpush1.bf16.msra.mxu0 0
        %3805 = vmatprep.subr.bf16.mxu0 0
        %3806 = vmatpush1.bf16.msra.mxu0 0
        %3807 = vmatprep.subr.bf16.mxu0 0
        %3808 = vmatpush1.bf16.msra.mxu0 0
        %3809 = vmatprep.subr.bf16.mxu0 0
        %3810 = vmatpush1.bf16.msra.mxu0 0
        %3811 = vmatprep.subr.bf16.mxu0 0
        %3812 = vmatpush1.bf16.msra.mxu0 0
        %3813 = vmatprep.subr.bf16.mxu0 0
        %3814 = vmatpush1.bf16.msra.mxu0 0
        %3815 = vmatprep.mubr.bf16.mxu0 0
        %3816 = vmatmul.mubr.bf16.gmra.mrb[0].mxu0 %v3778
        %v3817 = vpop.f32.mrb[0].mxu0
        %v3818 = vadd.f32 0.0, %v3817
        %v3819 = vpop.f32.mrb[0].mxu0
        %v3820 = vpop.f32.mrb[0].mxu0
        %v3821 = vpop.f32.mrb[0].mxu0
        %3822 = vdwg.mxu0
        %3824 = vrot.lane.b32.xlu0 %v3726, 32
        %v3825 = vpop.permute.xlu0 %3824
        %3828 = vrot.lane.b32.xlu0 %v3772, 64
        %v3829 = vpop.permute.xlu0 %3828
        %3832 = vrot.lane.b32.xlu0 %v3818, 96
        %v3833 = vpop.permute.xlu0 %3832
        %v3835 = vsel %vm1252, %v3680, %v3825
        %v3836 = vsel %vm1684, %v3835, %v3829
        %v3837 = vsel %vm1686, %v3836, %v3833
        %v3838 = vpack.c.bf16 %v3837, %v3837
        %s3839 = scalar_lea.vmem %s6, 64
        %v3840 = vld [vmem:[%s3839] sm:$0xf]
        %v3841 = vld [vmem:[%s3839 + $0x4] sm:$0xf]
        %v3842 = vld [vmem:[%s3839 + $0x8] sm:$0xf]
        %v3843 = vld [vmem:[%s3839 + $0xc] sm:$0xf]
        %v3844 = vld [vmem:[%s3839 + $0x10] sm:$0xf]
        %v3845 = vld [vmem:[%s3839 + $0x14] sm:$0xf]
        %v3846 = vld [vmem:[%s3839 + $0x18] sm:$0xf]
        %v3847 = vld [vmem:[%s3839 + $0x1c] sm:$0xf]
        %v3848 = vld [vmem:[%s3839 + $0x20] sm:$0xf]
        %v3849 = vld [vmem:[%s3839 + $0x24] sm:$0xf]
        %v3850 = vld [vmem:[%s3839 + $0x28] sm:$0xf]
        %v3851 = vld [vmem:[%s3839 + $0x2c] sm:$0xf]
        %v3852 = vld [vmem:[%s3839 + $0x30] sm:$0xf]
        %v3853 = vld [vmem:[%s3839 + $0x34] sm:$0xf]
        %v3854 = vld [vmem:[%s3839 + $0x38] sm:$0xf]
        %v3855 = vld [vmem:[%s3839 + $0x3c] sm:$0xf]
        %v3872 = vunpack.c.l.b16 %v3840
        %v3873 = vunpack.c.l.b16 %v3841
        %v3874 = vunpack.c.l.b16 %v3842
        %v3875 = vunpack.c.l.b16 %v3843
        %v3876 = vunpack.c.l.b16 %v3844
        %v3877 = vunpack.c.l.b16 %v3845
        %v3878 = vunpack.c.l.b16 %v3846
        %v3879 = vunpack.c.l.b16 %v3847
        %v3880 = vunpack.c.l.b16 %v3848
        %v3881 = vunpack.c.l.b16 %v3849
        %v3882 = vunpack.c.l.b16 %v3850
        %v3883 = vunpack.c.l.b16 %v3851
        %v3884 = vunpack.c.l.b16 %v3852
        %v3885 = vunpack.c.l.b16 %v3853
        %v3886 = vunpack.c.l.b16 %v3854
        %v3887 = vunpack.c.l.b16 %v3855
        %v3888 = vpack.c.b16 %v3873, %v3872
        %v3889 = vpack.c.b16 %v3875, %v3874
        %v3890 = vpack.c.b16 %v3877, %v3876
        %v3891 = vpack.c.b16 %v3879, %v3878
        %v3892 = vpack.c.b16 %v3881, %v3880
        %v3893 = vpack.c.b16 %v3883, %v3882
        %v3894 = vpack.c.b16 %v3885, %v3884
        %v3895 = vpack.c.b16 %v3887, %v3886
        %3904 = vmatprep.subr.bf16.mxu0 0
        %3905 = vmatpush1.bf16.msra.mxu0 %v3888
        %3906 = vmatprep.subr.bf16.mxu0 0
        %3907 = vmatpush1.bf16.msra.mxu0 %v3889
        %3908 = vmatprep.subr.bf16.mxu0 0
        %3909 = vmatpush1.bf16.msra.mxu0 %v3890
        %3910 = vmatprep.subr.bf16.mxu0 0
        %3911 = vmatpush1.bf16.msra.mxu0 %v3891
        %3912 = vmatprep.subr.bf16.mxu0 0
        %3913 = vmatpush1.bf16.msra.mxu0 %v3892
        %3914 = vmatprep.subr.bf16.mxu0 0
        %3915 = vmatpush1.bf16.msra.mxu0 %v3893
        %3916 = vmatprep.subr.bf16.mxu0 0
        %3917 = vmatpush1.bf16.msra.mxu0 %v3894
        %3918 = vmatprep.subr.bf16.mxu0 0
        %3919 = vmatpush1.bf16.msra.mxu0 %v3895
        %3920 = vmatprep.subr.bf16.mxu0 0
        %3921 = vmatpush1.bf16.msra.mxu0 0
        %3922 = vmatprep.subr.bf16.mxu0 0
        %3923 = vmatpush1.bf16.msra.mxu0 0
        %3924 = vmatprep.subr.bf16.mxu0 0
        %3925 = vmatpush1.bf16.msra.mxu0 0
        %3926 = vmatprep.subr.bf16.mxu0 0
        %3927 = vmatpush1.bf16.msra.mxu0 0
        %3928 = vmatprep.subr.bf16.mxu0 0
        %3929 = vmatpush1.bf16.msra.mxu0 0
        %3930 = vmatprep.subr.bf16.mxu0 0
        %3931 = vmatpush1.bf16.msra.mxu0 0
        %3932 = vmatprep.subr.bf16.mxu0 0
        %3933 = vmatpush1.bf16.msra.mxu0 0
        %3934 = vmatprep.subr.bf16.mxu0 0
        %3935 = vmatpush1.bf16.msra.mxu0 0
        %3936 = vmatprep.mubr.bf16.mxu0 0
        %3937 = vmatmul.mubr.bf16.gmra.mrb[0].mxu0 %v3838
        %v3938 = vpop.f32.mrb[0].mxu0
        %v3939 = vadd.f32 0.0, %v3938
        %v3940 = vpop.f32.mrb[0].mxu0
        %v3941 = vpop.f32.mrb[0].mxu0
        %v3942 = vpop.f32.mrb[0].mxu0
        %3943 = vdwg.mxu0
        %v3944 = vadd.f32 %v3070, %v3939
        %s3945 = scalar_lea.vmem [#allocation6], 1
        %v3946 = vld [vmem:[%s3945] sm:$0x1]
        %v3948 = vlaneseq
        %v3949 = vshrl.u32 %v3948, 7
        %v3950 = vsub.s32 0, %v3949
        %v3951 = vrot.slane %v3946, %v3950
        %v3953 = vadd.f32 %v3944, %v3951
        %3954 = vadd.xlane.f32.xlu0 %v3953
        %v3955 = vpop.xlane.xlu0 %3954
        %v3956 = vmul.f32 %v3955, %v919
        %v3957 = vsub.f32 %v3953, %v3956
        %v3958 = vmul.f32 %v3957, %v3957
        %3959 = vadd.xlane.f32.xlu0 %v3958
        %v3960 = vpop.xlane.xlu0 %3959
        %v3961 = vmul.f32 %v3960, 0.007874016
        %v3963 = vlaneseq
        %v3964 = vshrl.u32 %v3963, 7
        %v3965 = vsub.s32 0, %v3964
        %v3966 = vrot.slane %v908, %v3965
        %v3968 = vmul.f32 %v3966, %v3957
        %v3969 = vrsqrt.pop %v3961
        %v3970 = vmul.f32 %v3961, %v3969
        %vm3971 = vcmp.eq.f32.partialorder %v3961, inf
        %v3972 = vsel %vm3971, %v3961, %v3970
        %vm3973 = vcmp.eq.f32.partialorder %v3961, 0.0
        %v3974 = vand.u32 %v3961, 2147483648
        %v3975 = vsel %vm3973, %v3974, %v3972
        %v3976 = vadd.f32 %v3975, 1e-06
        %v3977 = vrcp.pop %v3976
        %v3978 = vmul.f32 %v3968, %v3977
        %v3980 = vlaneseq
        %v3981 = vshrl.u32 %v3980, 7
        %v3982 = vsub.s32 0, %v3981
        %v3983 = vrot.slane %v914, %v3982
        %v3985 = vadd.f32 %v3978, %v3983
        %v3986 = vpack.c.bf16 %v3985, %v3985
        %s3987 = scalar_lea.vmem [#allocation8], 64
        %v3988 = vld [vmem:[%s3987] sm:$0xf]
        %v3989 = vld [vmem:[%s3987 + $0x4] sm:$0xf]
        %v3990 = vld [vmem:[%s3987 + $0x8] sm:$0xf]
        %v3991 = vld [vmem:[%s3987 + $0xc] sm:$0xf]
        %v3992 = vld [vmem:[%s3987 + $0x10] sm:$0xf]
        %v3993 = vld [vmem:[%s3987 + $0x14] sm:$0xf]
        %v3994 = vld [vmem:[%s3987 + $0x18] sm:$0xf]
        %v3995 = vld [vmem:[%s3987 + $0x1c] sm:$0xf]
        %v3996 = vld [vmem:[%s3987 + $0x20] sm:$0xf]
        %v3997 = vld [vmem:[%s3987 + $0x24] sm:$0xf]
        %v3998 = vld [vmem:[%s3987 + $0x28] sm:$0xf]
        %v3999 = vld [vmem:[%s3987 + $0x2c] sm:$0xf]
        %v4000 = vld [vmem:[%s3987 + $0x30] sm:$0xf]
        %v4001 = vld [vmem:[%s3987 + $0x34] sm:$0xf]
        %v4002 = vld [vmem:[%s3987 + $0x38] sm:$0xf]
        %v4003 = vld [vmem:[%s3987 + $0x3c] sm:$0xf]
        %s4004 = scalar_lea.vmem [#allocation9], 1
        %v4005 = vld [vmem:[%s4004] sm:$0x1]
        %v4007 = vlaneseq
        %v4008 = vshrl.u32 %v4007, 7
        %v4009 = vsub.s32 0, %v4008
        %v4010 = vrot.slane %v4005, %v4009
        %v4028 = vunpack.c.l.b16 %v3988
        %v4029 = vunpack.c.l.b16 %v3989
        %v4030 = vunpack.c.l.b16 %v3990
        %v4031 = vunpack.c.l.b16 %v3991
        %v4032 = vunpack.c.l.b16 %v3992
        %v4033 = vunpack.c.l.b16 %v3993
        %v4034 = vunpack.c.l.b16 %v3994
        %v4035 = vunpack.c.l.b16 %v3995
        %v4036 = vunpack.c.l.b16 %v3996
        %v4037 = vunpack.c.l.b16 %v3997
        %v4038 = vunpack.c.l.b16 %v3998
        %v4039 = vunpack.c.l.b16 %v3999
        %v4040 = vunpack.c.l.b16 %v4000
        %v4041 = vunpack.c.l.b16 %v4001
        %v4042 = vunpack.c.l.b16 %v4002
        %v4043 = vunpack.c.l.b16 %v4003
        %v4044 = vpack.c.b16 %v4029, %v4028
        %v4045 = vpack.c.b16 %v4031, %v4030
        %v4046 = vpack.c.b16 %v4033, %v4032
        %v4047 = vpack.c.b16 %v4035, %v4034
        %v4048 = vpack.c.b16 %v4037, %v4036
        %v4049 = vpack.c.b16 %v4039, %v4038
        %v4050 = vpack.c.b16 %v4041, %v4040
        %v4051 = vpack.c.b16 %v4043, %v4042
        %4060 = vmatprep.subr.bf16.mxu0 0
        %4061 = vmatpush1.bf16.msra.mxu0 %v4044
        %4062 = vmatprep.subr.bf16.mxu0 0
        %4063 = vmatpush1.bf16.msra.mxu0 %v4045
        %4064 = vmatprep.subr.bf16.mxu0 0
        %4065 = vmatpush1.bf16.msra.mxu0 %v4046
        %4066 = vmatprep.subr.bf16.mxu0 0
        %4067 = vmatpush1.bf16.msra.mxu0 %v4047
        %4068 = vmatprep.subr.bf16.mxu0 0
        %4069 = vmatpush1.bf16.msra.mxu0 %v4048
        %4070 = vmatprep.subr.bf16.mxu0 0
        %4071 = vmatpush1.bf16.msra.mxu0 %v4049
        %4072 = vmatprep.subr.bf16.mxu0 0
        %4073 = vmatpush1.bf16.msra.mxu0 %v4050
        %4074 = vmatprep.subr.bf16.mxu0 0
        %4075 = vmatpush1.bf16.msra.mxu0 %v4051
        %4076 = vmatprep.subr.bf16.mxu0 0
        %4077 = vmatpush1.bf16.msra.mxu0 0
        %4078 = vmatprep.subr.bf16.mxu0 0
        %4079 = vmatpush1.bf16.msra.mxu0 0
        %4080 = vmatprep.subr.bf16.mxu0 0
        %4081 = vmatpush1.bf16.msra.mxu0 0
        %4082 = vmatprep.subr.bf16.mxu0 0
        %4083 = vmatpush1.bf16.msra.mxu0 0
        %4084 = vmatprep.subr.bf16.mxu0 0
        %4085 = vmatpush1.bf16.msra.mxu0 0
        %4086 = vmatprep.subr.bf16.mxu0 0
        %4087 = vmatpush1.bf16.msra.mxu0 0
        %4088 = vmatprep.subr.bf16.mxu0 0
        %4089 = vmatpush1.bf16.msra.mxu0 0
        %4090 = vmatprep.subr.bf16.mxu0 0
        %4091 = vmatpush1.bf16.msra.mxu0 0
        %4092 = vmatprep.mubr.bf16.mxu0 0
        %4093 = vmatmul.mubr.bf16.gmra.mrb[0].mxu0 %v3986
        %v4094 = vpop.f32.mrb[0].mxu0
        %v4095 = vadd.f32 %v4010, %v4094
        %v4096 = vpop.f32.mrb[0].mxu0
        %v4097 = vpop.f32.mrb[0].mxu0
        %v4098 = vpop.f32.mrb[0].mxu0
        %4099 = vdwg.mxu0
        %s4100 = scalar_lea.vmem %s788, 8 [#allocation2]
        %v4101 = vld [vmem:[%s4100] sm:$0xf]
        %v4102 = vld [vmem:[%s4100 + $0x4] sm:$0xf]
        %s4103 = scalar_lea.vmem [#allocation11], 128
        %v4104 = vld [vmem:[%s4103] sm:$0xff]
        %v4105 = vld [vmem:[%s4103 + $0x8] sm:$0xff]
        %v4106 = vld [vmem:[%s4103 + $0x10] sm:$0xff]
        %v4107 = vld [vmem:[%s4103 + $0x18] sm:$0xff]
        %v4108 = vld [vmem:[%s4103 + $0x20] sm:$0xff]
        %v4109 = vld [vmem:[%s4103 + $0x28] sm:$0xff]
        %v4110 = vld [vmem:[%s4103 + $0x30] sm:$0xff]
        %v4111 = vld [vmem:[%s4103 + $0x38] sm:$0xff]
        %v4112 = vld [vmem:[%s4103 + $0x40] sm:$0xff]
        %v4113 = vld [vmem:[%s4103 + $0x48] sm:$0xff]
        %v4114 = vld [vmem:[%s4103 + $0x50] sm:$0xff]
        %v4115 = vld [vmem:[%s4103 + $0x58] sm:$0xff]
        %v4116 = vld [vmem:[%s4103 + $0x60] sm:$0xff]
        %v4117 = vld [vmem:[%s4103 + $0x68] sm:$0xff]
        %v4118 = vld [vmem:[%s4103 + $0x70] sm:$0xff]
        %v4119 = vld [vmem:[%s4103 + $0x78] sm:$0xff]
        %s4120 = scalar_lea.vmem %s11, 2
        %v4121 = vld [vmem:[%s4120] sm:$0x3]
        %v4123 = vlaneseq
        %v4124 = vshrl.u32 %v4123, 7
        %v4125 = vsub.s32 0, %v4124
        %v4126 = vrot.slane %v4121, %v4125
        %v4127 = vlaneseq
        %v4128 = vshrl.u32 %v4127, 7
        %v4129 = vsub.s32 1, %v4128
        %v4130 = vrot.slane %v4121, %v4129
        %v4135 = vunpack.c.l.b16 %v4101
        %v4136 = vunpack.c.l.b16 %v4102
        %v4137 = vpack.c.b16 %v4136, %v4135
        %v4155 = vunpack.c.l.b16 %v4104
        %v4156 = vunpack.c.h.b16 %v4104
        %v4157 = vunpack.c.l.b16 %v4105
        %v4158 = vunpack.c.h.b16 %v4105
        %v4159 = vunpack.c.l.b16 %v4106
        %v4160 = vunpack.c.h.b16 %v4106
        %v4161 = vunpack.c.l.b16 %v4107
        %v4162 = vunpack.c.h.b16 %v4107
        %v4163 = vunpack.c.l.b16 %v4108
        %v4164 = vunpack.c.h.b16 %v4108
        %v4165 = vunpack.c.l.b16 %v4109
        %v4166 = vunpack.c.h.b16 %v4109
        %v4167 = vunpack.c.l.b16 %v4110
        %v4168 = vunpack.c.h.b16 %v4110
        %v4169 = vunpack.c.l.b16 %v4111
        %v4170 = vunpack.c.h.b16 %v4111
        %v4171 = vunpack.c.l.b16 %v4112
        %v4172 = vunpack.c.h.b16 %v4112
        %v4173 = vunpack.c.l.b16 %v4113
        %v4174 = vunpack.c.h.b16 %v4113
        %v4175 = vunpack.c.l.b16 %v4114
        %v4176 = vunpack.c.h.b16 %v4114
        %v4177 = vunpack.c.l.b16 %v4115
        %v4178 = vunpack.c.h.b16 %v4115
        %v4179 = vunpack.c.l.b16 %v4116
        %v4180 = vunpack.c.h.b16 %v4116
        %v4181 = vunpack.c.l.b16 %v4117
        %v4182 = vunpack.c.h.b16 %v4117
        %v4183 = vunpack.c.l.b16 %v4118
        %v4184 = vunpack.c.h.b16 %v4118
        %v4185 = vunpack.c.l.b16 %v4119
        %v4186 = vunpack.c.h.b16 %v4119
        %v4187 = vpack.c.b16 %v4157, %v4155
        %v4188 = vpack.c.b16 %v4158, %v4156
        %v4189 = vpack.c.b16 %v4161, %v4159
        %v4190 = vpack.c.b16 %v4162, %v4160
        %v4191 = vpack.c.b16 %v4165, %v4163
        %v4192 = vpack.c.b16 %v4166, %v4164
        %v4193 = vpack.c.b16 %v4169, %v4167
        %v4194 = vpack.c.b16 %v4170, %v4168
        %v4195 = vpack.c.b16 %v4173, %v4171
        %v4196 = vpack.c.b16 %v4174, %v4172
        %v4197 = vpack.c.b16 %v4177, %v4175
        %v4198 = vpack.c.b16 %v4178, %v4176
        %v4199 = vpack.c.b16 %v4181, %v4179
        %v4200 = vpack.c.b16 %v4182, %v4180
        %v4201 = vpack.c.b16 %v4185, %v4183
        %v4202 = vpack.c.b16 %v4186, %v4184
        %4219 = vmatprep.subr.bf16.mxu0 %v4188
        %4220 = vmatpush1.bf16.msra.mxu0 %v4187
        %4221 = vmatprep.subr.bf16.mxu0 %v4190
        %4222 = vmatpush1.bf16.msra.mxu0 %v4189
        %4223 = vmatprep.subr.bf16.mxu0 %v4192
        %4224 = vmatpush1.bf16.msra.mxu0 %v4191
        %4225 = vmatprep.subr.bf16.mxu0 %v4194
        %4226 = vmatpush1.bf16.msra.mxu0 %v4193
        %4227 = vmatprep.subr.bf16.mxu0 %v4196
        %4228 = vmatpush1.bf16.msra.mxu0 %v4195
        %4229 = vmatprep.subr.bf16.mxu0 %v4198
        %4230 = vmatpush1.bf16.msra.mxu0 %v4197
        %4231 = vmatprep.subr.bf16.mxu0 %v4200
        %4232 = vmatpush1.bf16.msra.mxu0 %v4199
        %4233 = vmatprep.subr.bf16.mxu0 %v4202
        %4234 = vmatpush1.bf16.msra.mxu0 %v4201
        %4235 = vmatprep.subr.bf16.mxu0 0
        %4236 = vmatpush1.bf16.msra.mxu0 0
        %4237 = vmatprep.subr.bf16.mxu0 0
        %4238 = vmatpush1.bf16.msra.mxu0 0
        %4239 = vmatprep.subr.bf16.mxu0 0
        %4240 = vmatpush1.bf16.msra.mxu0 0
        %4241 = vmatprep.subr.bf16.mxu0 0
        %4242 = vmatpush1.bf16.msra.mxu0 0
        %4243 = vmatprep.subr.bf16.mxu0 0
        %4244 = vmatpush1.bf16.msra.mxu0 0
        %4245 = vmatprep.subr.bf16.mxu0 0
        %4246 = vmatpush1.bf16.msra.mxu0 0
        %4247 = vmatprep.subr.bf16.mxu0 0
        %4248 = vmatpush1.bf16.msra.mxu0 0
        %4249 = vmatprep.subr.bf16.mxu0 0
        %4250 = vmatpush1.bf16.msra.mxu0 0
        %4251 = vmatprep.mubr.bf16.mxu0 0
        %4252 = vmatmul.mubr.bf16.gmra.mrb[0].mxu0 %v4137
        %v4253 = vpop.f32.mrb[0].mxu0
        %v4254 = vadd.f32 %v4126, %v4253
        %v4255 = vpop.f32.mrb[0].mxu0
        %v4256 = vadd.f32 %v4130, %v4255
        %v4257 = vpop.f32.mrb[0].mxu0
        %v4258 = vadd.f32 %v4126, %v4257
        %v4259 = vpop.f32.mrb[0].mxu0
        %v4260 = vadd.f32 %v4130, %v4259
        %4261 = vdwg.mxu0
        %v4262 = vmul.f32 %v4095, 0.17677669
        %4264 = vrot.lane.b32.xlu0 %v4262, 96
        %v4265 = vpop.permute.xlu0 %4264
        %4267 = vrot.lane.b32.xlu0 %v4262, 64
        %v4268 = vpop.permute.xlu0 %4267
        %4270 = vrot.lane.b32.xlu0 %v4262, 32
        %v4271 = vpop.permute.xlu0 %4270
        %v4273 = vpack.c.bf16 %v4262, %v4262
        %v4274 = vpack.c.bf16 %v4265, %v4265
        %v4275 = vpack.c.bf16 %v4268, %v4268
        %v4276 = vpack.c.bf16 %v4271, %v4271
        %4279 = vrot.lane.b32.xlu0 %v4254, 96
        %v4280 = vpop.permute.xlu0 %4279
        %4281 = vrot.lane.b32.xlu0 %v4258, 96
        %v4282 = vpop.permute.xlu0 %4281
        %4285 = vrot.lane.b32.xlu0 %v4254, 64
        %v4286 = vpop.permute.xlu0 %4285
        %4287 = vrot.lane.b32.xlu0 %v4258, 64
        %v4288 = vpop.permute.xlu0 %4287
        %4291 = vrot.lane.b32.xlu0 %v4254, 32
        %v4292 = vpop.permute.xlu0 %4291
        %4293 = vrot.lane.b32.xlu0 %v4258, 32
        %v4294 = vpop.permute.xlu0 %4293
        %v4297 = vpack.c.bf16 %v4258, %v4254
        %v4298 = vpack.c.bf16 %v4282, %v4280
        %v4299 = vpack.c.bf16 %v4288, %v4286
        %v4300 = vpack.c.bf16 %v4294, %v4292
        %4303 = vrot.lane.b32.xlu0 %v4256, 96
        %v4304 = vpop.permute.xlu0 %4303
        %4305 = vrot.lane.b32.xlu0 %v4260, 96
        %v4306 = vpop.permute.xlu0 %4305
        %4309 = vrot.lane.b32.xlu0 %v4256, 64
        %v4310 = vpop.permute.xlu0 %4309
        %4311 = vrot.lane.b32.xlu0 %v4260, 64
        %v4312 = vpop.permute.xlu0 %4311
        %4315 = vrot.lane.b32.xlu0 %v4256, 32
        %v4316 = vpop.permute.xlu0 %4315
        %4317 = vrot.lane.b32.xlu0 %v4260, 32
        %v4318 = vpop.permute.xlu0 %4317
        %v4321 = vpack.c.bf16 %v4260, %v4256
        %v4322 = vpack.c.bf16 %v4306, %v4304
        %v4323 = vpack.c.bf16 %v4312, %v4310
        %v4324 = vpack.c.bf16 %v4318, %v4316
        %v4326 = vsel %vm1252, %v4273, 0
        %v4329 = vsel %vm1252, %v4297, 0
        %4331 = vmatprep.subr.bf16.mxu0 0
        %4332 = vmatpush1.bf16.xpose.msra.mxu0 %v4329
        %4333 = vmatprep.subr.bf16.mxu0 0
        %4334 = vmatpush1.bf16.xpose.msra.mxu0 0
        %4335 = vmatprep.subr.bf16.mxu0 0
        %4336 = vmatpush1.bf16.xpose.msra.mxu0 0
        %4337 = vmatprep.subr.bf16.mxu0 0
        %4338 = vmatpush1.bf16.xpose.msra.mxu0 0
        %4339 = vmatprep.subr.bf16.mxu0 0
        %4340 = vmatpush1.bf16.xpose.msra.mxu0 0
        %4341 = vmatprep.subr.bf16.mxu0 0
        %4342 = vmatpush1.bf16.xpose.msra.mxu0 0
        %4343 = vmatprep.subr.bf16.mxu0 0
        %4344 = vmatpush1.bf16.xpose.msra.mxu0 0
        %4345 = vmatprep.subr.bf16.mxu0 0
        %4346 = vmatpush1.bf16.xpose.msra.mxu0 0
        %4347 = vmatprep.subr.bf16.mxu0 0
        %4348 = vmatpush1.bf16.xpose.msra.mxu0 0
        %4349 = vmatprep.subr.bf16.mxu0 0
        %4350 = vmatpush1.bf16.xpose.msra.mxu0 0
        %4351 = vmatprep.subr.bf16.mxu0 0
        %4352 = vmatpush1.bf16.xpose.msra.mxu0 0
        %4353 = vmatprep.subr.bf16.mxu0 0
        %4354 = vmatpush1.bf16.xpose.msra.mxu0 0
        %4355 = vmatprep.subr.bf16.mxu0 0
        %4356 = vmatpush1.bf16.xpose.msra.mxu0 0
        %4357 = vmatprep.subr.bf16.mxu0 0
        %4358 = vmatpush1.bf16.xpose.msra.mxu0 0
        %4359 = vmatprep.subr.bf16.mxu0 0
        %4360 = vmatpush1.bf16.xpose.msra.mxu0 0
        %4361 = vmatprep.subr.bf16.mxu0 0
        %4362 = vmatpush1.bf16.xpose.msra.mxu0 0
        %4363 = vmatprep.mubr.bf16.mxu0 0
        %4364 = vmatmul.mubr.bf16.gmra.mrb[0].mxu0 %v4326
        %v4365 = vpop.f32.mrb[0].mxu0
        %v4366 = vadd.f32 %v2172, %v4365
        %v4367 = vpop.f32.mrb[0].mxu0
        %v4368 = vpop.f32.mrb[0].mxu0
        %v4369 = vpop.f32.mrb[0].mxu0
        %4370 = vdwg.mxu0
        %v4372 = vsel %vm1252, %v4274, 0
        %v4375 = vsel %vm1252, %v4298, 0
        %4377 = vmatprep.subr.bf16.mxu0 0
        %4378 = vmatpush1.bf16.xpose.msra.mxu0 %v4375
        %4379 = vmatprep.subr.bf16.mxu0 0
        %4380 = vmatpush1.bf16.xpose.msra.mxu0 0
        %4381 = vmatprep.subr.bf16.mxu0 0
        %4382 = vmatpush1.bf16.xpose.msra.mxu0 0
        %4383 = vmatprep.subr.bf16.mxu0 0
        %4384 = vmatpush1.bf16.xpose.msra.mxu0 0
        %4385 = vmatprep.subr.bf16.mxu0 0
        %4386 = vmatpush1.bf16.xpose.msra.mxu0 0
        %4387 = vmatprep.subr.bf16.mxu0 0
        %4388 = vmatpush1.bf16.xpose.msra.mxu0 0
        %4389 = vmatprep.subr.bf16.mxu0 0
        %4390 = vmatpush1.bf16.xpose.msra.mxu0 0
        %4391 = vmatprep.subr.bf16.mxu0 0
        %4392 = vmatpush1.bf16.xpose.msra.mxu0 0
        %4393 = vmatprep.subr.bf16.mxu0 0
        %4394 = vmatpush1.bf16.xpose.msra.mxu0 0
        %4395 = vmatprep.subr.bf16.mxu0 0
        %4396 = vmatpush1.bf16.xpose.msra.mxu0 0
        %4397 = vmatprep.subr.bf16.mxu0 0
        %4398 = vmatpush1.bf16.xpose.msra.mxu0 0
        %4399 = vmatprep.subr.bf16.mxu0 0
        %4400 = vmatpush1.bf16.xpose.msra.mxu0 0
        %4401 = vmatprep.subr.bf16.mxu0 0
        %4402 = vmatpush1.bf16.xpose.msra.mxu0 0
        %4403 = vmatprep.subr.bf16.mxu0 0
        %4404 = vmatpush1.bf16.xpose.msra.mxu0 0
        %4405 = vmatprep.subr.bf16.mxu0 0
        %4406 = vmatpush1.bf16.xpose.msra.mxu0 0
        %4407 = vmatprep.subr.bf16.mxu0 0
        %4408 = vmatpush1.bf16.xpose.msra.mxu0 0
        %4409 = vmatprep.mubr.bf16.mxu0 0
        %4410 = vmatmul.mubr.bf16.gmra.mrb[0].mxu0 %v4372
        %v4411 = vpop.f32.mrb[0].mxu0
        %v4412 = vadd.f32 %v2172, %v4411
        %v4413 = vpop.f32.mrb[0].mxu0
        %v4414 = vpop.f32.mrb[0].mxu0
        %v4415 = vpop.f32.mrb[0].mxu0
        %4416 = vdwg.mxu0
        %v4418 = vsel %vm1252, %v4275, 0
        %v4421 = vsel %vm1252, %v4299, 0
        %4423 = vmatprep.subr.bf16.mxu0 0
        %4424 = vmatpush1.bf16.xpose.msra.mxu0 %v4421
        %4425 = vmatprep.subr.bf16.mxu0 0
        %4426 = vmatpush1.bf16.xpose.msra.mxu0 0
        %4427 = vmatprep.subr.bf16.mxu0 0
        %4428 = vmatpush1.bf16.xpose.msra.mxu0 0
        %4429 = vmatprep.subr.bf16.mxu0 0
        %4430 = vmatpush1.bf16.xpose.msra.mxu0 0
        %4431 = vmatprep.subr.bf16.mxu0 0
        %4432 = vmatpush1.bf16.xpose.msra.mxu0 0
        %4433 = vmatprep.subr.bf16.mxu0 0
        %4434 = vmatpush1.bf16.xpose.msra.mxu0 0
        %4435 = vmatprep.subr.bf16.mxu0 0
        %4436 = vmatpush1.bf16.xpose.msra.mxu0 0
        %4437 = vmatprep.subr.bf16.mxu0 0
        %4438 = vmatpush1.bf16.xpose.msra.mxu0 0
        %4439 = vmatprep.subr.bf16.mxu0 0
        %4440 = vmatpush1.bf16.xpose.msra.mxu0 0
        %4441 = vmatprep.subr.bf16.mxu0 0
        %4442 = vmatpush1.bf16.xpose.msra.mxu0 0
        %4443 = vmatprep.subr.bf16.mxu0 0
        %4444 = vmatpush1.bf16.xpose.msra.mxu0 0
        %4445 = vmatprep.subr.bf16.mxu0 0
        %4446 = vmatpush1.bf16.xpose.msra.mxu0 0
        %4447 = vmatprep.subr.bf16.mxu0 0
        %4448 = vmatpush1.bf16.xpose.msra.mxu0 0
        %4449 = vmatprep.subr.bf16.mxu0 0
        %4450 = vmatpush1.bf16.xpose.msra.mxu0 0
        %4451 = vmatprep.subr.bf16.mxu0 0
        %4452 = vmatpush1.bf16.xpose.msra.mxu0 0
        %4453 = vmatprep.subr.bf16.mxu0 0
        %4454 = vmatpush1.bf16.xpose.msra.mxu0 0
        %4455 = vmatprep.mubr.bf16.mxu0 0
        %4456 = vmatmul.mubr.bf16.gmra.mrb[0].mxu0 %v4418
        %v4457 = vpop.f32.mrb[0].mxu0
        %v4458 = vadd.f32 %v2172, %v4457
        %v4459 = vpop.f32.mrb[0].mxu0
        %v4460 = vpop.f32.mrb[0].mxu0
        %v4461 = vpop.f32.mrb[0].mxu0
        %4462 = vdwg.mxu0
        %v4464 = vsel %vm1252, %v4276, 0
        %v4467 = vsel %vm1252, %v4300, 0
        %4469 = vmatprep.subr.bf16.mxu0 0
        %4470 = vmatpush1.bf16.xpose.msra.mxu0 %v4467
        %4471 = vmatprep.subr.bf16.mxu0 0
        %4472 = vmatpush1.bf16.xpose.msra.mxu0 0
        %4473 = vmatprep.subr.bf16.mxu0 0
        %4474 = vmatpush1.bf16.xpose.msra.mxu0 0
        %4475 = vmatprep.subr.bf16.mxu0 0
        %4476 = vmatpush1.bf16.xpose.msra.mxu0 0
        %4477 = vmatprep.subr.bf16.mxu0 0
        %4478 = vmatpush1.bf16.xpose.msra.mxu0 0
        %4479 = vmatprep.subr.bf16.mxu0 0
        %4480 = vmatpush1.bf16.xpose.msra.mxu0 0
        %4481 = vmatprep.subr.bf16.mxu0 0
        %4482 = vmatpush1.bf16.xpose.msra.mxu0 0
        %4483 = vmatprep.subr.bf16.mxu0 0
        %4484 = vmatpush1.bf16.xpose.msra.mxu0 0
        %4485 = vmatprep.subr.bf16.mxu0 0
        %4486 = vmatpush1.bf16.xpose.msra.mxu0 0
        %4487 = vmatprep.subr.bf16.mxu0 0
        %4488 = vmatpush1.bf16.xpose.msra.mxu0 0
        %4489 = vmatprep.subr.bf16.mxu0 0
        %4490 = vmatpush1.bf16.xpose.msra.mxu0 0
        %4491 = vmatprep.subr.bf16.mxu0 0
        %4492 = vmatpush1.bf16.xpose.msra.mxu0 0
        %4493 = vmatprep.subr.bf16.mxu0 0
        %4494 = vmatpush1.bf16.xpose.msra.mxu0 0
        %4495 = vmatprep.subr.bf16.mxu0 0
        %4496 = vmatpush1.bf16.xpose.msra.mxu0 0
        %4497 = vmatprep.subr.bf16.mxu0 0
        %4498 = vmatpush1.bf16.xpose.msra.mxu0 0
        %4499 = vmatprep.subr.bf16.mxu0 0
        %4500 = vmatpush1.bf16.xpose.msra.mxu0 0
        %4501 = vmatprep.mubr.bf16.mxu0 0
        %4502 = vmatmul.mubr.bf16.gmra.mrb[0].mxu0 %v4464
        %v4503 = vpop.f32.mrb[0].mxu0
        %v4504 = vadd.f32 %v2172, %v4503
        %v4505 = vpop.f32.mrb[0].mxu0
        %v4506 = vpop.f32.mrb[0].mxu0
        %v4507 = vpop.f32.mrb[0].mxu0
        %4508 = vdwg.mxu0
        %v4509 = vsel %vm2358, %v4366, -inf
        %4510 = vmax.xlane.f32.xlu0 %v4509
        %v4511 = vpop.xlane.xlu0 %4510
        %v4512 = vsel %vm2358, %v4412, -inf
        %4513 = vmax.xlane.f32.xlu0 %v4512
        %v4514 = vpop.xlane.xlu0 %4513
        %v4515 = vsel %vm2358, %v4458, -inf
        %4516 = vmax.xlane.f32.xlu0 %v4515
        %v4517 = vpop.xlane.xlu0 %4516
        %v4518 = vsel %vm2358, %v4504, -inf
        %4519 = vmax.xlane.f32.xlu0 %v4518
        %v4520 = vpop.xlane.xlu0 %4519
        %v4521 = vsub.f32 %v4366, %v4511
        %v4522 = vsub.f32 %v4412, %v4514
        %v4523 = vsub.f32 %v4458, %v4517
        %v4524 = vsub.f32 %v4504, %v4520
        %v4525 = vmul.f32 %v4521, 1.442695
        %v4526 = vpow.pop %v4525
        %v4527 = vmul.f32 %v4522, 1.442695
        %v4528 = vpow.pop %v4527
        %v4529 = vmul.f32 %v4523, 1.442695
        %v4530 = vpow.pop %v4529
        %v4531 = vmul.f32 %v4524, 1.442695
        %v4532 = vpow.pop %v4531
        %v4533 = vsel %vm2358, %v4526, 0.0
        %4534 = vadd.xlane.f32.xlu0 %v4533
        %v4535 = vpop.xlane.xlu0 %4534
        %v4536 = vsel %vm2358, %v4528, 0.0
        %4537 = vadd.xlane.f32.xlu0 %v4536
        %v4538 = vpop.xlane.xlu0 %4537
        %v4539 = vsel %vm2358, %v4530, 0.0
        %4540 = vadd.xlane.f32.xlu0 %v4539
        %v4541 = vpop.xlane.xlu0 %4540
        %v4542 = vsel %vm2358, %v4532, 0.0
        %4543 = vadd.xlane.f32.xlu0 %v4542
        %v4544 = vpop.xlane.xlu0 %4543
        %v4545 = vrcp.pop %v4535
        %v4546 = vrcp.pop %v4538
        %v4547 = vrcp.pop %v4541
        %v4548 = vrcp.pop %v4544
        %v4549 = vmul.f32 %v4526, %v4545
        %v4550 = vmul.f32 %v4528, %v4546
        %v4551 = vmul.f32 %v4530, %v4547
        %v4552 = vmul.f32 %v4532, %v4548
        %v4553 = vpack.c.bf16 %v4549, %v4549
        %v4554 = vpack.c.bf16 %v4550, %v4550
        %v4555 = vpack.c.bf16 %v4551, %v4551
        %v4556 = vpack.c.bf16 %v4552, %v4552
        %v4558 = vsel %vm2358, %v4553, 0
        %4560 = vmatprep.subr.bf16.mxu0 0
        %4561 = vmatpush1.bf16.msra.mxu0 %v4321
        %4562 = vmatprep.subr.bf16.mxu0 0
        %4563 = vmatpush1.bf16.msra.mxu0 0
        %4564 = vmatprep.subr.bf16.mxu0 0
        %4565 = vmatpush1.bf16.msra.mxu0 0
        %4566 = vmatprep.subr.bf16.mxu0 0
        %4567 = vmatpush1.bf16.msra.mxu0 0
        %4568 = vmatprep.subr.bf16.mxu0 0
        %4569 = vmatpush1.bf16.msra.mxu0 0
        %4570 = vmatprep.subr.bf16.mxu0 0
        %4571 = vmatpush1.bf16.msra.mxu0 0
        %4572 = vmatprep.subr.bf16.mxu0 0
        %4573 = vmatpush1.bf16.msra.mxu0 0
        %4574 = vmatprep.subr.bf16.mxu0 0
        %4575 = vmatpush1.bf16.msra.mxu0 0
        %4576 = vmatprep.subr.bf16.mxu0 0
        %4577 = vmatpush1.bf16.msra.mxu0 0
        %4578 = vmatprep.subr.bf16.mxu0 0
        %4579 = vmatpush1.bf16.msra.mxu0 0
        %4580 = vmatprep.subr.bf16.mxu0 0
        %4581 = vmatpush1.bf16.msra.mxu0 0
        %4582 = vmatprep.subr.bf16.mxu0 0
        %4583 = vmatpush1.bf16.msra.mxu0 0
        %4584 = vmatprep.subr.bf16.mxu0 0
        %4585 = vmatpush1.bf16.msra.mxu0 0
        %4586 = vmatprep.subr.bf16.mxu0 0
        %4587 = vmatpush1.bf16.msra.mxu0 0
        %4588 = vmatprep.subr.bf16.mxu0 0
        %4589 = vmatpush1.bf16.msra.mxu0 0
        %4590 = vmatprep.subr.bf16.mxu0 0
        %4591 = vmatpush1.bf16.msra.mxu0 0
        %4592 = vmatprep.mubr.bf16.mxu0 0
        %4593 = vmatmul.mubr.bf16.gmra.mrb[0].mxu0 %v4558
        %v4594 = vpop.f32.mrb[0].mxu0
        %v4595 = vadd.f32 0.0, %v4594
        %v4596 = vpop.f32.mrb[0].mxu0
        %v4597 = vpop.f32.mrb[0].mxu0
        %v4598 = vpop.f32.mrb[0].mxu0
        %4599 = vdwg.mxu0
        %v4601 = vsel %vm2358, %v4554, 0
        %4603 = vmatprep.subr.bf16.mxu0 0
        %4604 = vmatpush1.bf16.msra.mxu0 %v4322
        %4605 = vmatprep.subr.bf16.mxu0 0
        %4606 = vmatpush1.bf16.msra.mxu0 0
        %4607 = vmatprep.subr.bf16.mxu0 0
        %4608 = vmatpush1.bf16.msra.mxu0 0
        %4609 = vmatprep.subr.bf16.mxu0 0
        %4610 = vmatpush1.bf16.msra.mxu0 0
        %4611 = vmatprep.subr.bf16.mxu0 0
        %4612 = vmatpush1.bf16.msra.mxu0 0
        %4613 = vmatprep.subr.bf16.mxu0 0
        %4614 = vmatpush1.bf16.msra.mxu0 0
        %4615 = vmatprep.subr.bf16.mxu0 0
        %4616 = vmatpush1.bf16.msra.mxu0 0
        %4617 = vmatprep.subr.bf16.mxu0 0
        %4618 = vmatpush1.bf16.msra.mxu0 0
        %4619 = vmatprep.subr.bf16.mxu0 0
        %4620 = vmatpush1.bf16.msra.mxu0 0
        %4621 = vmatprep.subr.bf16.mxu0 0
        %4622 = vmatpush1.bf16.msra.mxu0 0
        %4623 = vmatprep.subr.bf16.mxu0 0
        %4624 = vmatpush1.bf16.msra.mxu0 0
        %4625 = vmatprep.subr.bf16.mxu0 0
        %4626 = vmatpush1.bf16.msra.mxu0 0
        %4627 = vmatprep.subr.bf16.mxu0 0
        %4628 = vmatpush1.bf16.msra.mxu0 0
        %4629 = vmatprep.subr.bf16.mxu0 0
        %4630 = vmatpush1.bf16.msra.mxu0 0
        %4631 = vmatprep.subr.bf16.mxu0 0
        %4632 = vmatpush1.bf16.msra.mxu0 0
        %4633 = vmatprep.subr.bf16.mxu0 0
        %4634 = vmatpush1.bf16.msra.mxu0 0
        %4635 = vmatprep.mubr.bf16.mxu0 0
        %4636 = vmatmul.mubr.bf16.gmra.mrb[0].mxu0 %v4601
        %v4637 = vpop.f32.mrb[0].mxu0
        %v4638 = vadd.f32 0.0, %v4637
        %v4639 = vpop.f32.mrb[0].mxu0
        %v4640 = vpop.f32.mrb[0].mxu0
        %v4641 = vpop.f32.mrb[0].mxu0
        %4642 = vdwg.mxu0
        %v4644 = vsel %vm2358, %v4555, 0
        %4646 = vmatprep.subr.bf16.mxu0 0
        %4647 = vmatpush1.bf16.msra.mxu0 %v4323
        %4648 = vmatprep.subr.bf16.mxu0 0
        %4649 = vmatpush1.bf16.msra.mxu0 0
        %4650 = vmatprep.subr.bf16.mxu0 0
        %4651 = vmatpush1.bf16.msra.mxu0 0
        %4652 = vmatprep.subr.bf16.mxu0 0
        %4653 = vmatpush1.bf16.msra.mxu0 0
        %4654 = vmatprep.subr.bf16.mxu0 0
        %4655 = vmatpush1.bf16.msra.mxu0 0
        %4656 = vmatprep.subr.bf16.mxu0 0
        %4657 = vmatpush1.bf16.msra.mxu0 0
        %4658 = vmatprep.subr.bf16.mxu0 0
        %4659 = vmatpush1.bf16.msra.mxu0 0
        %4660 = vmatprep.subr.bf16.mxu0 0
        %4661 = vmatpush1.bf16.msra.mxu0 0
        %4662 = vmatprep.subr.bf16.mxu0 0
        %4663 = vmatpush1.bf16.msra.mxu0 0
        %4664 = vmatprep.subr.bf16.mxu0 0
        %4665 = vmatpush1.bf16.msra.mxu0 0
        %4666 = vmatprep.subr.bf16.mxu0 0
        %4667 = vmatpush1.bf16.msra.mxu0 0
        %4668 = vmatprep.subr.bf16.mxu0 0
        %4669 = vmatpush1.bf16.msra.mxu0 0
        %4670 = vmatprep.subr.bf16.mxu0 0
        %4671 = vmatpush1.bf16.msra.mxu0 0
        %4672 = vmatprep.subr.bf16.mxu0 0
        %4673 = vmatpush1.bf16.msra.mxu0 0
        %4674 = vmatprep.subr.bf16.mxu0 0
        %4675 = vmatpush1.bf16.msra.mxu0 0
        %4676 = vmatprep.subr.bf16.mxu0 0
        %4677 = vmatpush1.bf16.msra.mxu0 0
        %4678 = vmatprep.mubr.bf16.mxu0 0
        %4679 = vmatmul.mubr.bf16.gmra.mrb[0].mxu0 %v4644
        %v4680 = vpop.f32.mrb[0].mxu0
        %v4681 = vadd.f32 0.0, %v4680
        %v4682 = vpop.f32.mrb[0].mxu0
        %v4683 = vpop.f32.mrb[0].mxu0
        %v4684 = vpop.f32.mrb[0].mxu0
        %4685 = vdwg.mxu0
        %v4687 = vsel %vm2358, %v4556, 0
        %4689 = vmatprep.subr.bf16.mxu0 0
        %4690 = vmatpush1.bf16.msra.mxu0 %v4324
        %4691 = vmatprep.subr.bf16.mxu0 0
        %4692 = vmatpush1.bf16.msra.mxu0 0
        %4693 = vmatprep.subr.bf16.mxu0 0
        %4694 = vmatpush1.bf16.msra.mxu0 0
        %4695 = vmatprep.subr.bf16.mxu0 0
        %4696 = vmatpush1.bf16.msra.mxu0 0
        %4697 = vmatprep.subr.bf16.mxu0 0
        %4698 = vmatpush1.bf16.msra.mxu0 0
        %4699 = vmatprep.subr.bf16.mxu0 0
        %4700 = vmatpush1.bf16.msra.mxu0 0
        %4701 = vmatprep.subr.bf16.mxu0 0
        %4702 = vmatpush1.bf16.msra.mxu0 0
        %4703 = vmatprep.subr.bf16.mxu0 0
        %4704 = vmatpush1.bf16.msra.mxu0 0
        %4705 = vmatprep.subr.bf16.mxu0 0
        %4706 = vmatpush1.bf16.msra.mxu0 0
        %4707 = vmatprep.subr.bf16.mxu0 0
        %4708 = vmatpush1.bf16.msra.mxu0 0
        %4709 = vmatprep.subr.bf16.mxu0 0
        %4710 = vmatpush1.bf16.msra.mxu0 0
        %4711 = vmatprep.subr.bf16.mxu0 0
        %4712 = vmatpush1.bf16.msra.mxu0 0
        %4713 = vmatprep.subr.bf16.mxu0 0
        %4714 = vmatpush1.bf16.msra.mxu0 0
        %4715 = vmatprep.subr.bf16.mxu0 0
        %4716 = vmatpush1.bf16.msra.mxu0 0
        %4717 = vmatprep.subr.bf16.mxu0 0
        %4718 = vmatpush1.bf16.msra.mxu0 0
        %4719 = vmatprep.subr.bf16.mxu0 0
        %4720 = vmatpush1.bf16.msra.mxu0 0
        %4721 = vmatprep.mubr.bf16.mxu0 0
        %4722 = vmatmul.mubr.bf16.gmra.mrb[0].mxu0 %v4687
        %v4723 = vpop.f32.mrb[0].mxu0
        %v4724 = vadd.f32 0.0, %v4723
        %v4725 = vpop.f32.mrb[0].mxu0
        %v4726 = vpop.f32.mrb[0].mxu0
        %v4727 = vpop.f32.mrb[0].mxu0
        %4728 = vdwg.mxu0
        %4730 = vrot.lane.b32.xlu0 %v4638, 32
        %v4731 = vpop.permute.xlu0 %4730
        %4734 = vrot.lane.b32.xlu0 %v4681, 64
        %v4735 = vpop.permute.xlu0 %4734
        %4738 = vrot.lane.b32.xlu0 %v4724, 96
        %v4739 = vpop.permute.xlu0 %4738
        %v4741 = vsel %vm1252, %v4595, %v4731
        %v4742 = vsel %vm1684, %v4741, %v4735
        %v4743 = vsel %vm1686, %v4742, %v4739
        %v4744 = vpack.c.bf16 %v4743, %v4743
        %s4745 = scalar_lea.vmem [#allocation12], 64
        %v4746 = vld [vmem:[%s4745] sm:$0xf]
        %v4747 = vld [vmem:[%s4745 + $0x4] sm:$0xf]
        %v4748 = vld [vmem:[%s4745 + $0x8] sm:$0xf]
        %v4749 = vld [vmem:[%s4745 + $0xc] sm:$0xf]
        %v4750 = vld [vmem:[%s4745 + $0x10] sm:$0xf]
        %v4751 = vld [vmem:[%s4745 + $0x14] sm:$0xf]
        %v4752 = vld [vmem:[%s4745 + $0x18] sm:$0xf]
        %v4753 = vld [vmem:[%s4745 + $0x1c] sm:$0xf]
        %v4754 = vld [vmem:[%s4745 + $0x20] sm:$0xf]
        %v4755 = vld [vmem:[%s4745 + $0x24] sm:$0xf]
        %v4756 = vld [vmem:[%s4745 + $0x28] sm:$0xf]
        %v4757 = vld [vmem:[%s4745 + $0x2c] sm:$0xf]
        %v4758 = vld [vmem:[%s4745 + $0x30] sm:$0xf]
        %v4759 = vld [vmem:[%s4745 + $0x34] sm:$0xf]
        %v4760 = vld [vmem:[%s4745 + $0x38] sm:$0xf]
        %v4761 = vld [vmem:[%s4745 + $0x3c] sm:$0xf]
        %v4778 = vunpack.c.l.b16 %v4746
        %v4779 = vunpack.c.l.b16 %v4747
        %v4780 = vunpack.c.l.b16 %v4748
        %v4781 = vunpack.c.l.b16 %v4749
        %v4782 = vunpack.c.l.b16 %v4750
        %v4783 = vunpack.c.l.b16 %v4751
        %v4784 = vunpack.c.l.b16 %v4752
        %v4785 = vunpack.c.l.b16 %v4753
        %v4786 = vunpack.c.l.b16 %v4754
        %v4787 = vunpack.c.l.b16 %v4755
        %v4788 = vunpack.c.l.b16 %v4756
        %v4789 = vunpack.c.l.b16 %v4757
        %v4790 = vunpack.c.l.b16 %v4758
        %v4791 = vunpack.c.l.b16 %v4759
        %v4792 = vunpack.c.l.b16 %v4760
        %v4793 = vunpack.c.l.b16 %v4761
        %v4794 = vpack.c.b16 %v4779, %v4778
        %v4795 = vpack.c.b16 %v4781, %v4780
        %v4796 = vpack.c.b16 %v4783, %v4782
        %v4797 = vpack.c.b16 %v4785, %v4784
        %v4798 = vpack.c.b16 %v4787, %v4786
        %v4799 = vpack.c.b16 %v4789, %v4788
        %v4800 = vpack.c.b16 %v4791, %v4790
        %v4801 = vpack.c.b16 %v4793, %v4792
        %4810 = vmatprep.subr.bf16.mxu0 0
        %4811 = vmatpush1.bf16.msra.mxu0 %v4794
        %4812 = vmatprep.subr.bf16.mxu0 0
        %4813 = vmatpush1.bf16.msra.mxu0 %v4795
        %4814 = vmatprep.subr.bf16.mxu0 0
        %4815 = vmatpush1.bf16.msra.mxu0 %v4796
        %4816 = vmatprep.subr.bf16.mxu0 0
        %4817 = vmatpush1.bf16.msra.mxu0 %v4797
        %4818 = vmatprep.subr.bf16.mxu0 0
        %4819 = vmatpush1.bf16.msra.mxu0 %v4798
        %4820 = vmatprep.subr.bf16.mxu0 0
        %4821 = vmatpush1.bf16.msra.mxu0 %v4799
        %4822 = vmatprep.subr.bf16.mxu0 0
        %4823 = vmatpush1.bf16.msra.mxu0 %v4800
        %4824 = vmatprep.subr.bf16.mxu0 0
        %4825 = vmatpush1.bf16.msra.mxu0 %v4801
        %4826 = vmatprep.subr.bf16.mxu0 0
        %4827 = vmatpush1.bf16.msra.mxu0 0
        %4828 = vmatprep.subr.bf16.mxu0 0
        %4829 = vmatpush1.bf16.msra.mxu0 0
        %4830 = vmatprep.subr.bf16.mxu0 0
        %4831 = vmatpush1.bf16.msra.mxu0 0
        %4832 = vmatprep.subr.bf16.mxu0 0
        %4833 = vmatpush1.bf16.msra.mxu0 0
        %4834 = vmatprep.subr.bf16.mxu0 0
        %4835 = vmatpush1.bf16.msra.mxu0 0
        %4836 = vmatprep.subr.bf16.mxu0 0
        %4837 = vmatpush1.bf16.msra.mxu0 0
        %4838 = vmatprep.subr.bf16.mxu0 0
        %4839 = vmatpush1.bf16.msra.mxu0 0
        %4840 = vmatprep.subr.bf16.mxu0 0
        %4841 = vmatpush1.bf16.msra.mxu0 0
        %4842 = vmatprep.mubr.bf16.mxu0 0
        %4843 = vmatmul.mubr.bf16.gmra.mrb[0].mxu0 %v4744
        %v4844 = vpop.f32.mrb[0].mxu0
        %v4845 = vadd.f32 0.0, %v4844
        %v4846 = vpop.f32.mrb[0].mxu0
        %v4847 = vpop.f32.mrb[0].mxu0
        %v4848 = vpop.f32.mrb[0].mxu0
        %4849 = vdwg.mxu0
        %v4850 = vadd.f32 %v3953, %v4845
        %s4851 = scalar_lea.vmem %s13, 1
        %v4852 = vld [vmem:[%s4851] sm:$0x1]
        %v4854 = vlaneseq
        %v4855 = vshrl.u32 %v4854, 7
        %v4856 = vsub.s32 0, %v4855
        %v4857 = vrot.slane %v4852, %v4856
        %v4859 = vadd.f32 %v4850, %v4857
        %4860 = vadd.xlane.f32.xlu0 %v4859
        %v4861 = vpop.xlane.xlu0 %4860
        %v4862 = vmul.f32 %v4861, %v919
        %v4863 = vsub.f32 %v4859, %v4862
        %v4864 = vmul.f32 %v4863, %v4863
        %4865 = vadd.xlane.f32.xlu0 %v4864
        %v4866 = vpop.xlane.xlu0 %4865
        %v4867 = vmul.f32 %v4866, 0.007874016
        %v4869 = vlaneseq
        %v4870 = vshrl.u32 %v4869, 7
        %v4871 = vsub.s32 0, %v4870
        %v4872 = vrot.slane %v909, %v4871
        %v4874 = vmul.f32 %v4872, %v4863
        %v4875 = vrsqrt.pop %v4867
        %v4876 = vmul.f32 %v4867, %v4875
        %vm4877 = vcmp.eq.f32.partialorder %v4867, inf
        %v4878 = vsel %vm4877, %v4867, %v4876
        %vm4879 = vcmp.eq.f32.partialorder %v4867, 0.0
        %v4880 = vand.u32 %v4867, 2147483648
        %v4881 = vsel %vm4879, %v4880, %v4878
        %v4882 = vadd.f32 %v4881, 1e-06
        %v4883 = vrcp.pop %v4882
        %v4884 = vmul.f32 %v4874, %v4883
        %v4886 = vlaneseq
        %v4887 = vshrl.u32 %v4886, 7
        %v4888 = vsub.s32 0, %v4887
        %v4889 = vrot.slane %v915, %v4888
        %v4891 = vadd.f32 %v4884, %v4889
        %v4892 = vpack.c.bf16 %v4891, %v4891
        %s4893 = scalar_lea.vmem [#allocation14], 128
        %v4894 = vld [vmem:[%s4893] sm:$0xff]
        %v4895 = vld [vmem:[%s4893 + $0x8] sm:$0xff]
        %v4896 = vld [vmem:[%s4893 + $0x10] sm:$0xff]
        %v4897 = vld [vmem:[%s4893 + $0x18] sm:$0xff]
        %v4898 = vld [vmem:[%s4893 + $0x20] sm:$0xff]
        %v4899 = vld [vmem:[%s4893 + $0x28] sm:$0xff]
        %v4900 = vld [vmem:[%s4893 + $0x30] sm:$0xff]
        %v4901 = vld [vmem:[%s4893 + $0x38] sm:$0xff]
        %v4902 = vld [vmem:[%s4893 + $0x40] sm:$0xff]
        %v4903 = vld [vmem:[%s4893 + $0x48] sm:$0xff]
        %v4904 = vld [vmem:[%s4893 + $0x50] sm:$0xff]
        %v4905 = vld [vmem:[%s4893 + $0x58] sm:$0xff]
        %v4906 = vld [vmem:[%s4893 + $0x60] sm:$0xff]
        %v4907 = vld [vmem:[%s4893 + $0x68] sm:$0xff]
        %v4908 = vld [vmem:[%s4893 + $0x70] sm:$0xff]
        %v4909 = vld [vmem:[%s4893 + $0x78] sm:$0xff]
        %s4910 = scalar_lea.vmem %s15, 2
        %v4911 = vld [vmem:[%s4910] sm:$0x3]
        %v4913 = vlaneseq
        %v4914 = vshrl.u32 %v4913, 7
        %v4915 = vsub.s32 0, %v4914
        %v4916 = vrot.slane %v4911, %v4915
        %v4917 = vlaneseq
        %v4918 = vshrl.u32 %v4917, 7
        %v4919 = vsub.s32 1, %v4918
        %v4920 = vrot.slane %v4911, %v4919
        %v4939 = vunpack.c.l.b16 %v4894
        %v4940 = vunpack.c.h.b16 %v4894
        %v4941 = vunpack.c.l.b16 %v4895
        %v4942 = vunpack.c.h.b16 %v4895
        %v4943 = vunpack.c.l.b16 %v4896
        %v4944 = vunpack.c.h.b16 %v4896
        %v4945 = vunpack.c.l.b16 %v4897
        %v4946 = vunpack.c.h.b16 %v4897
        %v4947 = vunpack.c.l.b16 %v4898
        %v4948 = vunpack.c.h.b16 %v4898
        %v4949 = vunpack.c.l.b16 %v4899
        %v4950 = vunpack.c.h.b16 %v4899
        %v4951 = vunpack.c.l.b16 %v4900
        %v4952 = vunpack.c.h.b16 %v4900
        %v4953 = vunpack.c.l.b16 %v4901
        %v4954 = vunpack.c.h.b16 %v4901
        %v4955 = vunpack.c.l.b16 %v4902
        %v4956 = vunpack.c.h.b16 %v4902
        %v4957 = vunpack.c.l.b16 %v4903
        %v4958 = vunpack.c.h.b16 %v4903
        %v4959 = vunpack.c.l.b16 %v4904
        %v4960 = vunpack.c.h.b16 %v4904
        %v4961 = vunpack.c.l.b16 %v4905
        %v4962 = vunpack.c.h.b16 %v4905
        %v4963 = vunpack.c.l.b16 %v4906
        %v4964 = vunpack.c.h.b16 %v4906
        %v4965 = vunpack.c.l.b16 %v4907
        %v4966 = vunpack.c.h.b16 %v4907
        %v4967 = vunpack.c.l.b16 %v4908
        %v4968 = vunpack.c.h.b16 %v4908
        %v4969 = vunpack.c.l.b16 %v4909
        %v4970 = vunpack.c.h.b16 %v4909
        %v4971 = vpack.c.b16 %v4941, %v4939
        %v4972 = vpack.c.b16 %v4942, %v4940
        %v4973 = vpack.c.b16 %v4945, %v4943
        %v4974 = vpack.c.b16 %v4946, %v4944
        %v4975 = vpack.c.b16 %v4949, %v4947
        %v4976 = vpack.c.b16 %v4950, %v4948
        %v4977 = vpack.c.b16 %v4953, %v4951
        %v4978 = vpack.c.b16 %v4954, %v4952
        %v4979 = vpack.c.b16 %v4957, %v4955
        %v4980 = vpack.c.b16 %v4958, %v4956
        %v4981 = vpack.c.b16 %v4961, %v4959
        %v4982 = vpack.c.b16 %v4962, %v4960
        %v4983 = vpack.c.b16 %v4965, %v4963
        %v4984 = vpack.c.b16 %v4966, %v4964
        %v4985 = vpack.c.b16 %v4969, %v4967
        %v4986 = vpack.c.b16 %v4970, %v4968
        %5003 = vmatprep.subr.bf16.mxu0 %v4972
        %5004 = vmatpush1.bf16.msra.mxu0 %v4971
        %5005 = vmatprep.subr.bf16.mxu0 %v4974
        %5006 = vmatpush1.bf16.msra.mxu0 %v4973
        %5007 = vmatprep.subr.bf16.mxu0 %v4976
        %5008 = vmatpush1.bf16.msra.mxu0 %v4975
        %5009 = vmatprep.subr.bf16.mxu0 %v4978
        %5010 = vmatpush1.bf16.msra.mxu0 %v4977
        %5011 = vmatprep.subr.bf16.mxu0 %v4980
        %5012 = vmatpush1.bf16.msra.mxu0 %v4979
        %5013 = vmatprep.subr.bf16.mxu0 %v4982
        %5014 = vmatpush1.bf16.msra.mxu0 %v4981
        %5015 = vmatprep.subr.bf16.mxu0 %v4984
        %5016 = vmatpush1.bf16.msra.mxu0 %v4983
        %5017 = vmatprep.subr.bf16.mxu0 %v4986
        %5018 = vmatpush1.bf16.msra.mxu0 %v4985
        %5019 = vmatprep.subr.bf16.mxu0 0
        %5020 = vmatpush1.bf16.msra.mxu0 0
        %5021 = vmatprep.subr.bf16.mxu0 0
        %5022 = vmatpush1.bf16.msra.mxu0 0
        %5023 = vmatprep.subr.bf16.mxu0 0
        %5024 = vmatpush1.bf16.msra.mxu0 0
        %5025 = vmatprep.subr.bf16.mxu0 0
        %5026 = vmatpush1.bf16.msra.mxu0 0
        %5027 = vmatprep.subr.bf16.mxu0 0
        %5028 = vmatpush1.bf16.msra.mxu0 0
        %5029 = vmatprep.subr.bf16.mxu0 0
        %5030 = vmatpush1.bf16.msra.mxu0 0
        %5031 = vmatprep.subr.bf16.mxu0 0
        %5032 = vmatpush1.bf16.msra.mxu0 0
        %5033 = vmatprep.subr.bf16.mxu0 0
        %5034 = vmatpush1.bf16.msra.mxu0 0
        %5035 = vmatprep.mubr.bf16.mxu0 0
        %5036 = vmatmul.mubr.bf16.gmra.mrb[0].mxu0 %v4892
        %v5037 = vpop.f32.mrb[0].mxu0
        %v5038 = vadd.f32 %v4916, %v5037
        %v5039 = vpop.f32.mrb[0].mxu0
        %v5040 = vadd.f32 %v4920, %v5039
        %v5041 = vpop.f32.mrb[0].mxu0
        %v5042 = vpop.f32.mrb[0].mxu0
        %5043 = vdwg.mxu0
        %v5044 = vmax.f32 %v5038, 0.0
        %v5045 = vmax.f32 %v5040, 0.0
        %v5046 = vpack.c.bf16 %v5044, %v5044
        %v5047 = vpack.c.bf16 %v5045, %v5045
        %s5048 = scalar_lea.vmem [#allocation15], 128
        %v5049 = vld [vmem:[%s5048] sm:$0xf]
        %v5050 = vld [vmem:[%s5048 + $0x4] sm:$0xf]
        %v5051 = vld [vmem:[%s5048 + $0x8] sm:$0xf]
        %v5052 = vld [vmem:[%s5048 + $0xc] sm:$0xf]
        %v5053 = vld [vmem:[%s5048 + $0x10] sm:$0xf]
        %v5054 = vld [vmem:[%s5048 + $0x14] sm:$0xf]
        %v5055 = vld [vmem:[%s5048 + $0x18] sm:$0xf]
        %v5056 = vld [vmem:[%s5048 + $0x1c] sm:$0xf]
        %v5057 = vld [vmem:[%s5048 + $0x20] sm:$0xf]
        %v5058 = vld [vmem:[%s5048 + $0x24] sm:$0xf]
        %v5059 = vld [vmem:[%s5048 + $0x28] sm:$0xf]
        %v5060 = vld [vmem:[%s5048 + $0x2c] sm:$0xf]
        %v5061 = vld [vmem:[%s5048 + $0x30] sm:$0xf]
        %v5062 = vld [vmem:[%s5048 + $0x34] sm:$0xf]
        %v5063 = vld [vmem:[%s5048 + $0x38] sm:$0xf]
        %v5064 = vld [vmem:[%s5048 + $0x3c] sm:$0xf]
        %v5065 = vld [vmem:[%s5048 + $0x40] sm:$0xf]
        %v5066 = vld [vmem:[%s5048 + $0x44] sm:$0xf]
        %v5067 = vld [vmem:[%s5048 + $0x48] sm:$0xf]
        %v5068 = vld [vmem:[%s5048 + $0x4c] sm:$0xf]
        %v5069 = vld [vmem:[%s5048 + $0x50] sm:$0xf]
        %v5070 = vld [vmem:[%s5048 + $0x54] sm:$0xf]
        %v5071 = vld [vmem:[%s5048 + $0x58] sm:$0xf]
        %v5072 = vld [vmem:[%s5048 + $0x5c] sm:$0xf]
        %v5073 = vld [vmem:[%s5048 + $0x60] sm:$0xf]
        %v5074 = vld [vmem:[%s5048 + $0x64] sm:$0xf]
        %v5075 = vld [vmem:[%s5048 + $0x68] sm:$0xf]
        %v5076 = vld [vmem:[%s5048 + $0x6c] sm:$0xf]
        %v5077 = vld [vmem:[%s5048 + $0x70] sm:$0xf]
        %v5078 = vld [vmem:[%s5048 + $0x74] sm:$0xf]
        %v5079 = vld [vmem:[%s5048 + $0x78] sm:$0xf]
        %v5080 = vld [vmem:[%s5048 + $0x7c] sm:$0xf]
        %v5113 = vunpack.c.l.b16 %v5049
        %v5114 = vunpack.c.l.b16 %v5050
        %v5115 = vunpack.c.l.b16 %v5051
        %v5116 = vunpack.c.l.b16 %v5052
        %v5117 = vunpack.c.l.b16 %v5053
        %v5118 = vunpack.c.l.b16 %v5054
        %v5119 = vunpack.c.l.b16 %v5055
        %v5120 = vunpack.c.l.b16 %v5056
        %v5121 = vunpack.c.l.b16 %v5057
        %v5122 = vunpack.c.l.b16 %v5058
        %v5123 = vunpack.c.l.b16 %v5059
        %v5124 = vunpack.c.l.b16 %v5060
        %v5125 = vunpack.c.l.b16 %v5061
        %v5126 = vunpack.c.l.b16 %v5062
        %v5127 = vunpack.c.l.b16 %v5063
        %v5128 = vunpack.c.l.b16 %v5064
        %v5129 = vunpack.c.l.b16 %v5065
        %v5130 = vunpack.c.l.b16 %v5066
        %v5131 = vunpack.c.l.b16 %v5067
        %v5132 = vunpack.c.l.b16 %v5068
        %v5133 = vunpack.c.l.b16 %v5069
        %v5134 = vunpack.c.l.b16 %v5070
        %v5135 = vunpack.c.l.b16 %v5071
        %v5136 = vunpack.c.l.b16 %v5072
        %v5137 = vunpack.c.l.b16 %v5073
        %v5138 = vunpack.c.l.b16 %v5074
        %v5139 = vunpack.c.l.b16 %v5075
        %v5140 = vunpack.c.l.b16 %v5076
        %v5141 = vunpack.c.l.b16 %v5077
        %v5142 = vunpack.c.l.b16 %v5078
        %v5143 = vunpack.c.l.b16 %v5079
        %v5144 = vunpack.c.l.b16 %v5080
        %v5145 = vpack.c.b16 %v5114, %v5113
        %v5146 = vpack.c.b16 %v5116, %v5115
        %v5147 = vpack.c.b16 %v5118, %v5117
        %v5148 = vpack.c.b16 %v5120, %v5119
        %v5149 = vpack.c.b16 %v5122, %v5121
        %v5150 = vpack.c.b16 %v5124, %v5123
        %v5151 = vpack.c.b16 %v5126, %v5125
        %v5152 = vpack.c.b16 %v5128, %v5127
        %v5153 = vpack.c.b16 %v5130, %v5129
        %v5154 = vpack.c.b16 %v5132, %v5131
        %v5155 = vpack.c.b16 %v5134, %v5133
        %v5156 = vpack.c.b16 %v5136, %v5135
        %v5157 = vpack.c.b16 %v5138, %v5137
        %v5158 = vpack.c.b16 %v5140, %v5139
        %v5159 = vpack.c.b16 %v5142, %v5141
        %v5160 = vpack.c.b16 %v5144, %v5143
        %5177 = vmatprep.subr.bf16.mxu0 0
        %5178 = vmatpush1.bf16.msra.mxu0 %v5145
        %5179 = vmatprep.subr.bf16.mxu0 0
        %5180 = vmatpush1.bf16.msra.mxu0 %v5146
        %5181 = vmatprep.subr.bf16.mxu0 0
        %5182 = vmatpush1.bf16.msra.mxu0 %v5147
        %5183 = vmatprep.subr.bf16.mxu0 0
        %5184 = vmatpush1.bf16.msra.mxu0 %v5148
        %5185 = vmatprep.subr.bf16.mxu0 0
        %5186 = vmatpush1.bf16.msra.mxu0 %v5149
        %5187 = vmatprep.subr.bf16.mxu0 0
        %5188 = vmatpush1.bf16.msra.mxu0 %v5150
        %5189 = vmatprep.subr.bf16.mxu0 0
        %5190 = vmatpush1.bf16.msra.mxu0 %v5151
        %5191 = vmatprep.subr.bf16.mxu0 0
        %5192 = vmatpush1.bf16.msra.mxu0 %v5152
        %5193 = vmatprep.subr.bf16.mxu0 0
        %5194 = vmatpush1.bf16.msra.mxu0 %v5153
        %5195 = vmatprep.subr.bf16.mxu0 0
        %5196 = vmatpush1.bf16.msra.mxu0 %v5154
        %5197 = vmatprep.subr.bf16.mxu0 0
        %5198 = vmatpush1.bf16.msra.mxu0 %v5155
        %5199 = vmatprep.subr.bf16.mxu0 0
        %5200 = vmatpush1.bf16.msra.mxu0 %v5156
        %5201 = vmatprep.subr.bf16.mxu0 0
        %5202 = vmatpush1.bf16.msra.mxu0 %v5157
        %5203 = vmatprep.subr.bf16.mxu0 0
        %5204 = vmatpush1.bf16.msra.mxu0 %v5158
        %5205 = vmatprep.subr.bf16.mxu0 0
        %5206 = vmatpush1.bf16.msra.mxu0 %v5159
        %5207 = vmatprep.subr.bf16.mxu0 0
        %5208 = vmatpush1.bf16.msra.mxu0 %v5160
        %5209 = vmatprep.mubr.bf16.mxu0 %v5047
        %5210 = vmatmul.mubr.bf16.gmra.mrb[0].mxu0 %v5046
        %v5211 = vpop.f32.mrb[0].mxu0
        %v5212 = vadd.f32 0.0, %v5211
        %v5213 = vpop.f32.mrb[0].mxu0
        %v5214 = vpop.f32.mrb[0].mxu0
        %v5215 = vpop.f32.mrb[0].mxu0
        %5216 = vdwg.mxu0
        %v5217 = vadd.f32 %v4859, %v5212
        %s5218 = scalar_lea.vmem %s17, 1
        %v5219 = vld [vmem:[%s5218] sm:$0x1]
        %v5221 = vlaneseq
        %v5222 = vshrl.u32 %v5221, 7
        %v5223 = vsub.s32 0, %v5222
        %v5224 = vrot.slane %v5219, %v5223
        %v5226 = vadd.f32 %v5217, %v5224
        %v5227 = vld [vmem:[%s20] sm:$0x1]
        %v5228 = vld [vmem:[%s21] sm:$0x1]
        %5229 = vadd.xlane.f32.xlu0 %v5226
        %v5230 = vpop.xlane.xlu0 %5229
        %v5231 = vmul.f32 %v5230, %v919
        %v5232 = vsub.f32 %v5226, %v5231
        %v5233 = vmul.f32 %v5232, %v5232
        %5234 = vadd.xlane.f32.xlu0 %v5233
        %v5235 = vpop.xlane.xlu0 %5234
        %v5236 = vmul.f32 %v5235, 0.007874016
        %v5238 = vlaneseq
        %v5239 = vshrl.u32 %v5238, 7
        %v5240 = vsub.s32 0, %v5239
        %v5241 = vrot.slane %v5227, %v5240
        %v5243 = vmul.f32 %v5241, %v5232
        %v5244 = vrsqrt.pop %v5236
        %v5245 = vmul.f32 %v5236, %v5244
        %vm5246 = vcmp.eq.f32.partialorder %v5236, inf
        %v5247 = vsel %vm5246, %v5236, %v5245
        %vm5248 = vcmp.eq.f32.partialorder %v5236, 0.0
        %v5249 = vand.u32 %v5236, 2147483648
        %v5250 = vsel %vm5248, %v5249, %v5247
        %v5251 = vadd.f32 %v5250, 1e-06
        %v5252 = vrcp.pop %v5251
        %v5253 = vmul.f32 %v5243, %v5252
        %v5255 = vlaneseq
        %v5256 = vshrl.u32 %v5255, 7
        %v5257 = vsub.s32 0, %v5256
        %v5258 = vrot.slane %v5228, %v5257
        %v5260 = vadd.f32 %v5253, %v5258
        %5261 = vst [vmem:[%s889] sm:$0xff] %v5260
        %s5262 = sand.u32 %s531, 1
        %s5263 = scalar_lea.sflag [#allocation5], %s5262
        %s5264 = sand.u32 %s531, 1
        %s5265 = smul.addr %s5264, 8
        %s5266 = scalar_lea.vmem [#allocation17], %s5265
        // Predicated region
        $region182: #{decoder_forward.1} parent=144 // pred_check
          %p5267 = pneg %p541
        $region183: #{decoder_forward.1} parent=144 // pred_check_branch
          %5269 = sbr.rel (%p5267) target = $region185
        $region184: #{decoder_forward.1} parent=144 // pred_region
          %s5271 = ssub.s32 128, 128
          %5272 = vsyncadd %s5263, %s5271
          %s5273 = smul.addr %s41, 128
          %s5274 = scalar_lea.hbm %s22, %s5273
          %s5276 = sshll.u32 %s5266, 4
          %s5277 = int_to_ptr.vmem [resolvable:$true] %s5276
          %5279 = dma.vmem_to_hbm [thread:$0]  %s5277, 128, %s5274, %s5263
        $region185: #{decoder_forward.1} parent=144 // pred_fallthru
          _
      $region145: #{decoder_forward.1} parent=5 // pred_fallthru
        _
      %p5280 = scmp.le.s32.totalorder 2, %s36
      // Predicated region
      $region186: #{decoder_forward.1} parent=5 // pred_check
        %p5281 = pneg %p5280
      $region187: #{decoder_forward.1} parent=5 // pred_check_branch
        %5283 = sbr.rel (%p5281) target = $region189
      $region188: #{decoder_forward.1} parent=5 // pred_region
        %s5284 = ssub.s32 %s36, 2
        // Predicated region
        $region190: #{decoder_forward.1} parent=188 // pred_check
          %p5285 = pneg %p547
        $region191: #{decoder_forward.1} parent=188 // pred_check_branch
          %5287 = sbr.rel (%p5285) target = $region193
        $region192: #{decoder_forward.1} parent=188 // pred_region
          %s5288 = sand.u32 %s532, 1
          %s5289 = scalar_lea.sflag [#allocation5], %s5288
          %s5290 = sand.u32 %s532, 1
          %s5291 = smul.addr %s5290, 8
          %s5292 = scalar_lea.vmem [#allocation17], %s5291
          %5293 = dma.done %s5289, 128
        $region193: #{decoder_forward.1} parent=188 // pred_fallthru
          _
      $region189: #{decoder_forward.1} parent=5 // pred_fallthru
        _
    $region6: #{decoder_forward.1} parent=1 // loop_footer
      %s40 = sadd.s32 1, %s36
    $region7: #{decoder_forward.1} parent=1 // loop_footer_branch
      %35 = sbr.rel target = $region3
    $region8: #{decoder_forward.1} parent=1 // loop_exit
      _
    %5294 = vsyncpa [#allocation4], 1
    %s5295 = scalar_lea.sflag [#allocation4], 1
    %5296 = vsyncpa %s5295, 1
    %5297 = vsyncpa [#allocation7], 1
    %5298 = vsyncpa [#allocation10], 1
    %5299 = vsyncpa [#allocation13], 1
    %5300 = vsyncpa [#allocation16], 1
    %5301 = vsyncpa [#allocation5], 1
    %s5302 = scalar_lea.sflag [#allocation5], 1
    %5303 = vsyncpa %s5302, 1

</llo_original>
